<compile_context>
chip_gen: v7x
topology: tpu7x:2x2x1
jax: 0.10.0
libtpu: 0.0.40
codegen_flags: <defaults>
</compile_context>

<pallas_src>
import jax
import jax.numpy as jnp
from jax import lax
from jax.experimental import pallas as pl
from jax.experimental.pallas import tpu as pltpu


# ------------------------------ fused kernel -------------------------------

def _disc_kernel(xcol_ref, w1_ref, b1_ref, w2_ref, b2_ref,
                 wf1_ref, bf1_ref, wf2_ref, bf2_ref, wf3_ref, bf3_ref,
                 out_ref, a1_ref, p1_ref, c2_ref):
    f32 = jnp.float32
    bf16 = jnp.bfloat16

    # ---- conv1 (single K-packed dot, M-tiled) fused with pool1 --------------
    # xcol rows: oh*32 + ow (oh 0..27, ow 0..31; ow 28..31 are zero padding).
    # xcol lanes: (kh*5+kw)*3 + cin (75 valid).
    # w1 cols: 6*j + cout for j=0..4 (out channels replicated 5x for conv2).
    w1 = w1_ref[...]                                   # (128,128) bf16
    b1 = b1_ref[...]                                   # (1,128)   f32
    p1_ref[...] = jnp.zeros_like(p1_ref)               # zero pads (rows>=14, cols>=16)

    @pl.loop(0, 7)
    def _(ci):
        r0 = pl.multiple_of(ci * 128, 128)             # 4 oh rows per chunk
        xc = xcol_ref[0, pl.ds(r0, 128), :]            # (128,128) bf16
        y = jnp.dot(xc, w1, preferred_element_type=f32)
        a1_ref[...] = jnp.maximum(y + b1, 0.0)         # rows = oh_local*32 + ow
        # fused 2x2 max-pool of this chunk -> 2 pooled rows x 16 pooled cols
        e = a1_ref[pl.ds(0, 64, stride=2), :]          # even ow
        o = a1_ref[pl.ds(1, 64, stride=2), :]          # odd  ow
        wm = jnp.maximum(e, o).reshape(2, 2, 16, 128)  # (oh_pair, oh%2, w, c)
        p1_ref[pl.ds(2 * ci, 2), 0:16, :] = jnp.maximum(wm[:, 0], wm[:, 1])

    # ---- pack conv2's kw taps into lanes ------------------------------------
    # p1 lanes hold the 6 conv1 channels replicated at groups 6*j (j=0..4);
    # build p1k[h, w, 6*j + c] = p1[h, w + j, c] with shifted reads + lane masks.
    lane = lax.broadcasted_iota(jnp.int32, (16, 16, 128), 2)
    p1k = jnp.zeros((16, 16, 128), f32)
    for j in range(5):
        sj = p1_ref[:, pl.ds(j, 16), :]                # W-shifted view of p1
        p1k = jnp.where((lane >= 6 * j) & (lane < 6 * j + 6), sj, p1k)
    p1k = p1k.astype(bf16)

    # ---- conv2: 5 dots (one per kh), K = 30 valid lanes ----------------------
    acc2 = jnp.zeros((160, 128), f32)
    for kh in range(5):
        a = p1k[kh:kh + 10].reshape(160, 128)          # rows = oh2*16 + ow2
        acc2 = acc2 + jnp.dot(a, w2_ref[kh], preferred_element_type=f32)
    c2_ref[...] = jnp.maximum(acc2 + b2_ref[...], 0.0)

    # ---- pool2 -> p2 (5, 8, 128); lanes = 16 channels replicated 8x ----------
    e2 = c2_ref[pl.ds(0, 80, stride=2), :]
    o2 = c2_ref[pl.ds(1, 80, stride=2), :]
    wm2 = jnp.maximum(e2, o2).reshape(5, 2, 8, 128)
    p2 = jnp.maximum(wm2[:, 0], wm2[:, 1])             # (h2, w2, 16r + c)

    # ---- fc1: pack 25 positions x 16 ch into 4 lane groups -> 4 dots ---------
    lane1 = lax.broadcasted_iota(jnp.int32, (1, 128), 1)
    y = jnp.zeros((1, 128), f32)
    for g in range(4):
        vg = jnp.zeros((1, 128), f32)
        for r in range(8):
            t = g * 8 + r                              # t = h2*5 + w2
            if t <= 24:
                row = p2[t // 5, t % 5, :].reshape(1, 128)
                vg = jnp.where((lane1 >= 16 * r) & (lane1 < 16 * (r + 1)), row, vg)
        y = y + jnp.dot(vg.astype(bf16), wf1_ref[g], preferred_element_type=f32)
    y = jnp.maximum(y + bf1_ref[...], 0.0)             # valid cols 0..119

    # ---- fc2 + relu -----------------------------------------------------------
    y = jnp.dot(y.astype(bf16), wf2_ref[...], preferred_element_type=f32)
    y = jnp.maximum(y + bf2_ref[...], 0.0)             # valid cols 0..83

    # ---- fc3 + sigmoid (numerically stable tanh form) ------------------------
    z = jnp.dot(y.astype(bf16), wf3_ref[...], preferred_element_type=f32)
    z = z + bf3_ref[...]
    out_ref[...] = (0.5 * (jnp.tanh(0.5 * z) + 1.0)).reshape(1, 1, 128)


def _make_fused_call(n):
    grid_spec = pltpu.PrefetchScalarGridSpec(
        num_scalar_prefetch=0,
        grid=(n,),
        in_specs=[
            pl.BlockSpec((1, 896, 128), lambda b: (b, 0, 0)),     # im2col input
            pl.BlockSpec((128, 128), lambda b: (0, 0)),           # conv1 w (K-packed)
            pl.BlockSpec((1, 128), lambda b: (0, 0)),             # conv1 b
            pl.BlockSpec((5, 128, 128), lambda b: (0, 0, 0)),     # conv2 w (kw-packed)
            pl.BlockSpec((1, 128), lambda b: (0, 0)),             # conv2 b
            pl.BlockSpec((4, 128, 128), lambda b: (0, 0, 0)),     # fc1 w (pos-packed)
            pl.BlockSpec((1, 128), lambda b: (0, 0)),             # fc1 b
            pl.BlockSpec((128, 128), lambda b: (0, 0)),           # fc2 w
            pl.BlockSpec((1, 128), lambda b: (0, 0)),             # fc2 b
            pl.BlockSpec((128, 128), lambda b: (0, 0)),           # fc3 w
            pl.BlockSpec((1, 128), lambda b: (0, 0)),             # fc3 b
        ],
        out_specs=pl.BlockSpec((1, 1, 128), lambda b: (b, 0, 0)),
        scratch_shapes=[
            pltpu.VMEM((128, 128), jnp.float32),      # conv1 chunk (4 oh rows)
            pltpu.VMEM((16, 24, 128), jnp.float32),   # pool1 output (H->16, W->24 pad)
            pltpu.VMEM((160, 128), jnp.float32),      # conv2 output (10x16 rows)
        ],
    )
    return pl.pallas_call(
        _disc_kernel,
        out_shape=jax.ShapeDtypeStruct((n, 1, 128), jnp.float32),
        grid_spec=grid_spec,
        compiler_params=pltpu.CompilerParams(
            dimension_semantics=("parallel",),
        ),
    )


# ------------------------- parameter / input prep ---------------------------

def _pad_to(a, shape):
    pads = [(0, s - d) for d, s in zip(a.shape, shape)]
    return jnp.pad(a.astype(jnp.float32), pads)


def prepare_params(p):
    """One-time weight re-layout: K-packed, channel-replicated, bf16, padded."""
    bf16 = jnp.bfloat16
    f32 = jnp.float32

    # conv1: rows = (kh*5+kw)*3 + cin (75 valid); cols = 6*j + cout (replicated 5x).
    w1 = jnp.transpose(p["conv1_w"].astype(f32), (2, 3, 1, 0)).reshape(75, 6)
    w1 = _pad_to(jnp.tile(w1, (1, 5)), (128, 128))
    b1 = _pad_to(jnp.tile(p["conv1_b"].astype(f32), 5)[None, :], (1, 128))

    # conv2: [kh, 6*kw + cin, 16*r + cout] (cout replicated 8x for the fc1 packing).
    w2 = jnp.transpose(p["conv2_w"].astype(f32), (2, 3, 1, 0)).reshape(5, 30, 16)
    w2 = _pad_to(jnp.tile(w2, (1, 1, 8)), (5, 128, 128))
    b2 = jnp.tile(p["conv2_b"].astype(f32), 8)[None, :]            # (1,128)

    # fc1: [g, 16*r + c, o] = fc1_w[o, c*25 + (g*8 + r)], t = g*8+r = h2*5+w2 <= 24.
    a = p["fc1_w"].astype(f32).reshape(120, 16, 25)                # [o, c, t]
    a = jnp.transpose(a, (2, 1, 0))                                # [t, c, o]
    a = jnp.pad(a, ((0, 7), (0, 0), (0, 0)))                       # t -> 32
    a = a.reshape(4, 8, 16, 120).reshape(4, 128, 120)              # rows = 16*r + c
    wf1 = _pad_to(a, (4, 128, 128))
    bf1 = _pad_to(p["fc1_b"].astype(f32)[None, :], (1, 128))

    wf2 = _pad_to(p["fc2_w"].astype(f32).T, (128, 128))
    bf2 = _pad_to(p["fc2_b"].astype(f32)[None, :], (1, 128))
    wf3 = _pad_to(p["fc3_w"].astype(f32).T, (128, 128))
    bf3 = _pad_to(p["fc3_b"].astype(f32)[None, :], (1, 128))

    return {
        "w1": w1.astype(bf16), "b1": b1,
        "w2": w2.astype(bf16), "b2": b2,
        "wf1": wf1.astype(bf16), "bf1": bf1,
        "wf2": wf2.astype(bf16), "bf2": bf2,
        "wf3": wf3.astype(bf16), "bf3": bf3,
    }


def _im2col_conv1(x):
    """x: (N,3,32,32) -> (N, 896, 128) bf16: rows = oh*32+ow, lanes = tap*3+cin."""
    n = x.shape[0]
    xt = jnp.transpose(x, (0, 2, 3, 1)).astype(jnp.float32)        # (N,32,32,3)
    taps = [xt[:, kh:kh + 28, kw:kw + 28, :]
            for kh in range(5) for kw in range(5)]
    col = jnp.concatenate(taps, axis=-1)                           # (N,28,28,75)
    col = jnp.pad(col, ((0, 0), (0, 0), (0, 4), (0, 53)))          # (N,28,32,128)
    return col.reshape(n, 28 * 32, 128).astype(jnp.bfloat16)


def discriminator_forward(prepped, x):
    """x: (N, 3, 32, 32) NCHW float32 -> (N, 1) in (0, 1)."""
    n = x.shape[0]
    xcol = _im2col_conv1(x)
    out = _make_fused_call(n)(
        xcol,
        prepped["w1"], prepped["b1"],
        prepped["w2"], prepped["b2"],
        prepped["wf1"], prepped["bf1"],
        prepped["wf2"], prepped["bf2"],
        prepped["wf3"], prepped["bf3"],
    )
    return out[:, 0, :1]                                           # (N, 1)


# ------------------------------- reference ----------------------------------

def reference_forward(p, x):
    """Pure-JAX (XLA) reference with identical PyTorch semantics."""
    def conv(v, w, b):
        y = lax.conv_general_dilated(v, w, (1, 1), "VALID",
                                     dimension_numbers=("NCHW", "OIHW", "NCHW"))
        return jnp.maximum(y + b[None, :, None, None], 0.0)

    def pool(v):
        return lax.reduce_window(v, -jnp.inf, lax.max,
                                 (1, 1, 2, 2), (1, 1, 2, 2), "VALID")

    y = pool(conv(x, p["conv1_w"], p["conv1_b"]))
    y = pool(conv(y, p["conv2_w"], p["conv2_b"]))
    y = y.reshape(y.shape[0], -1)                                  # (N, 400), (c,h,w) order
    y = jnp.maximum(y @ p["fc1_w"].T + p["fc1_b"], 0.0)
    y = jnp.maximum(y @ p["fc2_w"].T + p["fc2_b"], 0.0)
    return jax.nn.sigmoid(y @ p["fc3_w"].T + p["fc3_b"])


# ----------------------------- initialization --------------------------------

def init_params(key):
    ks = jax.random.split(key, 10)

    def u(k, shape, fan_in):
        bound = 1.0 / jnp.sqrt(jnp.float32(fan_in))
        return jax.random.uniform(k, shape, jnp.float32, -bound, bound)

    return {
        "conv1_w": u(ks[0], (6, 3, 5, 5), 3 * 25),
        "conv1_b": u(ks[1], (6,), 3 * 25),
        "conv2_w": u(ks[2], (16, 6, 5, 5), 6 * 25),
        "conv2_b": u(ks[3], (16,), 6 * 25),
        "fc1_w":   u(ks[4], (120, 16 * 5 * 5), 16 * 5 * 5),
        "fc1_b":   u(ks[5], (120,), 16 * 5 * 5),
        "fc2_w":   u(ks[6], (84, 120), 120),
        "fc2_b":   u(ks[7], (84,), 120),
        "fc3_w":   u(ks[8], (1, 84), 84),
        "fc3_b":   u(ks[9], (1,), 84),
    }


# --------------------------------- main --------------------------------------

if __name__ == "__main__":
    key = jax.random.PRNGKey(0)
    k_x, k_p = jax.random.split(key)

    # Input shape is fixed by the module: fc1 expects 16*5*5 after two
    # conv(5x5)/pool(2x2) stages => 3x32x32 input.  Batch = 2.
    x = jax.random.normal(k_x, (2, 3, 32, 32), jnp.float32)
    params = init_params(k_p)
    prepped = prepare_params(params)      # one-time weight re-layout (not per-forward)

    fwd = jax.jit(discriminator_forward)
    out = jax.block_until_ready(fwd(prepped, x))

    ref = jax.block_until_ready(jax.jit(reference_forward)(params, x))

    assert out.shape == (2, 1)
    assert bool(jnp.all(jnp.isfinite(out)))
    assert bool(jnp.all((out > 0.0) & (out < 1.0)))
    assert bool(jnp.allclose(out, ref, atol=2e-2, rtol=2e-2)), (out, ref)
    print("KERNEL_OK")
</pallas_src>

<mosaic_0001>
module attributes {stable_mosaic.version = 11 : i64} {
  func.func @_disc_kernel(%arg0: i32, %arg1: memref<1x896x128xbf16, #tpu.memory_space<vmem>>, %arg2: memref<128x128xbf16, #tpu.memory_space<vmem>>, %arg3: memref<1x128xf32, #tpu.memory_space<vmem>>, %arg4: memref<5x128x128xbf16, #tpu.memory_space<vmem>>, %arg5: memref<1x128xf32, #tpu.memory_space<vmem>>, %arg6: memref<4x128x128xbf16, #tpu.memory_space<vmem>>, %arg7: memref<1x128xf32, #tpu.memory_space<vmem>>, %arg8: memref<128x128xbf16, #tpu.memory_space<vmem>>, %arg9: memref<1x128xf32, #tpu.memory_space<vmem>>, %arg10: memref<128x128xbf16, #tpu.memory_space<vmem>>, %arg11: memref<1x128xf32, #tpu.memory_space<vmem>>, %arg12: memref<1x1x128xf32, #tpu.memory_space<vmem>>, %arg13: memref<128x128xf32, #tpu.memory_space<vmem>>, %arg14: memref<16x24x128xf32, #tpu.memory_space<vmem>>, %arg15: memref<160x128xf32, #tpu.memory_space<vmem>>) attributes {dimension_semantics = [#tpu.dimension_semantics<parallel>], iteration_bounds = array<i64: 2>, scalar_prefetch = 0 : i64, scratch_operands = 3 : i64, tpu.core_type = #tpu.core_type<tc>, window_params = [{transform_indices = @transform_0, window_bounds = array<i64: 1, 896, 128>}, {pipeline_mode = #tpu.pipeline_mode<synchronous>, transform_indices = @transform_1, window_bounds = array<i64: 128, 128>}, {pipeline_mode = #tpu.pipeline_mode<synchronous>, transform_indices = @transform_2, window_bounds = array<i64: 1, 128>}, {pipeline_mode = #tpu.pipeline_mode<synchronous>, transform_indices = @transform_3, window_bounds = array<i64: 5, 128, 128>}, {pipeline_mode = #tpu.pipeline_mode<synchronous>, transform_indices = @transform_4, window_bounds = array<i64: 1, 128>}, {pipeline_mode = #tpu.pipeline_mode<synchronous>, transform_indices = @transform_5, window_bounds = array<i64: 4, 128, 128>}, {pipeline_mode = #tpu.pipeline_mode<synchronous>, transform_indices = @transform_6, window_bounds = array<i64: 1, 128>}, {pipeline_mode = #tpu.pipeline_mode<synchronous>, transform_indices = @transform_7, window_bounds = array<i64: 128, 128>}, {pipeline_mode = #tpu.pipeline_mode<synchronous>, transform_indices = @transform_8, window_bounds = array<i64: 1, 128>}, {pipeline_mode = #tpu.pipeline_mode<synchronous>, transform_indices = @transform_9, window_bounds = array<i64: 128, 128>}, {pipeline_mode = #tpu.pipeline_mode<synchronous>, transform_indices = @transform_10, window_bounds = array<i64: 1, 128>}, {transform_indices = @transform_11, window_bounds = array<i64: 1, 1, 128>}]} {
    %c0 = arith.constant 0 : index
    %c0_0 = arith.constant 0 : index
    %0 = vector.load %arg2[%c0, %c0_0] : memref<128x128xbf16, #tpu.memory_space<vmem>>, vector<128x128xbf16>
    %c0_1 = arith.constant 0 : index
    %c0_2 = arith.constant 0 : index
    %1 = vector.load %arg3[%c0_1, %c0_2] : memref<1x128xf32, #tpu.memory_space<vmem>>, vector<1x128xf32>
    %cst = arith.constant 0.000000e+00 : f32
    %2 = vector.broadcast %cst : f32 to vector<16x24x128xf32>
    %c0_3 = arith.constant 0 : index
    %c0_4 = arith.constant 0 : index
    %c0_5 = arith.constant 0 : index
    %3 = vector.load %arg14[%c0_3, %c0_4, %c0_5] : memref<16x24x128xf32, #tpu.memory_space<vmem>>, vector<16x24x128xf32>
    tpu.vector_store %arg14[%c0_3, %c0_4, %c0_5], %2 {strides = array<i32>} : memref<16x24x128xf32, #tpu.memory_space<vmem>>, vector<16x24x128xf32>,
    %c0_i32 = arith.constant 0 : i32
    %c7_i32 = arith.constant 7 : i32
    %4 = arith.addi %c0_i32, %c7_i32 : i32
    %c1_i32 = arith.constant 1 : i32
    scf.for %arg16 = %c0_i32 to %4 step %c1_i32  : i32 {
      %c1_i32_137 = arith.constant 1 : i32
      %365 = arith.muli %arg16, %c1_i32_137 : i32
      %c0_i32_138 = arith.constant 0 : i32
      %366 = arith.addi %c0_i32_138, %365 : i32
      %c128_i32_139 = arith.constant 128 : i32
      %367 = arith.muli %366, %c128_i32_139 : i32
      %368 = tpu.assume_multiple %367, 128 : i32
      %c0_140 = arith.constant 0 : index
      %369 = arith.index_cast %368 : i32 to index
      %c0_141 = arith.constant 0 : index
      %370 = vector.load %arg1[%c0_140, %369, %c0_141] : memref<1x896x128xbf16, #tpu.memory_space<vmem>>, vector<1x128x128xbf16>
      %371 = vector.shape_cast %370 : vector<1x128x128xbf16> to vector<128x128xbf16>
      %cst_142 = arith.constant dense<0.000000e+00> : vector<128x128xf32>
      %372 = tpu.matmul %371, %0, %cst_142 {dimension_numbers = #tpu.dot_dimension_numbers<[1], [0], [0], [1], [0, 0, 1, 1], [], []>} : vector<128x128xbf16>, vector<128x128xbf16>, vector<128x128xf32> -> vector<128x128xf32>
      %373 = vector.broadcast %1 : vector<1x128xf32> to vector<128x128xf32>
      %374 = arith.addf %372, %373 : vector<128x128xf32>
      %cst_143 = arith.constant 0.000000e+00 : f32
      %375 = vector.broadcast %cst_143 : f32 to vector<128x128xf32>
      %376 = arith.maximumf %374, %375 : vector<128x128xf32>
      %c0_144 = arith.constant 0 : index
      %c0_145 = arith.constant 0 : index
      %377 = vector.load %arg13[%c0_144, %c0_145] : memref<128x128xf32, #tpu.memory_space<vmem>>, vector<128x128xf32>
      tpu.vector_store %arg13[%c0_144, %c0_145], %376 {strides = array<i32>} : memref<128x128xf32, #tpu.memory_space<vmem>>, vector<128x128xf32>,
      %c0_146 = arith.constant 0 : index
      %c0_147 = arith.constant 0 : index
      %378 = tpu.strided_load %arg13[%c0_146, %c0_147] {strides = array<i32: 2, 1>} : memref<128x128xf32, #tpu.memory_space<vmem>>, vector<64x128xf32>
      %c1_148 = arith.constant 1 : index
      %c0_149 = arith.constant 0 : index
      %379 = tpu.strided_load %arg13[%c1_148, %c0_149] {strides = array<i32: 2, 1>} : memref<128x128xf32, #tpu.memory_space<vmem>>, vector<64x128xf32>
      %380 = arith.maximumf %378, %379 : vector<64x128xf32>
      %381 = vector.shape_cast %380 : vector<64x128xf32> to vector<2x2x16x128xf32>
      %382 = vector.extract_strided_slice %381 {offsets = [0, 0, 0, 0], sizes = [2, 1, 16, 128], strides = [1, 1, 1, 1]} : vector<2x2x16x128xf32> to vector<2x1x16x128xf32>
      %383 = vector.shape_cast %382 : vector<2x1x16x128xf32> to vector<2x16x128xf32>
      %384 = vector.extract_strided_slice %381 {offsets = [0, 1, 0, 0], sizes = [2, 1, 16, 128], strides = [1, 1, 1, 1]} : vector<2x2x16x128xf32> to vector<2x1x16x128xf32>
      %385 = vector.shape_cast %384 : vector<2x1x16x128xf32> to vector<2x16x128xf32>
      %386 = arith.maximumf %383, %385 : vector<2x16x128xf32>
      %c2_i32 = arith.constant 2 : i32
      %387 = arith.muli %c2_i32, %366 : i32
      %388 = arith.index_cast %387 : i32 to index
      %c0_150 = arith.constant 0 : index
      %c0_151 = arith.constant 0 : index
      %389 = vector.load %arg14[%388, %c0_150, %c0_151] : memref<16x24x128xf32, #tpu.memory_space<vmem>>, vector<2x16x128xf32>
      tpu.vector_store %arg14[%388, %c0_150, %c0_151], %386 {strides = array<i32>} : memref<16x24x128xf32, #tpu.memory_space<vmem>>, vector<2x16x128xf32>,
    }
    %c7_i32_6 = arith.constant 7 : i32
    %5 = tpu.iota {dimensions = array<i32: 2>} : vector<16x16x128xi32>
    %cst_7 = arith.constant 0.000000e+00 : f32
    %6 = vector.broadcast %cst_7 : f32 to vector<16x16x128xf32>
    %c0_8 = arith.constant 0 : index
    %c0_9 = arith.constant 0 : index
    %c0_10 = arith.constant 0 : index
    %7 = vector.load %arg14[%c0_8, %c0_9, %c0_10] : memref<16x24x128xf32, #tpu.memory_space<vmem>>, vector<16x16x128xf32>
    %c0_i32_11 = arith.constant 0 : i32
    %8 = vector.broadcast %c0_i32_11 : i32 to vector<16x16x128xi32>
    %9 = arith.cmpi sge, %5, %8 : vector<16x16x128xi32>
    %c6_i32 = arith.constant 6 : i32
    %10 = vector.broadcast %c6_i32 : i32 to vector<16x16x128xi32>
    %11 = arith.cmpi slt, %5, %10 : vector<16x16x128xi32>
    %12 = arith.andi %9, %11 : vector<16x16x128xi1>
    %13 = arith.select %12, %7, %6 : vector<16x16x128xi1>, vector<16x16x128xf32>
    %c0_12 = arith.constant 0 : index
    %c1 = arith.constant 1 : index
    %c0_13 = arith.constant 0 : index
    %14 = vector.load %arg14[%c0_12, %c1, %c0_13] : memref<16x24x128xf32, #tpu.memory_space<vmem>>, vector<16x16x128xf32>
    %c6_i32_14 = arith.constant 6 : i32
    %15 = vector.broadcast %c6_i32_14 : i32 to vector<16x16x128xi32>
    %16 = arith.cmpi sge, %5, %15 : vector<16x16x128xi32>
    %c12_i32 = arith.constant 12 : i32
    %17 = vector.broadcast %c12_i32 : i32 to vector<16x16x128xi32>
    %18 = arith.cmpi slt, %5, %17 : vector<16x16x128xi32>
    %19 = arith.andi %16, %18 : vector<16x16x128xi1>
    %20 = arith.select %19, %14, %13 : vector<16x16x128xi1>, vector<16x16x128xf32>
    %c0_15 = arith.constant 0 : index
    %c2 = arith.constant 2 : index
    %c0_16 = arith.constant 0 : index
    %21 = vector.load %arg14[%c0_15, %c2, %c0_16] : memref<16x24x128xf32, #tpu.memory_space<vmem>>, vector<16x16x128xf32>
    %c12_i32_17 = arith.constant 12 : i32
    %22 = vector.broadcast %c12_i32_17 : i32 to vector<16x16x128xi32>
    %23 = arith.cmpi sge, %5, %22 : vector<16x16x128xi32>
    %c18_i32 = arith.constant 18 : i32
    %24 = vector.broadcast %c18_i32 : i32 to vector<16x16x128xi32>
    %25 = arith.cmpi slt, %5, %24 : vector<16x16x128xi32>
    %26 = arith.andi %23, %25 : vector<16x16x128xi1>
    %27 = arith.select %26, %21, %20 : vector<16x16x128xi1>, vector<16x16x128xf32>
    %c0_18 = arith.constant 0 : index
    %c3 = arith.constant 3 : index
    %c0_19 = arith.constant 0 : index
    %28 = vector.load %arg14[%c0_18, %c3, %c0_19] : memref<16x24x128xf32, #tpu.memory_space<vmem>>, vector<16x16x128xf32>
    %c18_i32_20 = arith.constant 18 : i32
    %29 = vector.broadcast %c18_i32_20 : i32 to vector<16x16x128xi32>
    %30 = arith.cmpi sge, %5, %29 : vector<16x16x128xi32>
    %c24_i32 = arith.constant 24 : i32
    %31 = vector.broadcast %c24_i32 : i32 to vector<16x16x128xi32>
    %32 = arith.cmpi slt, %5, %31 : vector<16x16x128xi32>
    %33 = arith.andi %30, %32 : vector<16x16x128xi1>
    %34 = arith.select %33, %28, %27 : vector<16x16x128xi1>, vector<16x16x128xf32>
    %c0_21 = arith.constant 0 : index
    %c4 = arith.constant 4 : index
    %c0_22 = arith.constant 0 : index
    %35 = vector.load %arg14[%c0_21, %c4, %c0_22] : memref<16x24x128xf32, #tpu.memory_space<vmem>>, vector<16x16x128xf32>
    %c24_i32_23 = arith.constant 24 : i32
    %36 = vector.broadcast %c24_i32_23 : i32 to vector<16x16x128xi32>
    %37 = arith.cmpi sge, %5, %36 : vector<16x16x128xi32>
    %c30_i32 = arith.constant 30 : i32
    %38 = vector.broadcast %c30_i32 : i32 to vector<16x16x128xi32>
    %39 = arith.cmpi slt, %5, %38 : vector<16x16x128xi32>
    %40 = arith.andi %37, %39 : vector<16x16x128xi1>
    %41 = arith.select %40, %35, %34 : vector<16x16x128xi1>, vector<16x16x128xf32>
    %42 = arith.truncf %41 : vector<16x16x128xf32> to vector<16x16x128xbf16>
    %cst_24 = arith.constant 0.000000e+00 : f32
    %43 = vector.broadcast %cst_24 : f32 to vector<160x128xf32>
    %44 = vector.extract_strided_slice %42 {offsets = [0, 0, 0], sizes = [10, 16, 128], strides = [1, 1, 1]} : vector<16x16x128xbf16> to vector<10x16x128xbf16>
    %45 = vector.shape_cast %44 : vector<10x16x128xbf16> to vector<160x128xbf16>
    %c0_25 = arith.constant 0 : index
    %c0_26 = arith.constant 0 : index
    %c0_27 = arith.constant 0 : index
    %46 = vector.load %arg4[%c0_25, %c0_26, %c0_27] : memref<5x128x128xbf16, #tpu.memory_space<vmem>>, vector<1x128x128xbf16>
    %47 = vector.shape_cast %46 : vector<1x128x128xbf16> to vector<128x128xbf16>
    %cst_28 = arith.constant dense<0.000000e+00> : vector<160x128xf32>
    %48 = tpu.matmul %45, %47, %cst_28 {dimension_numbers = #tpu.dot_dimension_numbers<[1], [0], [0], [1], [0, 0, 1, 1], [], []>} : vector<160x128xbf16>, vector<128x128xbf16>, vector<160x128xf32> -> vector<160x128xf32>
    %49 = arith.addf %43, %48 : vector<160x128xf32>
    %50 = vector.extract_strided_slice %42 {offsets = [1, 0, 0], sizes = [10, 16, 128], strides = [1, 1, 1]} : vector<16x16x128xbf16> to vector<10x16x128xbf16>
    %51 = vector.shape_cast %50 : vector<10x16x128xbf16> to vector<160x128xbf16>
    %c1_29 = arith.constant 1 : index
    %c0_30 = arith.constant 0 : index
    %c0_31 = arith.constant 0 : index
    %52 = vector.load %arg4[%c1_29, %c0_30, %c0_31] : memref<5x128x128xbf16, #tpu.memory_space<vmem>>, vector<1x128x128xbf16>
    %53 = vector.shape_cast %52 : vector<1x128x128xbf16> to vector<128x128xbf16>
    %cst_32 = arith.constant dense<0.000000e+00> : vector<160x128xf32>
    %54 = tpu.matmul %51, %53, %cst_32 {dimension_numbers = #tpu.dot_dimension_numbers<[1], [0], [0], [1], [0, 0, 1, 1], [], []>} : vector<160x128xbf16>, vector<128x128xbf16>, vector<160x128xf32> -> vector<160x128xf32>
    %55 = arith.addf %49, %54 : vector<160x128xf32>
    %56 = vector.extract_strided_slice %42 {offsets = [2, 0, 0], sizes = [10, 16, 128], strides = [1, 1, 1]} : vector<16x16x128xbf16> to vector<10x16x128xbf16>
    %57 = vector.shape_cast %56 : vector<10x16x128xbf16> to vector<160x128xbf16>
    %c2_33 = arith.constant 2 : index
    %c0_34 = arith.constant 0 : index
    %c0_35 = arith.constant 0 : index
    %58 = vector.load %arg4[%c2_33, %c0_34, %c0_35] : memref<5x128x128xbf16, #tpu.memory_space<vmem>>, vector<1x128x128xbf16>
    %59 = vector.shape_cast %58 : vector<1x128x128xbf16> to vector<128x128xbf16>
    %cst_36 = arith.constant dense<0.000000e+00> : vector<160x128xf32>
    %60 = tpu.matmul %57, %59, %cst_36 {dimension_numbers = #tpu.dot_dimension_numbers<[1], [0], [0], [1], [0, 0, 1, 1], [], []>} : vector<160x128xbf16>, vector<128x128xbf16>, vector<160x128xf32> -> vector<160x128xf32>
    %61 = arith.addf %55, %60 : vector<160x128xf32>
    %62 = vector.extract_strided_slice %42 {offsets = [3, 0, 0], sizes = [10, 16, 128], strides = [1, 1, 1]} : vector<16x16x128xbf16> to vector<10x16x128xbf16>
    %63 = vector.shape_cast %62 : vector<10x16x128xbf16> to vector<160x128xbf16>
    %c3_37 = arith.constant 3 : index
    %c0_38 = arith.constant 0 : index
    %c0_39 = arith.constant 0 : index
    %64 = vector.load %arg4[%c3_37, %c0_38, %c0_39] : memref<5x128x128xbf16, #tpu.memory_space<vmem>>, vector<1x128x128xbf16>
    %65 = vector.shape_cast %64 : vector<1x128x128xbf16> to vector<128x128xbf16>
    %cst_40 = arith.constant dense<0.000000e+00> : vector<160x128xf32>
    %66 = tpu.matmul %63, %65, %cst_40 {dimension_numbers = #tpu.dot_dimension_numbers<[1], [0], [0], [1], [0, 0, 1, 1], [], []>} : vector<160x128xbf16>, vector<128x128xbf16>, vector<160x128xf32> -> vector<160x128xf32>
    %67 = arith.addf %61, %66 : vector<160x128xf32>
    %68 = vector.extract_strided_slice %42 {offsets = [4, 0, 0], sizes = [10, 16, 128], strides = [1, 1, 1]} : vector<16x16x128xbf16> to vector<10x16x128xbf16>
    %69 = vector.shape_cast %68 : vector<10x16x128xbf16> to vector<160x128xbf16>
    %c4_41 = arith.constant 4 : index
    %c0_42 = arith.constant 0 : index
    %c0_43 = arith.constant 0 : index
    %70 = vector.load %arg4[%c4_41, %c0_42, %c0_43] : memref<5x128x128xbf16, #tpu.memory_space<vmem>>, vector<1x128x128xbf16>
    %71 = vector.shape_cast %70 : vector<1x128x128xbf16> to vector<128x128xbf16>
    %cst_44 = arith.constant dense<0.000000e+00> : vector<160x128xf32>
    %72 = tpu.matmul %69, %71, %cst_44 {dimension_numbers = #tpu.dot_dimension_numbers<[1], [0], [0], [1], [0, 0, 1, 1], [], []>} : vector<160x128xbf16>, vector<128x128xbf16>, vector<160x128xf32> -> vector<160x128xf32>
    %73 = arith.addf %67, %72 : vector<160x128xf32>
    %c0_45 = arith.constant 0 : index
    %c0_46 = arith.constant 0 : index
    %74 = vector.load %arg5[%c0_45, %c0_46] : memref<1x128xf32, #tpu.memory_space<vmem>>, vector<1x128xf32>
    %75 = vector.broadcast %74 : vector<1x128xf32> to vector<160x128xf32>
    %76 = arith.addf %73, %75 : vector<160x128xf32>
    %cst_47 = arith.constant 0.000000e+00 : f32
    %77 = vector.broadcast %cst_47 : f32 to vector<160x128xf32>
    %78 = arith.maximumf %76, %77 : vector<160x128xf32>
    %c0_48 = arith.constant 0 : index
    %c0_49 = arith.constant 0 : index
    %79 = vector.load %arg15[%c0_48, %c0_49] : memref<160x128xf32, #tpu.memory_space<vmem>>, vector<160x128xf32>
    tpu.vector_store %arg15[%c0_48, %c0_49], %78 {strides = array<i32>} : memref<160x128xf32, #tpu.memory_space<vmem>>, vector<160x128xf32>,
    %c0_50 = arith.constant 0 : index
    %c0_51 = arith.constant 0 : index
    %80 = tpu.strided_load %arg15[%c0_50, %c0_51] {strides = array<i32: 2, 1>} : memref<160x128xf32, #tpu.memory_space<vmem>>, vector<80x128xf32>
    %c1_52 = arith.constant 1 : index
    %c0_53 = arith.constant 0 : index
    %81 = tpu.strided_load %arg15[%c1_52, %c0_53] {strides = array<i32: 2, 1>} : memref<160x128xf32, #tpu.memory_space<vmem>>, vector<80x128xf32>
    %82 = arith.maximumf %80, %81 : vector<80x128xf32>
    %83 = vector.shape_cast %82 : vector<80x128xf32> to vector<5x2x8x128xf32>
    %84 = vector.extract_strided_slice %83 {offsets = [0, 0, 0, 0], sizes = [5, 1, 8, 128], strides = [1, 1, 1, 1]} : vector<5x2x8x128xf32> to vector<5x1x8x128xf32>
    %85 = vector.shape_cast %84 : vector<5x1x8x128xf32> to vector<5x8x128xf32>
    %86 = vector.extract_strided_slice %83 {offsets = [0, 1, 0, 0], sizes = [5, 1, 8, 128], strides = [1, 1, 1, 1]} : vector<5x2x8x128xf32> to vector<5x1x8x128xf32>
    %87 = vector.shape_cast %86 : vector<5x1x8x128xf32> to vector<5x8x128xf32>
    %88 = arith.maximumf %85, %87 : vector<5x8x128xf32>
    %89 = tpu.iota {dimensions = array<i32: 1>} : vector<1x128xi32>
    %cst_54 = arith.constant 0.000000e+00 : f32
    %90 = vector.broadcast %cst_54 : f32 to vector<1x128xf32>
    %cst_55 = arith.constant 0.000000e+00 : f32
    %91 = vector.broadcast %cst_55 : f32 to vector<1x128xf32>
    %92 = vector.extract_strided_slice %88 {offsets = [0, 0, 0], sizes = [1, 1, 128], strides = [1, 1, 1]} : vector<5x8x128xf32> to vector<1x1x128xf32>
    %93 = vector.shape_cast %92 : vector<1x1x128xf32> to vector<128xf32>
    %94 = vector.shape_cast %93 : vector<128xf32> to vector<1x128xf32>
    %c0_i32_56 = arith.constant 0 : i32
    %95 = vector.broadcast %c0_i32_56 : i32 to vector<1x128xi32>
    %96 = arith.cmpi sge, %89, %95 : vector<1x128xi32>
    %c16_i32 = arith.constant 16 : i32
    %97 = vector.broadcast %c16_i32 : i32 to vector<1x128xi32>
    %98 = arith.cmpi slt, %89, %97 : vector<1x128xi32>
    %99 = arith.andi %96, %98 : vector<1x128xi1>
    %100 = arith.select %99, %94, %91 : vector<1x128xi1>, vector<1x128xf32>
    %101 = vector.extract_strided_slice %88 {offsets = [0, 1, 0], sizes = [1, 1, 128], strides = [1, 1, 1]} : vector<5x8x128xf32> to vector<1x1x128xf32>
    %102 = vector.shape_cast %101 : vector<1x1x128xf32> to vector<128xf32>
    %103 = vector.shape_cast %102 : vector<128xf32> to vector<1x128xf32>
    %c16_i32_57 = arith.constant 16 : i32
    %104 = vector.broadcast %c16_i32_57 : i32 to vector<1x128xi32>
    %105 = arith.cmpi sge, %89, %104 : vector<1x128xi32>
    %c32_i32 = arith.constant 32 : i32
    %106 = vector.broadcast %c32_i32 : i32 to vector<1x128xi32>
    %107 = arith.cmpi slt, %89, %106 : vector<1x128xi32>
    %108 = arith.andi %105, %107 : vector<1x128xi1>
    %109 = arith.select %108, %103, %100 : vector<1x128xi1>, vector<1x128xf32>
    %110 = vector.extract_strided_slice %88 {offsets = [0, 2, 0], sizes = [1, 1, 128], strides = [1, 1, 1]} : vector<5x8x128xf32> to vector<1x1x128xf32>
    %111 = vector.shape_cast %110 : vector<1x1x128xf32> to vector<128xf32>
    %112 = vector.shape_cast %111 : vector<128xf32> to vector<1x128xf32>
    %c32_i32_58 = arith.constant 32 : i32
    %113 = vector.broadcast %c32_i32_58 : i32 to vector<1x128xi32>
    %114 = arith.cmpi sge, %89, %113 : vector<1x128xi32>
    %c48_i32 = arith.constant 48 : i32
    %115 = vector.broadcast %c48_i32 : i32 to vector<1x128xi32>
    %116 = arith.cmpi slt, %89, %115 : vector<1x128xi32>
    %117 = arith.andi %114, %116 : vector<1x128xi1>
    %118 = arith.select %117, %112, %109 : vector<1x128xi1>, vector<1x128xf32>
    %119 = vector.extract_strided_slice %88 {offsets = [0, 3, 0], sizes = [1, 1, 128], strides = [1, 1, 1]} : vector<5x8x128xf32> to vector<1x1x128xf32>
    %120 = vector.shape_cast %119 : vector<1x1x128xf32> to vector<128xf32>
    %121 = vector.shape_cast %120 : vector<128xf32> to vector<1x128xf32>
    %c48_i32_59 = arith.constant 48 : i32
    %122 = vector.broadcast %c48_i32_59 : i32 to vector<1x128xi32>
    %123 = arith.cmpi sge, %89, %122 : vector<1x128xi32>
    %c64_i32 = arith.constant 64 : i32
    %124 = vector.broadcast %c64_i32 : i32 to vector<1x128xi32>
    %125 = arith.cmpi slt, %89, %124 : vector<1x128xi32>
    %126 = arith.andi %123, %125 : vector<1x128xi1>
    %127 = arith.select %126, %121, %118 : vector<1x128xi1>, vector<1x128xf32>
    %128 = vector.extract_strided_slice %88 {offsets = [0, 4, 0], sizes = [1, 1, 128], strides = [1, 1, 1]} : vector<5x8x128xf32> to vector<1x1x128xf32>
    %129 = vector.shape_cast %128 : vector<1x1x128xf32> to vector<128xf32>
    %130 = vector.shape_cast %129 : vector<128xf32> to vector<1x128xf32>
    %c64_i32_60 = arith.constant 64 : i32
    %131 = vector.broadcast %c64_i32_60 : i32 to vector<1x128xi32>
    %132 = arith.cmpi sge, %89, %131 : vector<1x128xi32>
    %c80_i32 = arith.constant 80 : i32
    %133 = vector.broadcast %c80_i32 : i32 to vector<1x128xi32>
    %134 = arith.cmpi slt, %89, %133 : vector<1x128xi32>
    %135 = arith.andi %132, %134 : vector<1x128xi1>
    %136 = arith.select %135, %130, %127 : vector<1x128xi1>, vector<1x128xf32>
    %137 = vector.extract_strided_slice %88 {offsets = [1, 0, 0], sizes = [1, 1, 128], strides = [1, 1, 1]} : vector<5x8x128xf32> to vector<1x1x128xf32>
    %138 = vector.shape_cast %137 : vector<1x1x128xf32> to vector<128xf32>
    %139 = vector.shape_cast %138 : vector<128xf32> to vector<1x128xf32>
    %c80_i32_61 = arith.constant 80 : i32
    %140 = vector.broadcast %c80_i32_61 : i32 to vector<1x128xi32>
    %141 = arith.cmpi sge, %89, %140 : vector<1x128xi32>
    %c96_i32 = arith.constant 96 : i32
    %142 = vector.broadcast %c96_i32 : i32 to vector<1x128xi32>
    %143 = arith.cmpi slt, %89, %142 : vector<1x128xi32>
    %144 = arith.andi %141, %143 : vector<1x128xi1>
    %145 = arith.select %144, %139, %136 : vector<1x128xi1>, vector<1x128xf32>
    %146 = vector.extract_strided_slice %88 {offsets = [1, 1, 0], sizes = [1, 1, 128], strides = [1, 1, 1]} : vector<5x8x128xf32> to vector<1x1x128xf32>
    %147 = vector.shape_cast %146 : vector<1x1x128xf32> to vector<128xf32>
    %148 = vector.shape_cast %147 : vector<128xf32> to vector<1x128xf32>
    %c96_i32_62 = arith.constant 96 : i32
    %149 = vector.broadcast %c96_i32_62 : i32 to vector<1x128xi32>
    %150 = arith.cmpi sge, %89, %149 : vector<1x128xi32>
    %c112_i32 = arith.constant 112 : i32
    %151 = vector.broadcast %c112_i32 : i32 to vector<1x128xi32>
    %152 = arith.cmpi slt, %89, %151 : vector<1x128xi32>
    %153 = arith.andi %150, %152 : vector<1x128xi1>
    %154 = arith.select %153, %148, %145 : vector<1x128xi1>, vector<1x128xf32>
    %155 = vector.extract_strided_slice %88 {offsets = [1, 2, 0], sizes = [1, 1, 128], strides = [1, 1, 1]} : vector<5x8x128xf32> to vector<1x1x128xf32>
    %156 = vector.shape_cast %155 : vector<1x1x128xf32> to vector<128xf32>
    %157 = vector.shape_cast %156 : vector<128xf32> to vector<1x128xf32>
    %c112_i32_63 = arith.constant 112 : i32
    %158 = vector.broadcast %c112_i32_63 : i32 to vector<1x128xi32>
    %159 = arith.cmpi sge, %89, %158 : vector<1x128xi32>
    %c128_i32 = arith.constant 128 : i32
    %160 = vector.broadcast %c128_i32 : i32 to vector<1x128xi32>
    %161 = arith.cmpi slt, %89, %160 : vector<1x128xi32>
    %162 = arith.andi %159, %161 : vector<1x128xi1>
    %163 = arith.select %162, %157, %154 : vector<1x128xi1>, vector<1x128xf32>
    %164 = arith.truncf %163 : vector<1x128xf32> to vector<1x128xbf16>
    %c0_64 = arith.constant 0 : index
    %c0_65 = arith.constant 0 : index
    %c0_66 = arith.constant 0 : index
    %165 = vector.load %arg6[%c0_64, %c0_65, %c0_66] : memref<4x128x128xbf16, #tpu.memory_space<vmem>>, vector<1x128x128xbf16>
    %166 = vector.shape_cast %165 : vector<1x128x128xbf16> to vector<128x128xbf16>
    %cst_67 = arith.constant dense<0.000000e+00> : vector<1x128xf32>
    %167 = tpu.matmul %164, %166, %cst_67 {dimension_numbers = #tpu.dot_dimension_numbers<[1], [0], [0], [1], [0, 0, 1, 1], [], []>} : vector<1x128xbf16>, vector<128x128xbf16>, vector<1x128xf32> -> vector<1x128xf32>
    %168 = arith.addf %90, %167 : vector<1x128xf32>
    %cst_68 = arith.constant 0.000000e+00 : f32
    %169 = vector.broadcast %cst_68 : f32 to vector<1x128xf32>
    %170 = vector.extract_strided_slice %88 {offsets = [1, 3, 0], sizes = [1, 1, 128], strides = [1, 1, 1]} : vector<5x8x128xf32> to vector<1x1x128xf32>
    %171 = vector.shape_cast %170 : vector<1x1x128xf32> to vector<128xf32>
    %172 = vector.shape_cast %171 : vector<128xf32> to vector<1x128xf32>
    %c0_i32_69 = arith.constant 0 : i32
    %173 = vector.broadcast %c0_i32_69 : i32 to vector<1x128xi32>
    %174 = arith.cmpi sge, %89, %173 : vector<1x128xi32>
    %c16_i32_70 = arith.constant 16 : i32
    %175 = vector.broadcast %c16_i32_70 : i32 to vector<1x128xi32>
    %176 = arith.cmpi slt, %89, %175 : vector<1x128xi32>
    %177 = arith.andi %174, %176 : vector<1x128xi1>
    %178 = arith.select %177, %172, %169 : vector<1x128xi1>, vector<1x128xf32>
    %179 = vector.extract_strided_slice %88 {offsets = [1, 4, 0], sizes = [1, 1, 128], strides = [1, 1, 1]} : vector<5x8x128xf32> to vector<1x1x128xf32>
    %180 = vector.shape_cast %179 : vector<1x1x128xf32> to vector<128xf32>
    %181 = vector.shape_cast %180 : vector<128xf32> to vector<1x128xf32>
    %c16_i32_71 = arith.constant 16 : i32
    %182 = vector.broadcast %c16_i32_71 : i32 to vector<1x128xi32>
    %183 = arith.cmpi sge, %89, %182 : vector<1x128xi32>
    %c32_i32_72 = arith.constant 32 : i32
    %184 = vector.broadcast %c32_i32_72 : i32 to vector<1x128xi32>
    %185 = arith.cmpi slt, %89, %184 : vector<1x128xi32>
    %186 = arith.andi %183, %185 : vector<1x128xi1>
    %187 = arith.select %186, %181, %178 : vector<1x128xi1>, vector<1x128xf32>
    %188 = vector.extract_strided_slice %88 {offsets = [2, 0, 0], sizes = [1, 1, 128], strides = [1, 1, 1]} : vector<5x8x128xf32> to vector<1x1x128xf32>
    %189 = vector.shape_cast %188 : vector<1x1x128xf32> to vector<128xf32>
    %190 = vector.shape_cast %189 : vector<128xf32> to vector<1x128xf32>
    %c32_i32_73 = arith.constant 32 : i32
    %191 = vector.broadcast %c32_i32_73 : i32 to vector<1x128xi32>
    %192 = arith.cmpi sge, %89, %191 : vector<1x128xi32>
    %c48_i32_74 = arith.constant 48 : i32
    %193 = vector.broadcast %c48_i32_74 : i32 to vector<1x128xi32>
    %194 = arith.cmpi slt, %89, %193 : vector<1x128xi32>
    %195 = arith.andi %192, %194 : vector<1x128xi1>
    %196 = arith.select %195, %190, %187 : vector<1x128xi1>, vector<1x128xf32>
    %197 = vector.extract_strided_slice %88 {offsets = [2, 1, 0], sizes = [1, 1, 128], strides = [1, 1, 1]} : vector<5x8x128xf32> to vector<1x1x128xf32>
    %198 = vector.shape_cast %197 : vector<1x1x128xf32> to vector<128xf32>
    %199 = vector.shape_cast %198 : vector<128xf32> to vector<1x128xf32>
    %c48_i32_75 = arith.constant 48 : i32
    %200 = vector.broadcast %c48_i32_75 : i32 to vector<1x128xi32>
    %201 = arith.cmpi sge, %89, %200 : vector<1x128xi32>
    %c64_i32_76 = arith.constant 64 : i32
    %202 = vector.broadcast %c64_i32_76 : i32 to vector<1x128xi32>
    %203 = arith.cmpi slt, %89, %202 : vector<1x128xi32>
    %204 = arith.andi %201, %203 : vector<1x128xi1>
    %205 = arith.select %204, %199, %196 : vector<1x128xi1>, vector<1x128xf32>
    %206 = vector.extract_strided_slice %88 {offsets = [2, 2, 0], sizes = [1, 1, 128], strides = [1, 1, 1]} : vector<5x8x128xf32> to vector<1x1x128xf32>
    %207 = vector.shape_cast %206 : vector<1x1x128xf32> to vector<128xf32>
    %208 = vector.shape_cast %207 : vector<128xf32> to vector<1x128xf32>
    %c64_i32_77 = arith.constant 64 : i32
    %209 = vector.broadcast %c64_i32_77 : i32 to vector<1x128xi32>
    %210 = arith.cmpi sge, %89, %209 : vector<1x128xi32>
    %c80_i32_78 = arith.constant 80 : i32
    %211 = vector.broadcast %c80_i32_78 : i32 to vector<1x128xi32>
    %212 = arith.cmpi slt, %89, %211 : vector<1x128xi32>
    %213 = arith.andi %210, %212 : vector<1x128xi1>
    %214 = arith.select %213, %208, %205 : vector<1x128xi1>, vector<1x128xf32>
    %215 = vector.extract_strided_slice %88 {offsets = [2, 3, 0], sizes = [1, 1, 128], strides = [1, 1, 1]} : vector<5x8x128xf32> to vector<1x1x128xf32>
    %216 = vector.shape_cast %215 : vector<1x1x128xf32> to vector<128xf32>
    %217 = vector.shape_cast %216 : vector<128xf32> to vector<1x128xf32>
    %c80_i32_79 = arith.constant 80 : i32
    %218 = vector.broadcast %c80_i32_79 : i32 to vector<1x128xi32>
    %219 = arith.cmpi sge, %89, %218 : vector<1x128xi32>
    %c96_i32_80 = arith.constant 96 : i32
    %220 = vector.broadcast %c96_i32_80 : i32 to vector<1x128xi32>
    %221 = arith.cmpi slt, %89, %220 : vector<1x128xi32>
    %222 = arith.andi %219, %221 : vector<1x128xi1>
    %223 = arith.select %222, %217, %214 : vector<1x128xi1>, vector<1x128xf32>
    %224 = vector.extract_strided_slice %88 {offsets = [2, 4, 0], sizes = [1, 1, 128], strides = [1, 1, 1]} : vector<5x8x128xf32> to vector<1x1x128xf32>
    %225 = vector.shape_cast %224 : vector<1x1x128xf32> to vector<128xf32>
    %226 = vector.shape_cast %225 : vector<128xf32> to vector<1x128xf32>
    %c96_i32_81 = arith.constant 96 : i32
    %227 = vector.broadcast %c96_i32_81 : i32 to vector<1x128xi32>
    %228 = arith.cmpi sge, %89, %227 : vector<1x128xi32>
    %c112_i32_82 = arith.constant 112 : i32
    %229 = vector.broadcast %c112_i32_82 : i32 to vector<1x128xi32>
    %230 = arith.cmpi slt, %89, %229 : vector<1x128xi32>
    %231 = arith.andi %228, %230 : vector<1x128xi1>
    %232 = arith.select %231, %226, %223 : vector<1x128xi1>, vector<1x128xf32>
    %233 = vector.extract_strided_slice %88 {offsets = [3, 0, 0], sizes = [1, 1, 128], strides = [1, 1, 1]} : vector<5x8x128xf32> to vector<1x1x128xf32>
    %234 = vector.shape_cast %233 : vector<1x1x128xf32> to vector<128xf32>
    %235 = vector.shape_cast %234 : vector<128xf32> to vector<1x128xf32>
    %c112_i32_83 = arith.constant 112 : i32
    %236 = vector.broadcast %c112_i32_83 : i32 to vector<1x128xi32>
    %237 = arith.cmpi sge, %89, %236 : vector<1x128xi32>
    %c128_i32_84 = arith.constant 128 : i32
    %238 = vector.broadcast %c128_i32_84 : i32 to vector<1x128xi32>
    %239 = arith.cmpi slt, %89, %238 : vector<1x128xi32>
    %240 = arith.andi %237, %239 : vector<1x128xi1>
    %241 = arith.select %240, %235, %232 : vector<1x128xi1>, vector<1x128xf32>
    %242 = arith.truncf %241 : vector<1x128xf32> to vector<1x128xbf16>
    %c1_85 = arith.constant 1 : index
    %c0_86 = arith.constant 0 : index
    %c0_87 = arith.constant 0 : index
    %243 = vector.load %arg6[%c1_85, %c0_86, %c0_87] : memref<4x128x128xbf16, #tpu.memory_space<vmem>>, vector<1x128x128xbf16>
    %244 = vector.shape_cast %243 : vector<1x128x128xbf16> to vector<128x128xbf16>
    %cst_88 = arith.constant dense<0.000000e+00> : vector<1x128xf32>
    %245 = tpu.matmul %242, %244, %cst_88 {dimension_numbers = #tpu.dot_dimension_numbers<[1], [0], [0], [1], [0, 0, 1, 1], [], []>} : vector<1x128xbf16>, vector<128x128xbf16>, vector<1x128xf32> -> vector<1x128xf32>
    %246 = arith.addf %168, %245 : vector<1x128xf32>
    %cst_89 = arith.constant 0.000000e+00 : f32
    %247 = vector.broadcast %cst_89 : f32 to vector<1x128xf32>
    %248 = vector.extract_strided_slice %88 {offsets = [3, 1, 0], sizes = [1, 1, 128], strides = [1, 1, 1]} : vector<5x8x128xf32> to vector<1x1x128xf32>
    %249 = vector.shape_cast %248 : vector<1x1x128xf32> to vector<128xf32>
    %250 = vector.shape_cast %249 : vector<128xf32> to vector<1x128xf32>
    %c0_i32_90 = arith.constant 0 : i32
    %251 = vector.broadcast %c0_i32_90 : i32 to vector<1x128xi32>
    %252 = arith.cmpi sge, %89, %251 : vector<1x128xi32>
    %c16_i32_91 = arith.constant 16 : i32
    %253 = vector.broadcast %c16_i32_91 : i32 to vector<1x128xi32>
    %254 = arith.cmpi slt, %89, %253 : vector<1x128xi32>
    %255 = arith.andi %252, %254 : vector<1x128xi1>
    %256 = arith.select %255, %250, %247 : vector<1x128xi1>, vector<1x128xf32>
    %257 = vector.extract_strided_slice %88 {offsets = [3, 2, 0], sizes = [1, 1, 128], strides = [1, 1, 1]} : vector<5x8x128xf32> to vector<1x1x128xf32>
    %258 = vector.shape_cast %257 : vector<1x1x128xf32> to vector<128xf32>
    %259 = vector.shape_cast %258 : vector<128xf32> to vector<1x128xf32>
    %c16_i32_92 = arith.constant 16 : i32
    %260 = vector.broadcast %c16_i32_92 : i32 to vector<1x128xi32>
    %261 = arith.cmpi sge, %89, %260 : vector<1x128xi32>
    %c32_i32_93 = arith.constant 32 : i32
    %262 = vector.broadcast %c32_i32_93 : i32 to vector<1x128xi32>
    %263 = arith.cmpi slt, %89, %262 : vector<1x128xi32>
    %264 = arith.andi %261, %263 : vector<1x128xi1>
    %265 = arith.select %264, %259, %256 : vector<1x128xi1>, vector<1x128xf32>
    %266 = vector.extract_strided_slice %88 {offsets = [3, 3, 0], sizes = [1, 1, 128], strides = [1, 1, 1]} : vector<5x8x128xf32> to vector<1x1x128xf32>
    %267 = vector.shape_cast %266 : vector<1x1x128xf32> to vector<128xf32>
    %268 = vector.shape_cast %267 : vector<128xf32> to vector<1x128xf32>
    %c32_i32_94 = arith.constant 32 : i32
    %269 = vector.broadcast %c32_i32_94 : i32 to vector<1x128xi32>
    %270 = arith.cmpi sge, %89, %269 : vector<1x128xi32>
    %c48_i32_95 = arith.constant 48 : i32
    %271 = vector.broadcast %c48_i32_95 : i32 to vector<1x128xi32>
    %272 = arith.cmpi slt, %89, %271 : vector<1x128xi32>
    %273 = arith.andi %270, %272 : vector<1x128xi1>
    %274 = arith.select %273, %268, %265 : vector<1x128xi1>, vector<1x128xf32>
    %275 = vector.extract_strided_slice %88 {offsets = [3, 4, 0], sizes = [1, 1, 128], strides = [1, 1, 1]} : vector<5x8x128xf32> to vector<1x1x128xf32>
    %276 = vector.shape_cast %275 : vector<1x1x128xf32> to vector<128xf32>
    %277 = vector.shape_cast %276 : vector<128xf32> to vector<1x128xf32>
    %c48_i32_96 = arith.constant 48 : i32
    %278 = vector.broadcast %c48_i32_96 : i32 to vector<1x128xi32>
    %279 = arith.cmpi sge, %89, %278 : vector<1x128xi32>
    %c64_i32_97 = arith.constant 64 : i32
    %280 = vector.broadcast %c64_i32_97 : i32 to vector<1x128xi32>
    %281 = arith.cmpi slt, %89, %280 : vector<1x128xi32>
    %282 = arith.andi %279, %281 : vector<1x128xi1>
    %283 = arith.select %282, %277, %274 : vector<1x128xi1>, vector<1x128xf32>
    %284 = vector.extract_strided_slice %88 {offsets = [4, 0, 0], sizes = [1, 1, 128], strides = [1, 1, 1]} : vector<5x8x128xf32> to vector<1x1x128xf32>
    %285 = vector.shape_cast %284 : vector<1x1x128xf32> to vector<128xf32>
    %286 = vector.shape_cast %285 : vector<128xf32> to vector<1x128xf32>
    %c64_i32_98 = arith.constant 64 : i32
    %287 = vector.broadcast %c64_i32_98 : i32 to vector<1x128xi32>
    %288 = arith.cmpi sge, %89, %287 : vector<1x128xi32>
    %c80_i32_99 = arith.constant 80 : i32
    %289 = vector.broadcast %c80_i32_99 : i32 to vector<1x128xi32>
    %290 = arith.cmpi slt, %89, %289 : vector<1x128xi32>
    %291 = arith.andi %288, %290 : vector<1x128xi1>
    %292 = arith.select %291, %286, %283 : vector<1x128xi1>, vector<1x128xf32>
    %293 = vector.extract_strided_slice %88 {offsets = [4, 1, 0], sizes = [1, 1, 128], strides = [1, 1, 1]} : vector<5x8x128xf32> to vector<1x1x128xf32>
    %294 = vector.shape_cast %293 : vector<1x1x128xf32> to vector<128xf32>
    %295 = vector.shape_cast %294 : vector<128xf32> to vector<1x128xf32>
    %c80_i32_100 = arith.constant 80 : i32
    %296 = vector.broadcast %c80_i32_100 : i32 to vector<1x128xi32>
    %297 = arith.cmpi sge, %89, %296 : vector<1x128xi32>
    %c96_i32_101 = arith.constant 96 : i32
    %298 = vector.broadcast %c96_i32_101 : i32 to vector<1x128xi32>
    %299 = arith.cmpi slt, %89, %298 : vector<1x128xi32>
    %300 = arith.andi %297, %299 : vector<1x128xi1>
    %301 = arith.select %300, %295, %292 : vector<1x128xi1>, vector<1x128xf32>
    %302 = vector.extract_strided_slice %88 {offsets = [4, 2, 0], sizes = [1, 1, 128], strides = [1, 1, 1]} : vector<5x8x128xf32> to vector<1x1x128xf32>
    %303 = vector.shape_cast %302 : vector<1x1x128xf32> to vector<128xf32>
    %304 = vector.shape_cast %303 : vector<128xf32> to vector<1x128xf32>
    %c96_i32_102 = arith.constant 96 : i32
    %305 = vector.broadcast %c96_i32_102 : i32 to vector<1x128xi32>
    %306 = arith.cmpi sge, %89, %305 : vector<1x128xi32>
    %c112_i32_103 = arith.constant 112 : i32
    %307 = vector.broadcast %c112_i32_103 : i32 to vector<1x128xi32>
    %308 = arith.cmpi slt, %89, %307 : vector<1x128xi32>
    %309 = arith.andi %306, %308 : vector<1x128xi1>
    %310 = arith.select %309, %304, %301 : vector<1x128xi1>, vector<1x128xf32>
    %311 = vector.extract_strided_slice %88 {offsets = [4, 3, 0], sizes = [1, 1, 128], strides = [1, 1, 1]} : vector<5x8x128xf32> to vector<1x1x128xf32>
    %312 = vector.shape_cast %311 : vector<1x1x128xf32> to vector<128xf32>
    %313 = vector.shape_cast %312 : vector<128xf32> to vector<1x128xf32>
    %c112_i32_104 = arith.constant 112 : i32
    %314 = vector.broadcast %c112_i32_104 : i32 to vector<1x128xi32>
    %315 = arith.cmpi sge, %89, %314 : vector<1x128xi32>
    %c128_i32_105 = arith.constant 128 : i32
    %316 = vector.broadcast %c128_i32_105 : i32 to vector<1x128xi32>
    %317 = arith.cmpi slt, %89, %316 : vector<1x128xi32>
    %318 = arith.andi %315, %317 : vector<1x128xi1>
    %319 = arith.select %318, %313, %310 : vector<1x128xi1>, vector<1x128xf32>
    %320 = arith.truncf %319 : vector<1x128xf32> to vector<1x128xbf16>
    %c2_106 = arith.constant 2 : index
    %c0_107 = arith.constant 0 : index
    %c0_108 = arith.constant 0 : index
    %321 = vector.load %arg6[%c2_106, %c0_107, %c0_108] : memref<4x128x128xbf16, #tpu.memory_space<vmem>>, vector<1x128x128xbf16>
    %322 = vector.shape_cast %321 : vector<1x128x128xbf16> to vector<128x128xbf16>
    %cst_109 = arith.constant dense<0.000000e+00> : vector<1x128xf32>
    %323 = tpu.matmul %320, %322, %cst_109 {dimension_numbers = #tpu.dot_dimension_numbers<[1], [0], [0], [1], [0, 0, 1, 1], [], []>} : vector<1x128xbf16>, vector<128x128xbf16>, vector<1x128xf32> -> vector<1x128xf32>
    %324 = arith.addf %246, %323 : vector<1x128xf32>
    %cst_110 = arith.constant 0.000000e+00 : f32
    %325 = vector.broadcast %cst_110 : f32 to vector<1x128xf32>
    %326 = vector.extract_strided_slice %88 {offsets = [4, 4, 0], sizes = [1, 1, 128], strides = [1, 1, 1]} : vector<5x8x128xf32> to vector<1x1x128xf32>
    %327 = vector.shape_cast %326 : vector<1x1x128xf32> to vector<128xf32>
    %328 = vector.shape_cast %327 : vector<128xf32> to vector<1x128xf32>
    %c0_i32_111 = arith.constant 0 : i32
    %329 = vector.broadcast %c0_i32_111 : i32 to vector<1x128xi32>
    %330 = arith.cmpi sge, %89, %329 : vector<1x128xi32>
    %c16_i32_112 = arith.constant 16 : i32
    %331 = vector.broadcast %c16_i32_112 : i32 to vector<1x128xi32>
    %332 = arith.cmpi slt, %89, %331 : vector<1x128xi32>
    %333 = arith.andi %330, %332 : vector<1x128xi1>
    %334 = arith.select %333, %328, %325 : vector<1x128xi1>, vector<1x128xf32>
    %335 = arith.truncf %334 : vector<1x128xf32> to vector<1x128xbf16>
    %c3_113 = arith.constant 3 : index
    %c0_114 = arith.constant 0 : index
    %c0_115 = arith.constant 0 : index
    %336 = vector.load %arg6[%c3_113, %c0_114, %c0_115] : memref<4x128x128xbf16, #tpu.memory_space<vmem>>, vector<1x128x128xbf16>
    %337 = vector.shape_cast %336 : vector<1x128x128xbf16> to vector<128x128xbf16>
    %cst_116 = arith.constant dense<0.000000e+00> : vector<1x128xf32>
    %338 = tpu.matmul %335, %337, %cst_116 {dimension_numbers = #tpu.dot_dimension_numbers<[1], [0], [0], [1], [0, 0, 1, 1], [], []>} : vector<1x128xbf16>, vector<128x128xbf16>, vector<1x128xf32> -> vector<1x128xf32>
    %339 = arith.addf %324, %338 : vector<1x128xf32>
    %c0_117 = arith.constant 0 : index
    %c0_118 = arith.constant 0 : index
    %340 = vector.load %arg7[%c0_117, %c0_118] : memref<1x128xf32, #tpu.memory_space<vmem>>, vector<1x128xf32>
    %341 = arith.addf %339, %340 : vector<1x128xf32>
    %cst_119 = arith.constant 0.000000e+00 : f32
    %342 = vector.broadcast %cst_119 : f32 to vector<1x128xf32>
    %343 = arith.maximumf %341, %342 : vector<1x128xf32>
    %344 = arith.truncf %343 : vector<1x128xf32> to vector<1x128xbf16>
    %c0_120 = arith.constant 0 : index
    %c0_121 = arith.constant 0 : index
    %345 = vector.load %arg8[%c0_120, %c0_121] : memref<128x128xbf16, #tpu.memory_space<vmem>>, vector<128x128xbf16>
    %cst_122 = arith.constant dense<0.000000e+00> : vector<1x128xf32>
    %346 = tpu.matmul %344, %345, %cst_122 {dimension_numbers = #tpu.dot_dimension_numbers<[1], [0], [0], [1], [0, 0, 1, 1], [], []>} : vector<1x128xbf16>, vector<128x128xbf16>, vector<1x128xf32> -> vector<1x128xf32>
    %c0_123 = arith.constant 0 : index
    %c0_124 = arith.constant 0 : index
    %347 = vector.load %arg9[%c0_123, %c0_124] : memref<1x128xf32, #tpu.memory_space<vmem>>, vector<1x128xf32>
    %348 = arith.addf %346, %347 : vector<1x128xf32>
    %cst_125 = arith.constant 0.000000e+00 : f32
    %349 = vector.broadcast %cst_125 : f32 to vector<1x128xf32>
    %350 = arith.maximumf %348, %349 : vector<1x128xf32>
    %351 = arith.truncf %350 : vector<1x128xf32> to vector<1x128xbf16>
    %c0_126 = arith.constant 0 : index
    %c0_127 = arith.constant 0 : index
    %352 = vector.load %arg10[%c0_126, %c0_127] : memref<128x128xbf16, #tpu.memory_space<vmem>>, vector<128x128xbf16>
    %cst_128 = arith.constant dense<0.000000e+00> : vector<1x128xf32>
    %353 = tpu.matmul %351, %352, %cst_128 {dimension_numbers = #tpu.dot_dimension_numbers<[1], [0], [0], [1], [0, 0, 1, 1], [], []>} : vector<1x128xbf16>, vector<128x128xbf16>, vector<1x128xf32> -> vector<1x128xf32>
    %c0_129 = arith.constant 0 : index
    %c0_130 = arith.constant 0 : index
    %354 = vector.load %arg11[%c0_129, %c0_130] : memref<1x128xf32, #tpu.memory_space<vmem>>, vector<1x128xf32>
    %355 = arith.addf %353, %354 : vector<1x128xf32>
    %cst_131 = arith.constant 5.000000e-01 : f32
    %356 = vector.broadcast %cst_131 : f32 to vector<1x128xf32>
    %357 = arith.mulf %356, %355 : vector<1x128xf32>
    %358 = math.tanh %357 : vector<1x128xf32>
    %cst_132 = arith.constant 1.000000e+00 : f32
    %359 = vector.broadcast %cst_132 : f32 to vector<1x128xf32>
    %360 = arith.addf %358, %359 : vector<1x128xf32>
    %cst_133 = arith.constant 5.000000e-01 : f32
    %361 = vector.broadcast %cst_133 : f32 to vector<1x128xf32>
    %362 = arith.mulf %361, %360 : vector<1x128xf32>
    %363 = vector.shape_cast %362 : vector<1x128xf32> to vector<1x1x128xf32>
    %c0_134 = arith.constant 0 : index
    %c0_135 = arith.constant 0 : index
    %c0_136 = arith.constant 0 : index
    %364 = vector.load %arg12[%c0_134, %c0_135, %c0_136] : memref<1x1x128xf32, #tpu.memory_space<vmem>>, vector<1x1x128xf32>
    tpu.vector_store %arg12[%c0_134, %c0_135, %c0_136], %363 {strides = array<i32>} : memref<1x1x128xf32, #tpu.memory_space<vmem>>, vector<1x1x128xf32>,
    return
  }
  func.func @transform_0(%arg0: i32) -> (i32, i32, i32) {
    %c0_i32 = arith.constant 0 : i32
    %c0_i32_0 = arith.constant 0 : i32
    %c0_i32_1 = arith.constant 0 : i32
    return %arg0, %c0_i32, %c0_i32_0 : i32, i32, i32
  }
  func.func @transform_1(%arg0: i32) -> (i32, i32) {
    %c0_i32 = arith.constant 0 : i32
    %c0_i32_0 = arith.constant 0 : i32
    %c0_i32_1 = arith.constant 0 : i32
    return %c0_i32, %c0_i32_0 : i32, i32
  }
  func.func @transform_2(%arg0: i32) -> (i32, i32) {
    %c0_i32 = arith.constant 0 : i32
    %c0_i32_0 = arith.constant 0 : i32
    %c0_i32_1 = arith.constant 0 : i32
    return %c0_i32, %c0_i32_0 : i32, i32
  }
  func.func @transform_3(%arg0: i32) -> (i32, i32, i32) {
    %c0_i32 = arith.constant 0 : i32
    %c0_i32_0 = arith.constant 0 : i32
    %c0_i32_1 = arith.constant 0 : i32
    %c0_i32_2 = arith.constant 0 : i32
    return %c0_i32, %c0_i32_0, %c0_i32_1 : i32, i32, i32
  }
  func.func @transform_4(%arg0: i32) -> (i32, i32) {
    %c0_i32 = arith.constant 0 : i32
    %c0_i32_0 = arith.constant 0 : i32
    %c0_i32_1 = arith.constant 0 : i32
    return %c0_i32, %c0_i32_0 : i32, i32
  }
  func.func @transform_5(%arg0: i32) -> (i32, i32, i32) {
    %c0_i32 = arith.constant 0 : i32
    %c0_i32_0 = arith.constant 0 : i32
    %c0_i32_1 = arith.constant 0 : i32
    %c0_i32_2 = arith.constant 0 : i32
    return %c0_i32, %c0_i32_0, %c0_i32_1 : i32, i32, i32
  }
  func.func @transform_6(%arg0: i32) -> (i32, i32) {
    %c0_i32 = arith.constant 0 : i32
    %c0_i32_0 = arith.constant 0 : i32
    %c0_i32_1 = arith.constant 0 : i32
    return %c0_i32, %c0_i32_0 : i32, i32
  }
  func.func @transform_7(%arg0: i32) -> (i32, i32) {
    %c0_i32 = arith.constant 0 : i32
    %c0_i32_0 = arith.constant 0 : i32
    %c0_i32_1 = arith.constant 0 : i32
    return %c0_i32, %c0_i32_0 : i32, i32
  }
  func.func @transform_8(%arg0: i32) -> (i32, i32) {
    %c0_i32 = arith.constant 0 : i32
    %c0_i32_0 = arith.constant 0 : i32
    %c0_i32_1 = arith.constant 0 : i32
    return %c0_i32, %c0_i32_0 : i32, i32
  }
  func.func @transform_9(%arg0: i32) -> (i32, i32) {
    %c0_i32 = arith.constant 0 : i32
    %c0_i32_0 = arith.constant 0 : i32
    %c0_i32_1 = arith.constant 0 : i32
    return %c0_i32, %c0_i32_0 : i32, i32
  }
  func.func @transform_10(%arg0: i32) -> (i32, i32) {
    %c0_i32 = arith.constant 0 : i32
    %c0_i32_0 = arith.constant 0 : i32
    %c0_i32_1 = arith.constant 0 : i32
    return %c0_i32, %c0_i32_0 : i32, i32
  }
  func.func @transform_11(%arg0: i32) -> (i32, i32, i32) {
    %c0_i32 = arith.constant 0 : i32
    %c0_i32_0 = arith.constant 0 : i32
    %c0_i32_1 = arith.constant 0 : i32
    return %arg0, %c0_i32, %c0_i32_0 : i32, i32, i32
  }
}

</mosaic_0001>

<llo_original>
// kernel: discriminator_forward.1
$region0: #{discriminator_forward.1}
  #allocation0 [shape = 'u32[]', space=smem, size = 0x4, offset = 0x4, fixed_abs, tag = 'smem constant byte address 0x4 - core index']
  #allocation1 [shape = 'u32[144,128]{1,0:T(1,128)}', space=vmem, size = 0x12000, scoped, tag = 'internal scratch']
  #allocation2 [shape = 'f32[128,128]{1,0:T(8,128)}', space=vmem, size = 0x10000, scoped, tag = 'scratch operand']
  #allocation3 [shape = 'f32[16,24,128]{2,1,0:T(8,128)}', space=vmem, size = 0x30000, scoped, tag = 'scratch operand']
  #allocation4 [shape = 'f32[160,128]{1,0:T(8,128)}', space=vmem, size = 0x14000, scoped, tag = 'scratch operand']
  %s0 = inlined_call_operand.vmem [shape: bf16[2,896,128], index: 0, kind: input, shape index: {}]
  %s1 = inlined_call_operand.vmem [shape: bf16[128,128], index: 1, kind: input, shape index: {}]
  %s2 = inlined_call_operand.vmem [shape: f32[1,128], index: 2, kind: input, shape index: {}]
  %s3 = inlined_call_operand.vmem [shape: bf16[5,128,128], index: 3, kind: input, shape index: {}]
  %s4 = inlined_call_operand.vmem [shape: f32[1,128], index: 4, kind: input, shape index: {}]
  %s5 = inlined_call_operand.vmem [shape: bf16[4,128,128], index: 5, kind: input, shape index: {}]
  %s6 = inlined_call_operand.vmem [shape: f32[1,128], index: 6, kind: input, shape index: {}]
  %s7 = inlined_call_operand.vmem [shape: bf16[128,128], index: 7, kind: input, shape index: {}]
  %s8 = inlined_call_operand.vmem [shape: f32[1,128], index: 8, kind: input, shape index: {}]
  %s9 = inlined_call_operand.vmem [shape: bf16[128,128], index: 9, kind: input, shape index: {}]
  %s10 = inlined_call_operand.vmem [shape: f32[1,128], index: 10, kind: input, shape index: {}]
  %s11 = inlined_call_operand.vmem [shape: f32[2,1,128], index: 11, kind: output, shape index: {}]
  %s12 = sld [smem:[#allocation0]]
  $region84: #{discriminator_forward.1} parent=0
    _
  %s14 = ssub.s32 1, %s12
  %s15 = scalar_select 0, %s14, %s12
  loop: start=0, step=1, limit=4
  $region2: #{discriminator_forward.1} parent=0 // loop_pre_header
    _
  $region3: #{discriminator_forward.1} parent=0 // loop_header
    %s17 = sphi 0, %s21
    %p18 = scmp.ge.s32.totalorder %s17, 4
    %s27 = sphi 0, %s29
    %s30 = sphi 0, %s27
    %s31 = sphi 0, %s30
    %s47 = sphi 0, %s31
    %s51 = sphi 0, %s51
    %s53 = sphi 0, %s51
    %s54 = sphi 0, %s53
    %s68 = sphi 0, %s54
    %s72 = sphi 0, %s72
    %s74 = sphi 0, %s72
    %s75 = sphi 0, %s74
    %s89 = sphi 0, %s75
    %s93 = sphi 0, %s93
    %s95 = sphi 0, %s93
    %s96 = sphi 0, %s95
    %s110 = sphi 0, %s96
    %s114 = sphi 0, %s114
    %s116 = sphi 0, %s114
    %s117 = sphi 0, %s116
    %s131 = sphi 0, %s117
    %s135 = sphi 0, %s135
    %s137 = sphi 0, %s135
    %s138 = sphi 0, %s137
    %s152 = sphi 0, %s138
    %s156 = sphi 0, %s156
    %s158 = sphi 0, %s156
    %s159 = sphi 0, %s158
    %s173 = sphi 0, %s159
    %s177 = sphi 0, %s177
    %s179 = sphi 0, %s177
    %s180 = sphi 0, %s179
    %s194 = sphi 0, %s180
    %s198 = sphi 0, %s198
    %s200 = sphi 0, %s198
    %s201 = sphi 0, %s200
    %s215 = sphi 0, %s201
    %s219 = sphi 0, %s219
    %s221 = sphi 0, %s219
    %s222 = sphi 0, %s221
    %s236 = sphi 0, %s222
    %s240 = sphi 0, %s240
    %s242 = sphi 0, %s240
    %s243 = sphi 0, %s242
    %s257 = sphi 0, %s243
    %s263 = sphi 0, %s265
    %s266 = sphi 0, %s263
    %s267 = sphi 0, %s266
    %s283 = sphi 0, %s267
  $region4: #{discriminator_forward.1} parent=0 // loop_header_branch
    %20 = sbr.rel (%p18) target = $region8
  $region5: #{discriminator_forward.1} parent=0 // loop_body
    %s22 = ssub.s32 %s17, 1
    %s23 = ssub.s32 %s17, 2
    %s24 = sadd.s32 %s17, 1
    %s25 = ssub.s32 %s17, %s24
    %p26 = scmp.eq.s32.totalorder %s25, 0
    %s28 = sadd.s32 %s27, 1
    %s29 = scalar_select %p26, %s27, %s28
    %p32 = pneg %p26
    %p33 = scmp.eq.s32.totalorder %s17, 1
    %p34 = por %p32, %p33
    %p35 = scmp.ne.s32.totalorder %s27, %s30
    %p36 = scmp.eq.s32.totalorder %s17, 0
    %p37 = por %p35, %p36
    %p38 = scmp.ne.s32.totalorder %s27, %s30
    %p39 = scmp.eq.s32.totalorder %s22, 1
    %p40 = por %p38, %p39
    %p41 = scmp.ne.s32.totalorder %s30, %s31
    %p42 = scmp.eq.s32.totalorder %s22, 0
    %p43 = por %p41, %p42
    %p44 = scmp.ne.s32.totalorder %s30, %s31
    %p45 = scmp.eq.s32.totalorder %s23, 1
    %p46 = por %p44, %p45
    %p48 = scmp.ne.s32.totalorder %s31, %s47
    %p49 = scmp.eq.s32.totalorder %s23, 0
    %p50 = por %p48, %p49
    %s52 = sadd.s32 %s51, 1
    %p55 = scmp.eq.s32.totalorder %s17, 1
    %p56 = scmp.ne.s32.totalorder %s51, %s53
    %p57 = scmp.eq.s32.totalorder %s17, 0
    %p58 = por %p56, %p57
    %p59 = scmp.ne.s32.totalorder %s51, %s53
    %p60 = scmp.eq.s32.totalorder %s22, 1
    %p61 = por %p59, %p60
    %p62 = scmp.ne.s32.totalorder %s53, %s54
    %p63 = scmp.eq.s32.totalorder %s22, 0
    %p64 = por %p62, %p63
    %p65 = scmp.ne.s32.totalorder %s53, %s54
    %p66 = scmp.eq.s32.totalorder %s23, 1
    %p67 = por %p65, %p66
    %p69 = scmp.ne.s32.totalorder %s54, %s68
    %p70 = scmp.eq.s32.totalorder %s23, 0
    %p71 = por %p69, %p70
    %s73 = sadd.s32 %s72, 1
    %p76 = scmp.eq.s32.totalorder %s17, 1
    %p77 = scmp.ne.s32.totalorder %s72, %s74
    %p78 = scmp.eq.s32.totalorder %s17, 0
    %p79 = por %p77, %p78
    %p80 = scmp.ne.s32.totalorder %s72, %s74
    %p81 = scmp.eq.s32.totalorder %s22, 1
    %p82 = por %p80, %p81
    %p83 = scmp.ne.s32.totalorder %s74, %s75
    %p84 = scmp.eq.s32.totalorder %s22, 0
    %p85 = por %p83, %p84
    %p86 = scmp.ne.s32.totalorder %s74, %s75
    %p87 = scmp.eq.s32.totalorder %s23, 1
    %p88 = por %p86, %p87
    %p90 = scmp.ne.s32.totalorder %s75, %s89
    %p91 = scmp.eq.s32.totalorder %s23, 0
    %p92 = por %p90, %p91
    %s94 = sadd.s32 %s93, 1
    %p97 = scmp.eq.s32.totalorder %s17, 1
    %p98 = scmp.ne.s32.totalorder %s93, %s95
    %p99 = scmp.eq.s32.totalorder %s17, 0
    %p100 = por %p98, %p99
    %p101 = scmp.ne.s32.totalorder %s93, %s95
    %p102 = scmp.eq.s32.totalorder %s22, 1
    %p103 = por %p101, %p102
    %p104 = scmp.ne.s32.totalorder %s95, %s96
    %p105 = scmp.eq.s32.totalorder %s22, 0
    %p106 = por %p104, %p105
    %p107 = scmp.ne.s32.totalorder %s95, %s96
    %p108 = scmp.eq.s32.totalorder %s23, 1
    %p109 = por %p107, %p108
    %p111 = scmp.ne.s32.totalorder %s96, %s110
    %p112 = scmp.eq.s32.totalorder %s23, 0
    %p113 = por %p111, %p112
    %s115 = sadd.s32 %s114, 1
    %p118 = scmp.eq.s32.totalorder %s17, 1
    %p119 = scmp.ne.s32.totalorder %s114, %s116
    %p120 = scmp.eq.s32.totalorder %s17, 0
    %p121 = por %p119, %p120
    %p122 = scmp.ne.s32.totalorder %s114, %s116
    %p123 = scmp.eq.s32.totalorder %s22, 1
    %p124 = por %p122, %p123
    %p125 = scmp.ne.s32.totalorder %s116, %s117
    %p126 = scmp.eq.s32.totalorder %s22, 0
    %p127 = por %p125, %p126
    %p128 = scmp.ne.s32.totalorder %s116, %s117
    %p129 = scmp.eq.s32.totalorder %s23, 1
    %p130 = por %p128, %p129
    %p132 = scmp.ne.s32.totalorder %s117, %s131
    %p133 = scmp.eq.s32.totalorder %s23, 0
    %p134 = por %p132, %p133
    %s136 = sadd.s32 %s135, 1
    %p139 = scmp.eq.s32.totalorder %s17, 1
    %p140 = scmp.ne.s32.totalorder %s135, %s137
    %p141 = scmp.eq.s32.totalorder %s17, 0
    %p142 = por %p140, %p141
    %p143 = scmp.ne.s32.totalorder %s135, %s137
    %p144 = scmp.eq.s32.totalorder %s22, 1
    %p145 = por %p143, %p144
    %p146 = scmp.ne.s32.totalorder %s137, %s138
    %p147 = scmp.eq.s32.totalorder %s22, 0
    %p148 = por %p146, %p147
    %p149 = scmp.ne.s32.totalorder %s137, %s138
    %p150 = scmp.eq.s32.totalorder %s23, 1
    %p151 = por %p149, %p150
    %p153 = scmp.ne.s32.totalorder %s138, %s152
    %p154 = scmp.eq.s32.totalorder %s23, 0
    %p155 = por %p153, %p154
    %s157 = sadd.s32 %s156, 1
    %p160 = scmp.eq.s32.totalorder %s17, 1
    %p161 = scmp.ne.s32.totalorder %s156, %s158
    %p162 = scmp.eq.s32.totalorder %s17, 0
    %p163 = por %p161, %p162
    %p164 = scmp.ne.s32.totalorder %s156, %s158
    %p165 = scmp.eq.s32.totalorder %s22, 1
    %p166 = por %p164, %p165
    %p167 = scmp.ne.s32.totalorder %s158, %s159
    %p168 = scmp.eq.s32.totalorder %s22, 0
    %p169 = por %p167, %p168
    %p170 = scmp.ne.s32.totalorder %s158, %s159
    %p171 = scmp.eq.s32.totalorder %s23, 1
    %p172 = por %p170, %p171
    %p174 = scmp.ne.s32.totalorder %s159, %s173
    %p175 = scmp.eq.s32.totalorder %s23, 0
    %p176 = por %p174, %p175
    %s178 = sadd.s32 %s177, 1
    %p181 = scmp.eq.s32.totalorder %s17, 1
    %p182 = scmp.ne.s32.totalorder %s177, %s179
    %p183 = scmp.eq.s32.totalorder %s17, 0
    %p184 = por %p182, %p183
    %p185 = scmp.ne.s32.totalorder %s177, %s179
    %p186 = scmp.eq.s32.totalorder %s22, 1
    %p187 = por %p185, %p186
    %p188 = scmp.ne.s32.totalorder %s179, %s180
    %p189 = scmp.eq.s32.totalorder %s22, 0
    %p190 = por %p188, %p189
    %p191 = scmp.ne.s32.totalorder %s179, %s180
    %p192 = scmp.eq.s32.totalorder %s23, 1
    %p193 = por %p191, %p192
    %p195 = scmp.ne.s32.totalorder %s180, %s194
    %p196 = scmp.eq.s32.totalorder %s23, 0
    %p197 = por %p195, %p196
    %s199 = sadd.s32 %s198, 1
    %p202 = scmp.eq.s32.totalorder %s17, 1
    %p203 = scmp.ne.s32.totalorder %s198, %s200
    %p204 = scmp.eq.s32.totalorder %s17, 0
    %p205 = por %p203, %p204
    %p206 = scmp.ne.s32.totalorder %s198, %s200
    %p207 = scmp.eq.s32.totalorder %s22, 1
    %p208 = por %p206, %p207
    %p209 = scmp.ne.s32.totalorder %s200, %s201
    %p210 = scmp.eq.s32.totalorder %s22, 0
    %p211 = por %p209, %p210
    %p212 = scmp.ne.s32.totalorder %s200, %s201
    %p213 = scmp.eq.s32.totalorder %s23, 1
    %p214 = por %p212, %p213
    %p216 = scmp.ne.s32.totalorder %s201, %s215
    %p217 = scmp.eq.s32.totalorder %s23, 0
    %p218 = por %p216, %p217
    %s220 = sadd.s32 %s219, 1
    %p223 = scmp.eq.s32.totalorder %s17, 1
    %p224 = scmp.ne.s32.totalorder %s219, %s221
    %p225 = scmp.eq.s32.totalorder %s17, 0
    %p226 = por %p224, %p225
    %p227 = scmp.ne.s32.totalorder %s219, %s221
    %p228 = scmp.eq.s32.totalorder %s22, 1
    %p229 = por %p227, %p228
    %p230 = scmp.ne.s32.totalorder %s221, %s222
    %p231 = scmp.eq.s32.totalorder %s22, 0
    %p232 = por %p230, %p231
    %p233 = scmp.ne.s32.totalorder %s221, %s222
    %p234 = scmp.eq.s32.totalorder %s23, 1
    %p235 = por %p233, %p234
    %p237 = scmp.ne.s32.totalorder %s222, %s236
    %p238 = scmp.eq.s32.totalorder %s23, 0
    %p239 = por %p237, %p238
    %s241 = sadd.s32 %s240, 1
    %p244 = scmp.eq.s32.totalorder %s17, 1
    %p245 = scmp.ne.s32.totalorder %s240, %s242
    %p246 = scmp.eq.s32.totalorder %s17, 0
    %p247 = por %p245, %p246
    %p248 = scmp.ne.s32.totalorder %s240, %s242
    %p249 = scmp.eq.s32.totalorder %s22, 1
    %p250 = por %p248, %p249
    %p251 = scmp.ne.s32.totalorder %s242, %s243
    %p252 = scmp.eq.s32.totalorder %s22, 0
    %p253 = por %p251, %p252
    %p254 = scmp.ne.s32.totalorder %s242, %s243
    %p255 = scmp.eq.s32.totalorder %s23, 1
    %p256 = por %p254, %p255
    %p258 = scmp.ne.s32.totalorder %s243, %s257
    %p259 = scmp.eq.s32.totalorder %s23, 0
    %p260 = por %p258, %p259
    %s261 = ssub.s32 %s17, %s24
    %p262 = scmp.eq.s32.totalorder %s261, 0
    %s264 = sadd.s32 %s263, 1
    %s265 = scalar_select %p262, %s263, %s264
    %p268 = pneg %p262
    %p269 = scmp.eq.s32.totalorder %s17, 1
    %p270 = por %p268, %p269
    %p271 = scmp.ne.s32.totalorder %s263, %s266
    %p272 = scmp.eq.s32.totalorder %s17, 0
    %p273 = por %p271, %p272
    %p274 = scmp.ne.s32.totalorder %s263, %s266
    %p275 = scmp.eq.s32.totalorder %s22, 1
    %p276 = por %p274, %p275
    %p277 = scmp.ne.s32.totalorder %s266, %s267
    %p278 = scmp.eq.s32.totalorder %s22, 0
    %p279 = por %p277, %p278
    %p280 = scmp.ne.s32.totalorder %s266, %s267
    %p281 = scmp.eq.s32.totalorder %s23, 1
    %p282 = por %p280, %p281
    %p284 = scmp.ne.s32.totalorder %s267, %s283
    %p285 = scmp.eq.s32.totalorder %s23, 0
    %p286 = por %p284, %p285
    %p287 = scmp.le.s32.totalorder 1, %s17
    %p288 = scmp.lt.s32.totalorder %s17, 3
    %p289 = pnand %p287, %p288
    %p290 = pneg %p289
    // Predicated region
    $region9: #{discriminator_forward.1} parent=5 // pred_check
      _
    $region10: #{discriminator_forward.1} parent=5 // pred_check_branch
      %292 = sbr.rel (%p289) target = $region12
    $region11: #{discriminator_forward.1} parent=5 // pred_region
      %s293 = ssub.s32 %s17, 1
      // Predicated region
      $region13: #{discriminator_forward.1} parent=11 // pred_check
        %p294 = pneg %p64
      $region14: #{discriminator_forward.1} parent=11 // pred_check_branch
        %296 = sbr.rel (%p294) target = $region16
      $region15: #{discriminator_forward.1} parent=11 // pred_region
        _
      $region16: #{discriminator_forward.1} parent=11 // pred_fallthru
        _
      // Predicated region
      $region17: #{discriminator_forward.1} parent=11 // pred_check
        %p297 = pneg %p85
      $region18: #{discriminator_forward.1} parent=11 // pred_check_branch
        %299 = sbr.rel (%p297) target = $region20
      $region19: #{discriminator_forward.1} parent=11 // pred_region
        _
      $region20: #{discriminator_forward.1} parent=11 // pred_fallthru
        _
      // Predicated region
      $region21: #{discriminator_forward.1} parent=11 // pred_check
        %p300 = pneg %p106
      $region22: #{discriminator_forward.1} parent=11 // pred_check_branch
        %302 = sbr.rel (%p300) target = $region24
      $region23: #{discriminator_forward.1} parent=11 // pred_region
        _
      $region24: #{discriminator_forward.1} parent=11 // pred_fallthru
        _
      // Predicated region
      $region25: #{discriminator_forward.1} parent=11 // pred_check
        %p303 = pneg %p127
      $region26: #{discriminator_forward.1} parent=11 // pred_check_branch
        %305 = sbr.rel (%p303) target = $region28
      $region27: #{discriminator_forward.1} parent=11 // pred_region
        _
      $region28: #{discriminator_forward.1} parent=11 // pred_fallthru
        _
      // Predicated region
      $region29: #{discriminator_forward.1} parent=11 // pred_check
        %p306 = pneg %p148
      $region30: #{discriminator_forward.1} parent=11 // pred_check_branch
        %308 = sbr.rel (%p306) target = $region32
      $region31: #{discriminator_forward.1} parent=11 // pred_region
        _
      $region32: #{discriminator_forward.1} parent=11 // pred_fallthru
        _
      // Predicated region
      $region33: #{discriminator_forward.1} parent=11 // pred_check
        %p309 = pneg %p169
      $region34: #{discriminator_forward.1} parent=11 // pred_check_branch
        %311 = sbr.rel (%p309) target = $region36
      $region35: #{discriminator_forward.1} parent=11 // pred_region
        _
      $region36: #{discriminator_forward.1} parent=11 // pred_fallthru
        _
      // Predicated region
      $region37: #{discriminator_forward.1} parent=11 // pred_check
        %p312 = pneg %p190
      $region38: #{discriminator_forward.1} parent=11 // pred_check_branch
        %314 = sbr.rel (%p312) target = $region40
      $region39: #{discriminator_forward.1} parent=11 // pred_region
        _
      $region40: #{discriminator_forward.1} parent=11 // pred_fallthru
        _
      // Predicated region
      $region41: #{discriminator_forward.1} parent=11 // pred_check
        %p315 = pneg %p211
      $region42: #{discriminator_forward.1} parent=11 // pred_check_branch
        %317 = sbr.rel (%p315) target = $region44
      $region43: #{discriminator_forward.1} parent=11 // pred_region
        _
      $region44: #{discriminator_forward.1} parent=11 // pred_fallthru
        _
      // Predicated region
      $region45: #{discriminator_forward.1} parent=11 // pred_check
        %p318 = pneg %p232
      $region46: #{discriminator_forward.1} parent=11 // pred_check_branch
        %320 = sbr.rel (%p318) target = $region48
      $region47: #{discriminator_forward.1} parent=11 // pred_region
        _
      $region48: #{discriminator_forward.1} parent=11 // pred_fallthru
        _
      // Predicated region
      $region49: #{discriminator_forward.1} parent=11 // pred_check
        %p321 = pneg %p253
      $region50: #{discriminator_forward.1} parent=11 // pred_check_branch
        %323 = sbr.rel (%p321) target = $region52
      $region51: #{discriminator_forward.1} parent=11 // pred_region
        _
      $region52: #{discriminator_forward.1} parent=11 // pred_fallthru
        _
    $region12: #{discriminator_forward.1} parent=5 // pred_fallthru
      _
    %p324 = scmp.lt.s32.totalorder %s17, 2
    // Predicated region
    $region53: #{discriminator_forward.1} parent=5 // pred_check
      %p325 = pneg %p324
    $region54: #{discriminator_forward.1} parent=5 // pred_check_branch
      %327 = sbr.rel (%p325) target = $region56
    $region55: #{discriminator_forward.1} parent=5 // pred_region
      // Predicated region
      $region57: #{discriminator_forward.1} parent=55 // pred_check
        %p328 = pneg %p37
      $region58: #{discriminator_forward.1} parent=55 // pred_check_branch
        %330 = sbr.rel (%p328) target = $region60
      $region59: #{discriminator_forward.1} parent=55 // pred_region
        %p331 = scmp.lt.s32.totalorder %s17, 1
        %s332 = scalar_select %p331, %s17, 1
        %s333 = smul.addr %s332, 112
        %s334 = smul.addr %s333, 4
        %s335 = scalar_lea.vmem %s0, %s334
      $region60: #{discriminator_forward.1} parent=55 // pred_fallthru
        _
    $region56: #{discriminator_forward.1} parent=5 // pred_fallthru
      _
    %p336 = scmp.le.s32.totalorder 1, %s17
    %p337 = scmp.lt.s32.totalorder %s17, 3
    %p338 = pnand %p336, %p337
    %p339 = pneg %p338
    // Predicated region
    $region61: #{discriminator_forward.1} parent=5 // pred_check
      _
    $region62: #{discriminator_forward.1} parent=5 // pred_check_branch
      %341 = sbr.rel (%p338) target = $region64
    $region63: #{discriminator_forward.1} parent=5 // pred_region
      %s342 = ssub.s32 %s17, 1
      %p343 = scmp.lt.s32.totalorder %s22, 1
      %s344 = scalar_select %p343, %s22, 1
      %s345 = smul.addr %s344, 112
      %s346 = smul.addr %s345, 4
      %s347 = scalar_lea.vmem %s0, %s346
      %p348 = pneg %p43
      %p349 = pneg %p40
      %p350 = pneg %p64
      %p351 = pneg %p61
      %p352 = pneg %p85
      %p353 = pneg %p82
      %p354 = pneg %p106
      %p355 = pneg %p103
      %p356 = pneg %p127
      %p357 = pneg %p124
      %p358 = pneg %p148
      %p359 = pneg %p145
      %p360 = pneg %p169
      %p361 = pneg %p166
      %p362 = pneg %p190
      %p363 = pneg %p187
      %p364 = pneg %p211
      %p365 = pneg %p208
      %p366 = pneg %p232
      %p367 = pneg %p229
      %p368 = pneg %p253
      %p369 = pneg %p250
      %p370 = pneg %p279
      %p371 = pneg %p276
      %p372 = scmp.lt.s32.totalorder %s22, 1
      %s373 = scalar_select %p372, %s22, 1
      %s374 = scalar_lea.vmem %s11, %s373
      %p375 = scmp.lt.s32.totalorder %s22, 1
      %s376 = scalar_select %p375, %s22, 1
      %s377 = smul.addr %s376, 112
      %s378 = smul.addr %s377, 4
      %s379 = scalar_lea.vmem %s0, %s378
      %p380 = scmp.lt.s32.totalorder %s22, 1
      %s381 = scalar_select %p380, %s22, 1
      %s382 = scalar_lea.vmem %s11, %s381
      %v384 = vld [vmem:[%s1] sm:$0xf]
      %v385 = vld [vmem:[%s1 + $0x4] sm:$0xf]
      %v386 = vld [vmem:[%s1 + $0x8] sm:$0xf]
      %v387 = vld [vmem:[%s1 + $0xc] sm:$0xf]
      %v388 = vld [vmem:[%s1 + $0x10] sm:$0xf]
      %v389 = vld [vmem:[%s1 + $0x14] sm:$0xf]
      %v390 = vld [vmem:[%s1 + $0x18] sm:$0xf]
      %v391 = vld [vmem:[%s1 + $0x1c] sm:$0xf]
      %v392 = vld [vmem:[%s1 + $0x20] sm:$0xf]
      %v393 = vld [vmem:[%s1 + $0x24] sm:$0xf]
      %v394 = vld [vmem:[%s1 + $0x28] sm:$0xf]
      %v395 = vld [vmem:[%s1 + $0x2c] sm:$0xf]
      %v396 = vld [vmem:[%s1 + $0x30] sm:$0xf]
      %v397 = vld [vmem:[%s1 + $0x34] sm:$0xf]
      %v398 = vld [vmem:[%s1 + $0x38] sm:$0xf]
      %v399 = vld [vmem:[%s1 + $0x3c] sm:$0xf]
      %v400 = vld [vmem:[%s2] sm:$0x1]
      %401 = vst [vmem:[#allocation3] sm:$0xff] 0.0
      %402 = vst [vmem:[#allocation3 + $0x8] sm:$0xff] 0.0
      %403 = vst [vmem:[#allocation3 + $0x10] sm:$0xff] 0.0
      %404 = vst [vmem:[#allocation3 + $0x18] sm:$0xff] 0.0
      %405 = vst [vmem:[#allocation3 + $0x20] sm:$0xff] 0.0
      %406 = vst [vmem:[#allocation3 + $0x28] sm:$0xff] 0.0
      %407 = vst [vmem:[#allocation3 + $0x30] sm:$0xff] 0.0
      %408 = vst [vmem:[#allocation3 + $0x38] sm:$0xff] 0.0
      %409 = vst [vmem:[#allocation3 + $0x40] sm:$0xff] 0.0
      %410 = vst [vmem:[#allocation3 + $0x48] sm:$0xff] 0.0
      %411 = vst [vmem:[#allocation3 + $0x50] sm:$0xff] 0.0
      %412 = vst [vmem:[#allocation3 + $0x58] sm:$0xff] 0.0
      %413 = vst [vmem:[#allocation3 + $0x60] sm:$0xff] 0.0
      %414 = vst [vmem:[#allocation3 + $0x68] sm:$0xff] 0.0
      %415 = vst [vmem:[#allocation3 + $0x70] sm:$0xff] 0.0
      %416 = vst [vmem:[#allocation3 + $0x78] sm:$0xff] 0.0
      %417 = vst [vmem:[#allocation3 + $0x80] sm:$0xff] 0.0
      %418 = vst [vmem:[#allocation3 + $0x88] sm:$0xff] 0.0
      %419 = vst [vmem:[#allocation3 + $0x90] sm:$0xff] 0.0
      %420 = vst [vmem:[#allocation3 + $0x98] sm:$0xff] 0.0
      %421 = vst [vmem:[#allocation3 + $0xa0] sm:$0xff] 0.0
      %422 = vst [vmem:[#allocation3 + $0xa8] sm:$0xff] 0.0
      %423 = vst [vmem:[#allocation3 + $0xb0] sm:$0xff] 0.0
      %424 = vst [vmem:[#allocation3 + $0xb8] sm:$0xff] 0.0
      %425 = vst [vmem:[#allocation3 + $0xc0] sm:$0xff] 0.0
      %426 = vst [vmem:[#allocation3 + $0xc8] sm:$0xff] 0.0
      %427 = vst [vmem:[#allocation3 + $0xd0] sm:$0xff] 0.0
      %428 = vst [vmem:[#allocation3 + $0xd8] sm:$0xff] 0.0
      %429 = vst [vmem:[#allocation3 + $0xe0] sm:$0xff] 0.0
      %430 = vst [vmem:[#allocation3 + $0xe8] sm:$0xff] 0.0
      %431 = vst [vmem:[#allocation3 + $0xf0] sm:$0xff] 0.0
      %432 = vst [vmem:[#allocation3 + $0xf8] sm:$0xff] 0.0
      %433 = vst [vmem:[#allocation3 + $0x100] sm:$0xff] 0.0
      %434 = vst [vmem:[#allocation3 + $0x108] sm:$0xff] 0.0
      %435 = vst [vmem:[#allocation3 + $0x110] sm:$0xff] 0.0
      %436 = vst [vmem:[#allocation3 + $0x118] sm:$0xff] 0.0
      %437 = vst [vmem:[#allocation3 + $0x120] sm:$0xff] 0.0
      %438 = vst [vmem:[#allocation3 + $0x128] sm:$0xff] 0.0
      %439 = vst [vmem:[#allocation3 + $0x130] sm:$0xff] 0.0
      %440 = vst [vmem:[#allocation3 + $0x138] sm:$0xff] 0.0
      %441 = vst [vmem:[#allocation3 + $0x140] sm:$0xff] 0.0
      %442 = vst [vmem:[#allocation3 + $0x148] sm:$0xff] 0.0
      %443 = vst [vmem:[#allocation3 + $0x150] sm:$0xff] 0.0
      %444 = vst [vmem:[#allocation3 + $0x158] sm:$0xff] 0.0
      %445 = vst [vmem:[#allocation3 + $0x160] sm:$0xff] 0.0
      %446 = vst [vmem:[#allocation3 + $0x168] sm:$0xff] 0.0
      %447 = vst [vmem:[#allocation3 + $0x170] sm:$0xff] 0.0
      %448 = vst [vmem:[#allocation3 + $0x178] sm:$0xff] 0.0
      loop: start=0, step=1, limit=7
      $region65: #{discriminator_forward.1} parent=63 // loop_pre_header
        _
      $region66: #{discriminator_forward.1} parent=63 // loop_header
        %s450 = sphi 0, %s454
        %p451 = scmp.ge.s32.totalorder %s450, 7
      $region67: #{discriminator_forward.1} parent=63 // loop_header_branch
        %453 = sbr.rel (%p451) target = $region71
      $region68: #{discriminator_forward.1} parent=63 // loop_body
        %s455 = smul.u32 %s450, 128
        %s456 = sshra.s32 %s455, 3
        %s457 = sand.u32 %s455, 7
        %s458 = smul.addr %s456, 4
        %s459 = scalar_lea.vmem %s379, %s458
        %v460 = vld [vmem:[%s459] sm:$0xf]
        %v461 = vld [vmem:[%s459 + $0x4] sm:$0xf]
        %v462 = vld [vmem:[%s459 + $0x8] sm:$0xf]
        %v463 = vld [vmem:[%s459 + $0xc] sm:$0xf]
        %v464 = vld [vmem:[%s459 + $0x10] sm:$0xf]
        %v465 = vld [vmem:[%s459 + $0x14] sm:$0xf]
        %v466 = vld [vmem:[%s459 + $0x18] sm:$0xf]
        %v467 = vld [vmem:[%s459 + $0x1c] sm:$0xf]
        %v468 = vld [vmem:[%s459 + $0x20] sm:$0xf]
        %v469 = vld [vmem:[%s459 + $0x24] sm:$0xf]
        %v470 = vld [vmem:[%s459 + $0x28] sm:$0xf]
        %v471 = vld [vmem:[%s459 + $0x2c] sm:$0xf]
        %v472 = vld [vmem:[%s459 + $0x30] sm:$0xf]
        %v473 = vld [vmem:[%s459 + $0x34] sm:$0xf]
        %v474 = vld [vmem:[%s459 + $0x38] sm:$0xf]
        %v475 = vld [vmem:[%s459 + $0x3c] sm:$0xf]
        %v477 = vlaneseq
        %v478 = vshrl.u32 %v477, 7
        %v479 = vsub.s32 0, %v478
        %v480 = vrot.slane %v400, %v479
        %v498 = vunpack.c.l.b16 %v460
        %v499 = vunpack.c.l.b16 %v461
        %v500 = vunpack.c.l.b16 %v462
        %v501 = vunpack.c.l.b16 %v463
        %v502 = vunpack.c.l.b16 %v464
        %v503 = vunpack.c.l.b16 %v465
        %v504 = vunpack.c.l.b16 %v466
        %v505 = vunpack.c.l.b16 %v467
        %v506 = vunpack.c.l.b16 %v468
        %v507 = vunpack.c.l.b16 %v469
        %v508 = vunpack.c.l.b16 %v470
        %v509 = vunpack.c.l.b16 %v471
        %v510 = vunpack.c.l.b16 %v472
        %v511 = vunpack.c.l.b16 %v473
        %v512 = vunpack.c.l.b16 %v474
        %v513 = vunpack.c.l.b16 %v475
        %v514 = vpack.c.b16 %v499, %v498
        %v515 = vpack.c.b16 %v501, %v500
        %v516 = vpack.c.b16 %v503, %v502
        %v517 = vpack.c.b16 %v505, %v504
        %v518 = vpack.c.b16 %v507, %v506
        %v519 = vpack.c.b16 %v509, %v508
        %v520 = vpack.c.b16 %v511, %v510
        %v521 = vpack.c.b16 %v513, %v512
        %v546 = vunpack.c.l.b16 %v384
        %v547 = vunpack.c.l.b16 %v385
        %v548 = vunpack.c.l.b16 %v386
        %v549 = vunpack.c.l.b16 %v387
        %v550 = vunpack.c.l.b16 %v388
        %v551 = vunpack.c.l.b16 %v389
        %v552 = vunpack.c.l.b16 %v390
        %v553 = vunpack.c.l.b16 %v391
        %v554 = vunpack.c.l.b16 %v392
        %v555 = vunpack.c.l.b16 %v393
        %v556 = vunpack.c.l.b16 %v394
        %v557 = vunpack.c.l.b16 %v395
        %v558 = vunpack.c.l.b16 %v396
        %v559 = vunpack.c.l.b16 %v397
        %v560 = vunpack.c.l.b16 %v398
        %v561 = vunpack.c.l.b16 %v399
        %v562 = vpack.c.b16 %v547, %v546
        %v563 = vpack.c.b16 %v549, %v548
        %v564 = vpack.c.b16 %v551, %v550
        %v565 = vpack.c.b16 %v553, %v552
        %v566 = vpack.c.b16 %v555, %v554
        %v567 = vpack.c.b16 %v557, %v556
        %v568 = vpack.c.b16 %v559, %v558
        %v569 = vpack.c.b16 %v561, %v560
        %578 = vmatprep.subr.bf16.mxu0 0
        %579 = vmatpush1.bf16.msra.mxu0 %v562
        %580 = vmatprep.subr.bf16.mxu0 0
        %581 = vmatpush1.bf16.msra.mxu0 %v563
        %582 = vmatprep.subr.bf16.mxu0 0
        %583 = vmatpush1.bf16.msra.mxu0 %v564
        %584 = vmatprep.subr.bf16.mxu0 0
        %585 = vmatpush1.bf16.msra.mxu0 %v565
        %586 = vmatprep.subr.bf16.mxu0 0
        %587 = vmatpush1.bf16.msra.mxu0 %v566
        %588 = vmatprep.subr.bf16.mxu0 0
        %589 = vmatpush1.bf16.msra.mxu0 %v567
        %590 = vmatprep.subr.bf16.mxu0 0
        %591 = vmatpush1.bf16.msra.mxu0 %v568
        %592 = vmatprep.subr.bf16.mxu0 0
        %593 = vmatpush1.bf16.msra.mxu0 %v569
        %594 = vmatprep.subr.bf16.mxu0 0
        %595 = vmatpush1.bf16.msra.mxu0 0
        %596 = vmatprep.subr.bf16.mxu0 0
        %597 = vmatpush1.bf16.msra.mxu0 0
        %598 = vmatprep.subr.bf16.mxu0 0
        %599 = vmatpush1.bf16.msra.mxu0 0
        %600 = vmatprep.subr.bf16.mxu0 0
        %601 = vmatpush1.bf16.msra.mxu0 0
        %602 = vmatprep.subr.bf16.mxu0 0
        %603 = vmatpush1.bf16.msra.mxu0 0
        %604 = vmatprep.subr.bf16.mxu0 0
        %605 = vmatpush1.bf16.msra.mxu0 0
        %606 = vmatprep.subr.bf16.mxu0 0
        %607 = vmatpush1.bf16.msra.mxu0 0
        %608 = vmatprep.subr.bf16.mxu0 0
        %609 = vmatpush1.bf16.msra.mxu0 0
        %610 = vmatprep.mubr.bf16.mxu0 0
        %611 = vmatmul.mubr.bf16.gmra.mrb[0].mxu0 %v514
        %v612 = vpop.f32.mrb[0].mxu0
        %v613 = vadd.f32 %v480, %v612
        %v614 = vpop.f32.mrb[0].mxu0
        %v615 = vpop.f32.mrb[0].mxu0
        %v616 = vadd.f32 %v480, %v615
        %v617 = vpop.f32.mrb[0].mxu0
        %618 = vmatprep.mubr.bf16.mxu0 0
        %619 = vmatmul.mubr.bf16.gmra.mrb[0].mxu0 %v515
        %v620 = vpop.f32.mrb[0].mxu0
        %v621 = vadd.f32 %v480, %v620
        %v622 = vpop.f32.mrb[0].mxu0
        %v623 = vpop.f32.mrb[0].mxu0
        %v624 = vadd.f32 %v480, %v623
        %v625 = vpop.f32.mrb[0].mxu0
        %626 = vmatprep.mubr.bf16.mxu0 0
        %627 = vmatmul.mubr.bf16.gmra.mrb[0].mxu0 %v516
        %v628 = vpop.f32.mrb[0].mxu0
        %v629 = vadd.f32 %v480, %v628
        %v630 = vpop.f32.mrb[0].mxu0
        %v631 = vpop.f32.mrb[0].mxu0
        %v632 = vadd.f32 %v480, %v631
        %v633 = vpop.f32.mrb[0].mxu0
        %634 = vmatprep.mubr.bf16.mxu0 0
        %635 = vmatmul.mubr.bf16.gmra.mrb[0].mxu0 %v517
        %v636 = vpop.f32.mrb[0].mxu0
        %v637 = vadd.f32 %v480, %v636
        %v638 = vpop.f32.mrb[0].mxu0
        %v639 = vpop.f32.mrb[0].mxu0
        %v640 = vadd.f32 %v480, %v639
        %v641 = vpop.f32.mrb[0].mxu0
        %642 = vmatprep.mubr.bf16.mxu0 0
        %643 = vmatmul.mubr.bf16.gmra.mrb[0].mxu0 %v518
        %v644 = vpop.f32.mrb[0].mxu0
        %v645 = vadd.f32 %v480, %v644
        %v646 = vpop.f32.mrb[0].mxu0
        %v647 = vpop.f32.mrb[0].mxu0
        %v648 = vadd.f32 %v480, %v647
        %v649 = vpop.f32.mrb[0].mxu0
        %650 = vmatprep.mubr.bf16.mxu0 0
        %651 = vmatmul.mubr.bf16.gmra.mrb[0].mxu0 %v519
        %v652 = vpop.f32.mrb[0].mxu0
        %v653 = vadd.f32 %v480, %v652
        %v654 = vpop.f32.mrb[0].mxu0
        %v655 = vpop.f32.mrb[0].mxu0
        %v656 = vadd.f32 %v480, %v655
        %v657 = vpop.f32.mrb[0].mxu0
        %658 = vmatprep.mubr.bf16.mxu0 0
        %659 = vmatmul.mubr.bf16.gmra.mrb[0].mxu0 %v520
        %v660 = vpop.f32.mrb[0].mxu0
        %v661 = vadd.f32 %v480, %v660
        %v662 = vpop.f32.mrb[0].mxu0
        %v663 = vpop.f32.mrb[0].mxu0
        %v664 = vadd.f32 %v480, %v663
        %v665 = vpop.f32.mrb[0].mxu0
        %666 = vmatprep.mubr.bf16.mxu0 0
        %667 = vmatmul.mubr.bf16.gmra.mrb[0].mxu0 %v521
        %v668 = vpop.f32.mrb[0].mxu0
        %v669 = vadd.f32 %v480, %v668
        %v670 = vpop.f32.mrb[0].mxu0
        %v671 = vpop.f32.mrb[0].mxu0
        %v672 = vadd.f32 %v480, %v671
        %v673 = vpop.f32.mrb[0].mxu0
        %674 = vdwg.mxu0
        %v675 = vmax.f32 %v613, 0.0
        %v676 = vmax.f32 %v616, 0.0
        %v677 = vmax.f32 %v621, 0.0
        %v678 = vmax.f32 %v624, 0.0
        %v679 = vmax.f32 %v629, 0.0
        %v680 = vmax.f32 %v632, 0.0
        %v681 = vmax.f32 %v637, 0.0
        %v682 = vmax.f32 %v640, 0.0
        %v683 = vmax.f32 %v645, 0.0
        %v684 = vmax.f32 %v648, 0.0
        %v685 = vmax.f32 %v653, 0.0
        %v686 = vmax.f32 %v656, 0.0
        %v687 = vmax.f32 %v661, 0.0
        %v688 = vmax.f32 %v664, 0.0
        %v689 = vmax.f32 %v669, 0.0
        %v690 = vmax.f32 %v672, 0.0
        %691 = vst [vmem:[#allocation2] sm:$0xff] %v675
        %692 = vst [vmem:[#allocation2 + $0x8] sm:$0xff] %v676
        %693 = vst [vmem:[#allocation2 + $0x10] sm:$0xff] %v677
        %694 = vst [vmem:[#allocation2 + $0x18] sm:$0xff] %v678
        %695 = vst [vmem:[#allocation2 + $0x20] sm:$0xff] %v679
        %696 = vst [vmem:[#allocation2 + $0x28] sm:$0xff] %v680
        %697 = vst [vmem:[#allocation2 + $0x30] sm:$0xff] %v681
        %698 = vst [vmem:[#allocation2 + $0x38] sm:$0xff] %v682
        %699 = vst [vmem:[#allocation2 + $0x40] sm:$0xff] %v683
        %700 = vst [vmem:[#allocation2 + $0x48] sm:$0xff] %v684
        %701 = vst [vmem:[#allocation2 + $0x50] sm:$0xff] %v685
        %702 = vst [vmem:[#allocation2 + $0x58] sm:$0xff] %v686
        %703 = vst [vmem:[#allocation2 + $0x60] sm:$0xff] %v687
        %704 = vst [vmem:[#allocation2 + $0x68] sm:$0xff] %v688
        %705 = vst [vmem:[#allocation2 + $0x70] sm:$0xff] %v689
        %706 = vst [vmem:[#allocation2 + $0x78] sm:$0xff] %v690
        %v707 = vld [vmem:[#allocation2] ss:$2 sm:$0xff]
        %s708 = scalar_lea.vmem [#allocation2], 16
        %v709 = vld [vmem:[%s708] ss:$2 sm:$0xff]
        %s710 = scalar_lea.vmem [#allocation2], 32
        %v711 = vld [vmem:[%s710] ss:$2 sm:$0xff]
        %s712 = scalar_lea.vmem [#allocation2], 48
        %v713 = vld [vmem:[%s712] ss:$2 sm:$0xff]
        %s714 = scalar_lea.vmem [#allocation2], 64
        %v715 = vld [vmem:[%s714] ss:$2 sm:$0xff]
        %s716 = scalar_lea.vmem [#allocation2], 80
        %v717 = vld [vmem:[%s716] ss:$2 sm:$0xff]
        %s718 = scalar_lea.vmem [#allocation2], 96
        %v719 = vld [vmem:[%s718] ss:$2 sm:$0xff]
        %s720 = scalar_lea.vmem [#allocation2], 112
        %v721 = vld [vmem:[%s720] ss:$2 sm:$0xff]
        %s722 = scalar_lea.vmem [#allocation2], 1
        %v723 = vld [vmem:[%s722] ss:$2 sm:$0xff]
        %s724 = scalar_lea.vmem [#allocation2], 17
        %v725 = vld [vmem:[%s724] ss:$2 sm:$0xff]
        %s726 = scalar_lea.vmem [#allocation2], 33
        %v727 = vld [vmem:[%s726] ss:$2 sm:$0xff]
        %s728 = scalar_lea.vmem [#allocation2], 49
        %v729 = vld [vmem:[%s728] ss:$2 sm:$0xff]
        %s730 = scalar_lea.vmem [#allocation2], 65
        %v731 = vld [vmem:[%s730] ss:$2 sm:$0xff]
        %s732 = scalar_lea.vmem [#allocation2], 81
        %v733 = vld [vmem:[%s732] ss:$2 sm:$0xff]
        %s734 = scalar_lea.vmem [#allocation2], 97
        %v735 = vld [vmem:[%s734] ss:$2 sm:$0xff]
        %s736 = scalar_lea.vmem [#allocation2], 113
        %v737 = vld [vmem:[%s736] ss:$2 sm:$0xff]
        %v738 = vmax.f32 %v707, %v723
        %v739 = vmax.f32 %v709, %v725
        %v740 = vmax.f32 %v711, %v727
        %v741 = vmax.f32 %v713, %v729
        %v742 = vmax.f32 %v715, %v731
        %v743 = vmax.f32 %v717, %v733
        %v744 = vmax.f32 %v719, %v735
        %v745 = vmax.f32 %v721, %v737
        %v746 = vmax.f32 %v738, %v740
        %v747 = vmax.f32 %v739, %v741
        %v748 = vmax.f32 %v742, %v744
        %v749 = vmax.f32 %v743, %v745
        %s750 = smul.u32 %s450, 2
        %s751 = smul.u32 %s750, 24
        %s752 = scalar_lea.vmem [#allocation3], %s751
        %753 = vst [vmem:[%s752] sm:$0xff] %v746
        %754 = vst [vmem:[%s752 + $0x8] sm:$0xff] %v747
        %755 = vst [vmem:[%s752 + $0x18] sm:$0xff] %v748
        %756 = vst [vmem:[%s752 + $0x20] sm:$0xff] %v749
      $region69: #{discriminator_forward.1} parent=63 // loop_footer
        %s454 = sadd.s32 1, %s450
      $region70: #{discriminator_forward.1} parent=63 // loop_footer_branch
        %449 = sbr.rel target = $region66
      $region71: #{discriminator_forward.1} parent=63 // loop_exit
        _
      %v757 = vlaneseq
      %v758 = vand.u32 %v757, 127
      %v759 = vld [vmem:[#allocation3] sm:$0xff]
      %v760 = vld [vmem:[#allocation3 + $0x8] sm:$0xff]
      %v761 = vld [vmem:[#allocation3 + $0x18] sm:$0xff]
      %v762 = vld [vmem:[#allocation3 + $0x20] sm:$0xff]
      %v763 = vld [vmem:[#allocation3 + $0x30] sm:$0xff]
      %v764 = vld [vmem:[#allocation3 + $0x38] sm:$0xff]
      %v765 = vld [vmem:[#allocation3 + $0x48] sm:$0xff]
      %v766 = vld [vmem:[#allocation3 + $0x50] sm:$0xff]
      %v767 = vld [vmem:[#allocation3 + $0x60] sm:$0xff]
      %v768 = vld [vmem:[#allocation3 + $0x68] sm:$0xff]
      %v769 = vld [vmem:[#allocation3 + $0x78] sm:$0xff]
      %v770 = vld [vmem:[#allocation3 + $0x80] sm:$0xff]
      %v771 = vld [vmem:[#allocation3 + $0x90] sm:$0xff]
      %v772 = vld [vmem:[#allocation3 + $0x98] sm:$0xff]
      %v773 = vld [vmem:[#allocation3 + $0xa8] sm:$0xff]
      %v774 = vld [vmem:[#allocation3 + $0xb0] sm:$0xff]
      %v775 = vld [vmem:[#allocation3 + $0xc0] sm:$0xff]
      %v776 = vld [vmem:[#allocation3 + $0xc8] sm:$0xff]
      %v777 = vld [vmem:[#allocation3 + $0xd8] sm:$0xff]
      %v778 = vld [vmem:[#allocation3 + $0xe0] sm:$0xff]
      %v779 = vld [vmem:[#allocation3 + $0xf0] sm:$0xff]
      %v780 = vld [vmem:[#allocation3 + $0xf8] sm:$0xff]
      %v781 = vld [vmem:[#allocation3 + $0x108] sm:$0xff]
      %v782 = vld [vmem:[#allocation3 + $0x110] sm:$0xff]
      %v783 = vld [vmem:[#allocation3 + $0x120] sm:$0xff]
      %v784 = vld [vmem:[#allocation3 + $0x128] sm:$0xff]
      %v785 = vld [vmem:[#allocation3 + $0x138] sm:$0xff]
      %v786 = vld [vmem:[#allocation3 + $0x140] sm:$0xff]
      %vm787 = vcmp.ge.s32.totalorder %v758, 0
      %vm788 = vcmp.lt.s32.totalorder %v758, 6
      %vm789 = vmand %vm787, %vm788
      %v790 = vsel %vm789, %v759, 0.0
      %v791 = vsel %vm789, %v760, 0.0
      %v792 = vsel %vm789, %v761, 0.0
      %v793 = vsel %vm789, %v762, 0.0
      %v794 = vsel %vm789, %v763, 0.0
      %v795 = vsel %vm789, %v764, 0.0
      %v796 = vsel %vm789, %v765, 0.0
      %v797 = vsel %vm789, %v766, 0.0
      %v798 = vsel %vm789, %v767, 0.0
      %v799 = vsel %vm789, %v768, 0.0
      %v800 = vsel %vm789, %v769, 0.0
      %v801 = vsel %vm789, %v770, 0.0
      %v802 = vsel %vm789, %v771, 0.0
      %v803 = vsel %vm789, %v772, 0.0
      %v804 = vsel %vm789, %v773, 0.0
      %v805 = vsel %vm789, %v774, 0.0
      %v806 = vsel %vm789, %v775, 0.0
      %v807 = vsel %vm789, %v776, 0.0
      %v808 = vsel %vm789, %v777, 0.0
      %v809 = vsel %vm789, %v778, 0.0
      %v810 = vsel %vm789, %v779, 0.0
      %v811 = vsel %vm789, %v780, 0.0
      %v812 = vsel %vm789, %v781, 0.0
      %v813 = vsel %vm789, %v782, 0.0
      %v814 = vsel %vm789, %v783, 0.0
      %v815 = vsel %vm789, %v784, 0.0
      %v816 = vsel %vm789, %v785, 0.0
      %v817 = vsel %vm789, %v786, 0.0
      %v818 = vld [vmem:[#allocation3 + $0x1] sm:$0xff]
      %v819 = vld [vmem:[#allocation3 + $0x9] sm:$0xff]
      %v820 = vld [vmem:[#allocation3 + $0x19] sm:$0xff]
      %v821 = vld [vmem:[#allocation3 + $0x21] sm:$0xff]
      %v822 = vld [vmem:[#allocation3 + $0x31] sm:$0xff]
      %v823 = vld [vmem:[#allocation3 + $0x39] sm:$0xff]
      %v824 = vld [vmem:[#allocation3 + $0x49] sm:$0xff]
      %v825 = vld [vmem:[#allocation3 + $0x51] sm:$0xff]
      %v826 = vld [vmem:[#allocation3 + $0x61] sm:$0xff]
      %v827 = vld [vmem:[#allocation3 + $0x69] sm:$0xff]
      %v828 = vld [vmem:[#allocation3 + $0x79] sm:$0xff]
      %v829 = vld [vmem:[#allocation3 + $0x81] sm:$0xff]
      %v830 = vld [vmem:[#allocation3 + $0x91] sm:$0xff]
      %v831 = vld [vmem:[#allocation3 + $0x99] sm:$0xff]
      %v832 = vld [vmem:[#allocation3 + $0xa9] sm:$0xff]
      %v833 = vld [vmem:[#allocation3 + $0xb1] sm:$0xff]
      %v834 = vld [vmem:[#allocation3 + $0xc1] sm:$0xff]
      %v835 = vld [vmem:[#allocation3 + $0xc9] sm:$0xff]
      %v836 = vld [vmem:[#allocation3 + $0xd9] sm:$0xff]
      %v837 = vld [vmem:[#allocation3 + $0xe1] sm:$0xff]
      %v838 = vld [vmem:[#allocation3 + $0xf1] sm:$0xff]
      %v839 = vld [vmem:[#allocation3 + $0xf9] sm:$0xff]
      %v840 = vld [vmem:[#allocation3 + $0x109] sm:$0xff]
      %v841 = vld [vmem:[#allocation3 + $0x111] sm:$0xff]
      %v842 = vld [vmem:[#allocation3 + $0x121] sm:$0xff]
      %v843 = vld [vmem:[#allocation3 + $0x129] sm:$0xff]
      %v844 = vld [vmem:[#allocation3 + $0x139] sm:$0xff]
      %v845 = vld [vmem:[#allocation3 + $0x141] sm:$0xff]
      %vm846 = vcmp.ge.s32.totalorder %v758, 6
      %vm847 = vcmp.lt.s32.totalorder %v758, 12
      %vm848 = vmand %vm846, %vm847
      %v849 = vsel %vm848, %v818, %v790
      %v850 = vsel %vm848, %v819, %v791
      %v851 = vsel %vm848, %v820, %v792
      %v852 = vsel %vm848, %v821, %v793
      %v853 = vsel %vm848, %v822, %v794
      %v854 = vsel %vm848, %v823, %v795
      %v855 = vsel %vm848, %v824, %v796
      %v856 = vsel %vm848, %v825, %v797
      %v857 = vsel %vm848, %v826, %v798
      %v858 = vsel %vm848, %v827, %v799
      %v859 = vsel %vm848, %v828, %v800
      %v860 = vsel %vm848, %v829, %v801
      %v861 = vsel %vm848, %v830, %v802
      %v862 = vsel %vm848, %v831, %v803
      %v863 = vsel %vm848, %v832, %v804
      %v864 = vsel %vm848, %v833, %v805
      %v865 = vsel %vm848, %v834, %v806
      %v866 = vsel %vm848, %v835, %v807
      %v867 = vsel %vm848, %v836, %v808
      %v868 = vsel %vm848, %v837, %v809
      %v869 = vsel %vm848, %v838, %v810
      %v870 = vsel %vm848, %v839, %v811
      %v871 = vsel %vm848, %v840, %v812
      %v872 = vsel %vm848, %v841, %v813
      %v873 = vsel %vm848, %v842, %v814
      %v874 = vsel %vm848, %v843, %v815
      %v875 = vsel %vm848, %v844, %v816
      %v876 = vsel %vm848, %v845, %v817
      %v877 = vld [vmem:[#allocation3 + $0x2] sm:$0xff]
      %v878 = vld [vmem:[#allocation3 + $0xa] sm:$0xff]
      %v879 = vld [vmem:[#allocation3 + $0x1a] sm:$0xff]
      %v880 = vld [vmem:[#allocation3 + $0x22] sm:$0xff]
      %v881 = vld [vmem:[#allocation3 + $0x32] sm:$0xff]
      %v882 = vld [vmem:[#allocation3 + $0x3a] sm:$0xff]
      %v883 = vld [vmem:[#allocation3 + $0x4a] sm:$0xff]
      %v884 = vld [vmem:[#allocation3 + $0x52] sm:$0xff]
      %v885 = vld [vmem:[#allocation3 + $0x62] sm:$0xff]
      %v886 = vld [vmem:[#allocation3 + $0x6a] sm:$0xff]
      %v887 = vld [vmem:[#allocation3 + $0x7a] sm:$0xff]
      %v888 = vld [vmem:[#allocation3 + $0x82] sm:$0xff]
      %v889 = vld [vmem:[#allocation3 + $0x92] sm:$0xff]
      %v890 = vld [vmem:[#allocation3 + $0x9a] sm:$0xff]
      %v891 = vld [vmem:[#allocation3 + $0xaa] sm:$0xff]
      %v892 = vld [vmem:[#allocation3 + $0xb2] sm:$0xff]
      %v893 = vld [vmem:[#allocation3 + $0xc2] sm:$0xff]
      %v894 = vld [vmem:[#allocation3 + $0xca] sm:$0xff]
      %v895 = vld [vmem:[#allocation3 + $0xda] sm:$0xff]
      %v896 = vld [vmem:[#allocation3 + $0xe2] sm:$0xff]
      %v897 = vld [vmem:[#allocation3 + $0xf2] sm:$0xff]
      %v898 = vld [vmem:[#allocation3 + $0xfa] sm:$0xff]
      %v899 = vld [vmem:[#allocation3 + $0x10a] sm:$0xff]
      %v900 = vld [vmem:[#allocation3 + $0x112] sm:$0xff]
      %v901 = vld [vmem:[#allocation3 + $0x122] sm:$0xff]
      %v902 = vld [vmem:[#allocation3 + $0x12a] sm:$0xff]
      %v903 = vld [vmem:[#allocation3 + $0x13a] sm:$0xff]
      %v904 = vld [vmem:[#allocation3 + $0x142] sm:$0xff]
      %vm905 = vcmp.ge.s32.totalorder %v758, 12
      %vm906 = vcmp.lt.s32.totalorder %v758, 18
      %vm907 = vmand %vm905, %vm906
      %v908 = vsel %vm907, %v877, %v849
      %v909 = vsel %vm907, %v878, %v850
      %v910 = vsel %vm907, %v879, %v851
      %v911 = vsel %vm907, %v880, %v852
      %v912 = vsel %vm907, %v881, %v853
      %v913 = vsel %vm907, %v882, %v854
      %v914 = vsel %vm907, %v883, %v855
      %v915 = vsel %vm907, %v884, %v856
      %v916 = vsel %vm907, %v885, %v857
      %v917 = vsel %vm907, %v886, %v858
      %v918 = vsel %vm907, %v887, %v859
      %v919 = vsel %vm907, %v888, %v860
      %v920 = vsel %vm907, %v889, %v861
      %v921 = vsel %vm907, %v890, %v862
      %v922 = vsel %vm907, %v891, %v863
      %v923 = vsel %vm907, %v892, %v864
      %v924 = vsel %vm907, %v893, %v865
      %v925 = vsel %vm907, %v894, %v866
      %v926 = vsel %vm907, %v895, %v867
      %v927 = vsel %vm907, %v896, %v868
      %v928 = vsel %vm907, %v897, %v869
      %v929 = vsel %vm907, %v898, %v870
      %v930 = vsel %vm907, %v899, %v871
      %v931 = vsel %vm907, %v900, %v872
      %v932 = vsel %vm907, %v901, %v873
      %v933 = vsel %vm907, %v902, %v874
      %v934 = vsel %vm907, %v903, %v875
      %v935 = vsel %vm907, %v904, %v876
      %v936 = vld [vmem:[#allocation3 + $0x3] sm:$0xff]
      %v937 = vld [vmem:[#allocation3 + $0xb] sm:$0xff]
      %v938 = vld [vmem:[#allocation3 + $0x1b] sm:$0xff]
      %v939 = vld [vmem:[#allocation3 + $0x23] sm:$0xff]
      %v940 = vld [vmem:[#allocation3 + $0x33] sm:$0xff]
      %v941 = vld [vmem:[#allocation3 + $0x3b] sm:$0xff]
      %v942 = vld [vmem:[#allocation3 + $0x4b] sm:$0xff]
      %v943 = vld [vmem:[#allocation3 + $0x53] sm:$0xff]
      %v944 = vld [vmem:[#allocation3 + $0x63] sm:$0xff]
      %v945 = vld [vmem:[#allocation3 + $0x6b] sm:$0xff]
      %v946 = vld [vmem:[#allocation3 + $0x7b] sm:$0xff]
      %v947 = vld [vmem:[#allocation3 + $0x83] sm:$0xff]
      %v948 = vld [vmem:[#allocation3 + $0x93] sm:$0xff]
      %v949 = vld [vmem:[#allocation3 + $0x9b] sm:$0xff]
      %v950 = vld [vmem:[#allocation3 + $0xab] sm:$0xff]
      %v951 = vld [vmem:[#allocation3 + $0xb3] sm:$0xff]
      %v952 = vld [vmem:[#allocation3 + $0xc3] sm:$0xff]
      %v953 = vld [vmem:[#allocation3 + $0xcb] sm:$0xff]
      %v954 = vld [vmem:[#allocation3 + $0xdb] sm:$0xff]
      %v955 = vld [vmem:[#allocation3 + $0xe3] sm:$0xff]
      %v956 = vld [vmem:[#allocation3 + $0xf3] sm:$0xff]
      %v957 = vld [vmem:[#allocation3 + $0xfb] sm:$0xff]
      %v958 = vld [vmem:[#allocation3 + $0x10b] sm:$0xff]
      %v959 = vld [vmem:[#allocation3 + $0x113] sm:$0xff]
      %v960 = vld [vmem:[#allocation3 + $0x123] sm:$0xff]
      %v961 = vld [vmem:[#allocation3 + $0x12b] sm:$0xff]
      %v962 = vld [vmem:[#allocation3 + $0x13b] sm:$0xff]
      %v963 = vld [vmem:[#allocation3 + $0x143] sm:$0xff]
      %vm964 = vcmp.ge.s32.totalorder %v758, 18
      %vm965 = vcmp.lt.s32.totalorder %v758, 24
      %vm966 = vmand %vm964, %vm965
      %v967 = vsel %vm966, %v936, %v908
      %v968 = vsel %vm966, %v937, %v909
      %v969 = vsel %vm966, %v938, %v910
      %v970 = vsel %vm966, %v939, %v911
      %v971 = vsel %vm966, %v940, %v912
      %v972 = vsel %vm966, %v941, %v913
      %v973 = vsel %vm966, %v942, %v914
      %v974 = vsel %vm966, %v943, %v915
      %v975 = vsel %vm966, %v944, %v916
      %v976 = vsel %vm966, %v945, %v917
      %v977 = vsel %vm966, %v946, %v918
      %v978 = vsel %vm966, %v947, %v919
      %v979 = vsel %vm966, %v948, %v920
      %v980 = vsel %vm966, %v949, %v921
      %v981 = vsel %vm966, %v950, %v922
      %v982 = vsel %vm966, %v951, %v923
      %v983 = vsel %vm966, %v952, %v924
      %v984 = vsel %vm966, %v953, %v925
      %v985 = vsel %vm966, %v954, %v926
      %v986 = vsel %vm966, %v955, %v927
      %v987 = vsel %vm966, %v956, %v928
      %v988 = vsel %vm966, %v957, %v929
      %v989 = vsel %vm966, %v958, %v930
      %v990 = vsel %vm966, %v959, %v931
      %v991 = vsel %vm966, %v960, %v932
      %v992 = vsel %vm966, %v961, %v933
      %v993 = vsel %vm966, %v962, %v934
      %v994 = vsel %vm966, %v963, %v935
      %v995 = vld [vmem:[#allocation3 + $0x4] sm:$0xff]
      %v996 = vld [vmem:[#allocation3 + $0xc] sm:$0xff]
      %v997 = vld [vmem:[#allocation3 + $0x1c] sm:$0xff]
      %v998 = vld [vmem:[#allocation3 + $0x24] sm:$0xff]
      %v999 = vld [vmem:[#allocation3 + $0x34] sm:$0xff]
      %v1000 = vld [vmem:[#allocation3 + $0x3c] sm:$0xff]
      %v1001 = vld [vmem:[#allocation3 + $0x4c] sm:$0xff]
      %v1002 = vld [vmem:[#allocation3 + $0x54] sm:$0xff]
      %v1003 = vld [vmem:[#allocation3 + $0x64] sm:$0xff]
      %v1004 = vld [vmem:[#allocation3 + $0x6c] sm:$0xff]
      %v1005 = vld [vmem:[#allocation3 + $0x7c] sm:$0xff]
      %v1006 = vld [vmem:[#allocation3 + $0x84] sm:$0xff]
      %v1007 = vld [vmem:[#allocation3 + $0x94] sm:$0xff]
      %v1008 = vld [vmem:[#allocation3 + $0x9c] sm:$0xff]
      %v1009 = vld [vmem:[#allocation3 + $0xac] sm:$0xff]
      %v1010 = vld [vmem:[#allocation3 + $0xb4] sm:$0xff]
      %v1011 = vld [vmem:[#allocation3 + $0xc4] sm:$0xff]
      %v1012 = vld [vmem:[#allocation3 + $0xcc] sm:$0xff]
      %v1013 = vld [vmem:[#allocation3 + $0xdc] sm:$0xff]
      %v1014 = vld [vmem:[#allocation3 + $0xe4] sm:$0xff]
      %v1015 = vld [vmem:[#allocation3 + $0xf4] sm:$0xff]
      %v1016 = vld [vmem:[#allocation3 + $0xfc] sm:$0xff]
      %v1017 = vld [vmem:[#allocation3 + $0x10c] sm:$0xff]
      %v1018 = vld [vmem:[#allocation3 + $0x114] sm:$0xff]
      %v1019 = vld [vmem:[#allocation3 + $0x124] sm:$0xff]
      %v1020 = vld [vmem:[#allocation3 + $0x12c] sm:$0xff]
      %v1021 = vld [vmem:[#allocation3 + $0x13c] sm:$0xff]
      %v1022 = vld [vmem:[#allocation3 + $0x144] sm:$0xff]
      %vm1023 = vcmp.ge.s32.totalorder %v758, 24
      %vm1024 = vcmp.lt.s32.totalorder %v758, 30
      %vm1025 = vmand %vm1023, %vm1024
      %v1026 = vsel %vm1025, %v995, %v967
      %v1027 = vsel %vm1025, %v996, %v968
      %v1028 = vsel %vm1025, %v997, %v969
      %v1029 = vsel %vm1025, %v998, %v970
      %v1030 = vsel %vm1025, %v999, %v971
      %v1031 = vsel %vm1025, %v1000, %v972
      %v1032 = vsel %vm1025, %v1001, %v973
      %v1033 = vsel %vm1025, %v1002, %v974
      %v1034 = vsel %vm1025, %v1003, %v975
      %v1035 = vsel %vm1025, %v1004, %v976
      %v1036 = vsel %vm1025, %v1005, %v977
      %v1037 = vsel %vm1025, %v1006, %v978
      %v1038 = vsel %vm1025, %v1007, %v979
      %v1039 = vsel %vm1025, %v1008, %v980
      %v1040 = vsel %vm1025, %v1009, %v981
      %v1041 = vsel %vm1025, %v1010, %v982
      %v1042 = vsel %vm1025, %v1011, %v983
      %v1043 = vsel %vm1025, %v1012, %v984
      %v1044 = vsel %vm1025, %v1013, %v985
      %v1045 = vsel %vm1025, %v1014, %v986
      %v1046 = vsel %vm1025, %v1015, %v987
      %v1047 = vsel %vm1025, %v1016, %v988
      %v1048 = vsel %vm1025, %v1017, %v989
      %v1049 = vsel %vm1025, %v1018, %v990
      %v1050 = vsel %vm1025, %v1019, %v991
      %v1051 = vsel %vm1025, %v1020, %v992
      %v1052 = vsel %vm1025, %v1021, %v993
      %v1053 = vsel %vm1025, %v1022, %v994
      %v1054 = vpack.c.bf16 %v1027, %v1026
      %v1055 = vpack.c.bf16 %v1029, %v1028
      %v1056 = vpack.c.bf16 %v1031, %v1030
      %v1057 = vpack.c.bf16 %v1033, %v1032
      %v1058 = vpack.c.bf16 %v1035, %v1034
      %v1059 = vpack.c.bf16 %v1037, %v1036
      %v1060 = vpack.c.bf16 %v1039, %v1038
      %v1061 = vpack.c.bf16 %v1041, %v1040
      %v1062 = vpack.c.bf16 %v1043, %v1042
      %v1063 = vpack.c.bf16 %v1045, %v1044
      %v1064 = vpack.c.bf16 %v1047, %v1046
      %v1065 = vpack.c.bf16 %v1049, %v1048
      %v1066 = vpack.c.bf16 %v1051, %v1050
      %v1067 = vpack.c.bf16 %v1053, %v1052
      %v1068 = vld [vmem:[%s3] sm:$0xf]
      %v1069 = vld [vmem:[%s3 + $0x4] sm:$0xf]
      %v1070 = vld [vmem:[%s3 + $0x8] sm:$0xf]
      %v1071 = vld [vmem:[%s3 + $0xc] sm:$0xf]
      %v1072 = vld [vmem:[%s3 + $0x10] sm:$0xf]
      %v1073 = vld [vmem:[%s3 + $0x14] sm:$0xf]
      %v1074 = vld [vmem:[%s3 + $0x18] sm:$0xf]
      %v1075 = vld [vmem:[%s3 + $0x1c] sm:$0xf]
      %v1076 = vld [vmem:[%s3 + $0x20] sm:$0xf]
      %v1077 = vld [vmem:[%s3 + $0x24] sm:$0xf]
      %v1078 = vld [vmem:[%s3 + $0x28] sm:$0xf]
      %v1079 = vld [vmem:[%s3 + $0x2c] sm:$0xf]
      %v1080 = vld [vmem:[%s3 + $0x30] sm:$0xf]
      %v1081 = vld [vmem:[%s3 + $0x34] sm:$0xf]
      %v1082 = vld [vmem:[%s3 + $0x38] sm:$0xf]
      %v1083 = vld [vmem:[%s3 + $0x3c] sm:$0xf]
      %s1084 = scalar_lea.vmem %s3, 64
      %v1085 = vld [vmem:[%s1084] sm:$0xf]
      %v1086 = vld [vmem:[%s1084 + $0x4] sm:$0xf]
      %v1087 = vld [vmem:[%s1084 + $0x8] sm:$0xf]
      %v1088 = vld [vmem:[%s1084 + $0xc] sm:$0xf]
      %v1089 = vld [vmem:[%s1084 + $0x10] sm:$0xf]
      %v1090 = vld [vmem:[%s1084 + $0x14] sm:$0xf]
      %v1091 = vld [vmem:[%s1084 + $0x18] sm:$0xf]
      %v1092 = vld [vmem:[%s1084 + $0x1c] sm:$0xf]
      %v1093 = vld [vmem:[%s1084 + $0x20] sm:$0xf]
      %v1094 = vld [vmem:[%s1084 + $0x24] sm:$0xf]
      %v1095 = vld [vmem:[%s1084 + $0x28] sm:$0xf]
      %v1096 = vld [vmem:[%s1084 + $0x2c] sm:$0xf]
      %v1097 = vld [vmem:[%s1084 + $0x30] sm:$0xf]
      %v1098 = vld [vmem:[%s1084 + $0x34] sm:$0xf]
      %v1099 = vld [vmem:[%s1084 + $0x38] sm:$0xf]
      %v1100 = vld [vmem:[%s1084 + $0x3c] sm:$0xf]
      %v1117 = vunpack.c.l.b16 %v1085
      %v1118 = vunpack.c.l.b16 %v1086
      %v1119 = vunpack.c.l.b16 %v1087
      %v1120 = vunpack.c.l.b16 %v1088
      %v1121 = vunpack.c.l.b16 %v1089
      %v1122 = vunpack.c.l.b16 %v1090
      %v1123 = vunpack.c.l.b16 %v1091
      %v1124 = vunpack.c.l.b16 %v1092
      %v1125 = vunpack.c.l.b16 %v1093
      %v1126 = vunpack.c.l.b16 %v1094
      %v1127 = vunpack.c.l.b16 %v1095
      %v1128 = vunpack.c.l.b16 %v1096
      %v1129 = vunpack.c.l.b16 %v1097
      %v1130 = vunpack.c.l.b16 %v1098
      %v1131 = vunpack.c.l.b16 %v1099
      %v1132 = vunpack.c.l.b16 %v1100
      %v1133 = vpack.c.b16 %v1118, %v1117
      %v1134 = vpack.c.b16 %v1120, %v1119
      %v1135 = vpack.c.b16 %v1122, %v1121
      %v1136 = vpack.c.b16 %v1124, %v1123
      %v1137 = vpack.c.b16 %v1126, %v1125
      %v1138 = vpack.c.b16 %v1128, %v1127
      %v1139 = vpack.c.b16 %v1130, %v1129
      %v1140 = vpack.c.b16 %v1132, %v1131
      %1149 = vmatprep.subr.bf16.mxu0 0
      %1150 = vmatpush1.bf16.msra.mxu0 %v1133
      %1151 = vmatprep.subr.bf16.mxu0 0
      %1152 = vmatpush1.bf16.msra.mxu0 %v1134
      %1153 = vmatprep.subr.bf16.mxu0 0
      %1154 = vmatpush1.bf16.msra.mxu0 %v1135
      %1155 = vmatprep.subr.bf16.mxu0 0
      %1156 = vmatpush1.bf16.msra.mxu0 %v1136
      %1157 = vmatprep.subr.bf16.mxu0 0
      %1158 = vmatpush1.bf16.msra.mxu0 %v1137
      %1159 = vmatprep.subr.bf16.mxu0 0
      %1160 = vmatpush1.bf16.msra.mxu0 %v1138
      %1161 = vmatprep.subr.bf16.mxu0 0
      %1162 = vmatpush1.bf16.msra.mxu0 %v1139
      %1163 = vmatprep.subr.bf16.mxu0 0
      %1164 = vmatpush1.bf16.msra.mxu0 %v1140
      %1165 = vmatprep.subr.bf16.mxu0 0
      %1166 = vmatpush1.bf16.msra.mxu0 0
      %1167 = vmatprep.subr.bf16.mxu0 0
      %1168 = vmatpush1.bf16.msra.mxu0 0
      %1169 = vmatprep.subr.bf16.mxu0 0
      %1170 = vmatpush1.bf16.msra.mxu0 0
      %1171 = vmatprep.subr.bf16.mxu0 0
      %1172 = vmatpush1.bf16.msra.mxu0 0
      %1173 = vmatprep.subr.bf16.mxu0 0
      %1174 = vmatpush1.bf16.msra.mxu0 0
      %1175 = vmatprep.subr.bf16.mxu0 0
      %1176 = vmatpush1.bf16.msra.mxu0 0
      %1177 = vmatprep.subr.bf16.mxu0 0
      %1178 = vmatpush1.bf16.msra.mxu0 0
      %1179 = vmatprep.subr.bf16.mxu0 0
      %1180 = vmatpush1.bf16.msra.mxu0 0
      %1181 = vmatprep.mubr.bf16.mxu0 0
      %1182 = vmatmul.mubr.bf16.gmra.mrb[0].mxu0 %v1055
      %v1183 = vpop.f32.mrb[0].mxu0
      %v1184 = vadd.f32 0.0, %v1183
      %v1185 = vpop.f32.mrb[0].mxu0
      %v1186 = vpop.f32.mrb[0].mxu0
      %v1187 = vadd.f32 0.0, %v1186
      %v1188 = vpop.f32.mrb[0].mxu0
      %1189 = vmatprep.mubr.bf16.mxu0 0
      %1190 = vmatmul.mubr.bf16.gmra.mrb[0].mxu0 %v1056
      %v1191 = vpop.f32.mrb[0].mxu0
      %v1192 = vadd.f32 0.0, %v1191
      %v1193 = vpop.f32.mrb[0].mxu0
      %v1194 = vpop.f32.mrb[0].mxu0
      %v1195 = vadd.f32 0.0, %v1194
      %v1196 = vpop.f32.mrb[0].mxu0
      %1197 = vmatprep.mubr.bf16.mxu0 0
      %1198 = vmatmul.mubr.bf16.gmra.mrb[0].mxu0 %v1057
      %v1199 = vpop.f32.mrb[0].mxu0
      %v1200 = vadd.f32 0.0, %v1199
      %v1201 = vpop.f32.mrb[0].mxu0
      %v1202 = vpop.f32.mrb[0].mxu0
      %v1203 = vadd.f32 0.0, %v1202
      %v1204 = vpop.f32.mrb[0].mxu0
      %1205 = vmatprep.mubr.bf16.mxu0 0
      %1206 = vmatmul.mubr.bf16.gmra.mrb[0].mxu0 %v1058
      %v1207 = vpop.f32.mrb[0].mxu0
      %v1208 = vadd.f32 0.0, %v1207
      %v1209 = vpop.f32.mrb[0].mxu0
      %v1210 = vpop.f32.mrb[0].mxu0
      %v1211 = vadd.f32 0.0, %v1210
      %v1212 = vpop.f32.mrb[0].mxu0
      %1213 = vmatprep.mubr.bf16.mxu0 0
      %1214 = vmatmul.mubr.bf16.gmra.mrb[0].mxu0 %v1059
      %v1215 = vpop.f32.mrb[0].mxu0
      %v1216 = vadd.f32 0.0, %v1215
      %v1217 = vpop.f32.mrb[0].mxu0
      %v1218 = vpop.f32.mrb[0].mxu0
      %v1219 = vadd.f32 0.0, %v1218
      %v1220 = vpop.f32.mrb[0].mxu0
      %1221 = vmatprep.mubr.bf16.mxu0 0
      %1222 = vmatmul.mubr.bf16.gmra.mrb[0].mxu0 %v1060
      %v1223 = vpop.f32.mrb[0].mxu0
      %v1224 = vadd.f32 0.0, %v1223
      %v1225 = vpop.f32.mrb[0].mxu0
      %v1226 = vpop.f32.mrb[0].mxu0
      %v1227 = vadd.f32 0.0, %v1226
      %v1228 = vpop.f32.mrb[0].mxu0
      %1229 = vmatprep.mubr.bf16.mxu0 0
      %1230 = vmatmul.mubr.bf16.gmra.mrb[0].mxu0 %v1061
      %v1231 = vpop.f32.mrb[0].mxu0
      %v1232 = vadd.f32 0.0, %v1231
      %v1233 = vpop.f32.mrb[0].mxu0
      %v1234 = vpop.f32.mrb[0].mxu0
      %v1235 = vadd.f32 0.0, %v1234
      %v1236 = vpop.f32.mrb[0].mxu0
      %1237 = vmatprep.mubr.bf16.mxu0 0
      %1238 = vmatmul.mubr.bf16.gmra.mrb[0].mxu0 %v1062
      %v1239 = vpop.f32.mrb[0].mxu0
      %v1240 = vadd.f32 0.0, %v1239
      %v1241 = vpop.f32.mrb[0].mxu0
      %v1242 = vpop.f32.mrb[0].mxu0
      %v1243 = vadd.f32 0.0, %v1242
      %v1244 = vpop.f32.mrb[0].mxu0
      %1245 = vmatprep.mubr.bf16.mxu0 0
      %1246 = vmatmul.mubr.bf16.gmra.mrb[0].mxu0 %v1063
      %v1247 = vpop.f32.mrb[0].mxu0
      %v1248 = vadd.f32 0.0, %v1247
      %v1249 = vpop.f32.mrb[0].mxu0
      %v1250 = vpop.f32.mrb[0].mxu0
      %v1251 = vadd.f32 0.0, %v1250
      %v1252 = vpop.f32.mrb[0].mxu0
      %1253 = vmatprep.mubr.bf16.mxu0 0
      %1254 = vmatmul.mubr.bf16.gmra.mrb[0].mxu0 %v1064
      %v1255 = vpop.f32.mrb[0].mxu0
      %v1256 = vadd.f32 0.0, %v1255
      %v1257 = vpop.f32.mrb[0].mxu0
      %v1258 = vpop.f32.mrb[0].mxu0
      %v1259 = vadd.f32 0.0, %v1258
      %v1260 = vpop.f32.mrb[0].mxu0
      %1261 = vdwg.mxu0
      %v1278 = vunpack.c.l.b16 %v1068
      %v1279 = vunpack.c.l.b16 %v1069
      %v1280 = vunpack.c.l.b16 %v1070
      %v1281 = vunpack.c.l.b16 %v1071
      %v1282 = vunpack.c.l.b16 %v1072
      %v1283 = vunpack.c.l.b16 %v1073
      %v1284 = vunpack.c.l.b16 %v1074
      %v1285 = vunpack.c.l.b16 %v1075
      %v1286 = vunpack.c.l.b16 %v1076
      %v1287 = vunpack.c.l.b16 %v1077
      %v1288 = vunpack.c.l.b16 %v1078
      %v1289 = vunpack.c.l.b16 %v1079
      %v1290 = vunpack.c.l.b16 %v1080
      %v1291 = vunpack.c.l.b16 %v1081
      %v1292 = vunpack.c.l.b16 %v1082
      %v1293 = vunpack.c.l.b16 %v1083
      %v1294 = vpack.c.b16 %v1279, %v1278
      %v1295 = vpack.c.b16 %v1281, %v1280
      %v1296 = vpack.c.b16 %v1283, %v1282
      %v1297 = vpack.c.b16 %v1285, %v1284
      %v1298 = vpack.c.b16 %v1287, %v1286
      %v1299 = vpack.c.b16 %v1289, %v1288
      %v1300 = vpack.c.b16 %v1291, %v1290
      %v1301 = vpack.c.b16 %v1293, %v1292
      %1310 = vmatprep.subr.bf16.mxu0 0
      %1311 = vmatpush1.bf16.msra.mxu0 %v1294
      %1312 = vmatprep.subr.bf16.mxu0 0
      %1313 = vmatpush1.bf16.msra.mxu0 %v1295
      %1314 = vmatprep.subr.bf16.mxu0 0
      %1315 = vmatpush1.bf16.msra.mxu0 %v1296
      %1316 = vmatprep.subr.bf16.mxu0 0
      %1317 = vmatpush1.bf16.msra.mxu0 %v1297
      %1318 = vmatprep.subr.bf16.mxu0 0
      %1319 = vmatpush1.bf16.msra.mxu0 %v1298
      %1320 = vmatprep.subr.bf16.mxu0 0
      %1321 = vmatpush1.bf16.msra.mxu0 %v1299
      %1322 = vmatprep.subr.bf16.mxu0 0
      %1323 = vmatpush1.bf16.msra.mxu0 %v1300
      %1324 = vmatprep.subr.bf16.mxu0 0
      %1325 = vmatpush1.bf16.msra.mxu0 %v1301
      %1326 = vmatprep.subr.bf16.mxu0 0
      %1327 = vmatpush1.bf16.msra.mxu0 0
      %1328 = vmatprep.subr.bf16.mxu0 0
      %1329 = vmatpush1.bf16.msra.mxu0 0
      %1330 = vmatprep.subr.bf16.mxu0 0
      %1331 = vmatpush1.bf16.msra.mxu0 0
      %1332 = vmatprep.subr.bf16.mxu0 0
      %1333 = vmatpush1.bf16.msra.mxu0 0
      %1334 = vmatprep.subr.bf16.mxu0 0
      %1335 = vmatpush1.bf16.msra.mxu0 0
      %1336 = vmatprep.subr.bf16.mxu0 0
      %1337 = vmatpush1.bf16.msra.mxu0 0
      %1338 = vmatprep.subr.bf16.mxu0 0
      %1339 = vmatpush1.bf16.msra.mxu0 0
      %1340 = vmatprep.subr.bf16.mxu0 0
      %1341 = vmatpush1.bf16.msra.mxu0 0
      %1342 = vmatprep.mubr.bf16.mxu0 0
      %1343 = vmatmul.mubr.bf16.gmra.mrb[0].mxu0 %v1054
      %v1344 = vpop.f32.mrb[0].mxu0
      %v1345 = vadd.f32 %v1184, %v1344
      %v1346 = vpop.f32.mrb[0].mxu0
      %v1347 = vpop.f32.mrb[0].mxu0
      %v1348 = vadd.f32 %v1187, %v1347
      %v1349 = vpop.f32.mrb[0].mxu0
      %1350 = vmatprep.mubr.bf16.mxu0 0
      %1351 = vmatmul.mubr.bf16.gmra.mrb[0].mxu0 %v1055
      %v1352 = vpop.f32.mrb[0].mxu0
      %v1353 = vadd.f32 %v1192, %v1352
      %v1354 = vpop.f32.mrb[0].mxu0
      %v1355 = vpop.f32.mrb[0].mxu0
      %v1356 = vadd.f32 %v1195, %v1355
      %v1357 = vpop.f32.mrb[0].mxu0
      %1358 = vmatprep.mubr.bf16.mxu0 0
      %1359 = vmatmul.mubr.bf16.gmra.mrb[0].mxu0 %v1056
      %v1360 = vpop.f32.mrb[0].mxu0
      %v1361 = vadd.f32 %v1200, %v1360
      %v1362 = vpop.f32.mrb[0].mxu0
      %v1363 = vpop.f32.mrb[0].mxu0
      %v1364 = vadd.f32 %v1203, %v1363
      %v1365 = vpop.f32.mrb[0].mxu0
      %1366 = vmatprep.mubr.bf16.mxu0 0
      %1367 = vmatmul.mubr.bf16.gmra.mrb[0].mxu0 %v1057
      %v1368 = vpop.f32.mrb[0].mxu0
      %v1369 = vadd.f32 %v1208, %v1368
      %v1370 = vpop.f32.mrb[0].mxu0
      %v1371 = vpop.f32.mrb[0].mxu0
      %v1372 = vadd.f32 %v1211, %v1371
      %v1373 = vpop.f32.mrb[0].mxu0
      %1374 = vmatprep.mubr.bf16.mxu0 0
      %1375 = vmatmul.mubr.bf16.gmra.mrb[0].mxu0 %v1058
      %v1376 = vpop.f32.mrb[0].mxu0
      %v1377 = vadd.f32 %v1216, %v1376
      %v1378 = vpop.f32.mrb[0].mxu0
      %v1379 = vpop.f32.mrb[0].mxu0
      %v1380 = vadd.f32 %v1219, %v1379
      %v1381 = vpop.f32.mrb[0].mxu0
      %1382 = vmatprep.mubr.bf16.mxu0 0
      %1383 = vmatmul.mubr.bf16.gmra.mrb[0].mxu0 %v1059
      %v1384 = vpop.f32.mrb[0].mxu0
      %v1385 = vadd.f32 %v1224, %v1384
      %v1386 = vpop.f32.mrb[0].mxu0
      %v1387 = vpop.f32.mrb[0].mxu0
      %v1388 = vadd.f32 %v1227, %v1387
      %v1389 = vpop.f32.mrb[0].mxu0
      %1390 = vmatprep.mubr.bf16.mxu0 0
      %1391 = vmatmul.mubr.bf16.gmra.mrb[0].mxu0 %v1060
      %v1392 = vpop.f32.mrb[0].mxu0
      %v1393 = vadd.f32 %v1232, %v1392
      %v1394 = vpop.f32.mrb[0].mxu0
      %v1395 = vpop.f32.mrb[0].mxu0
      %v1396 = vadd.f32 %v1235, %v1395
      %v1397 = vpop.f32.mrb[0].mxu0
      %1398 = vmatprep.mubr.bf16.mxu0 0
      %1399 = vmatmul.mubr.bf16.gmra.mrb[0].mxu0 %v1061
      %v1400 = vpop.f32.mrb[0].mxu0
      %v1401 = vadd.f32 %v1240, %v1400
      %v1402 = vpop.f32.mrb[0].mxu0
      %v1403 = vpop.f32.mrb[0].mxu0
      %v1404 = vadd.f32 %v1243, %v1403
      %v1405 = vpop.f32.mrb[0].mxu0
      %1406 = vmatprep.mubr.bf16.mxu0 0
      %1407 = vmatmul.mubr.bf16.gmra.mrb[0].mxu0 %v1062
      %v1408 = vpop.f32.mrb[0].mxu0
      %v1409 = vadd.f32 %v1248, %v1408
      %v1410 = vpop.f32.mrb[0].mxu0
      %v1411 = vpop.f32.mrb[0].mxu0
      %v1412 = vadd.f32 %v1251, %v1411
      %v1413 = vpop.f32.mrb[0].mxu0
      %1414 = vmatprep.mubr.bf16.mxu0 0
      %1415 = vmatmul.mubr.bf16.gmra.mrb[0].mxu0 %v1063
      %v1416 = vpop.f32.mrb[0].mxu0
      %v1417 = vadd.f32 %v1256, %v1416
      %v1418 = vpop.f32.mrb[0].mxu0
      %v1419 = vpop.f32.mrb[0].mxu0
      %v1420 = vadd.f32 %v1259, %v1419
      %v1421 = vpop.f32.mrb[0].mxu0
      %1422 = vdwg.mxu0
      %s1423 = scalar_lea.vmem %s3, 128
      %v1424 = vld [vmem:[%s1423] sm:$0xf]
      %v1425 = vld [vmem:[%s1423 + $0x4] sm:$0xf]
      %v1426 = vld [vmem:[%s1423 + $0x8] sm:$0xf]
      %v1427 = vld [vmem:[%s1423 + $0xc] sm:$0xf]
      %v1428 = vld [vmem:[%s1423 + $0x10] sm:$0xf]
      %v1429 = vld [vmem:[%s1423 + $0x14] sm:$0xf]
      %v1430 = vld [vmem:[%s1423 + $0x18] sm:$0xf]
      %v1431 = vld [vmem:[%s1423 + $0x1c] sm:$0xf]
      %v1432 = vld [vmem:[%s1423 + $0x20] sm:$0xf]
      %v1433 = vld [vmem:[%s1423 + $0x24] sm:$0xf]
      %v1434 = vld [vmem:[%s1423 + $0x28] sm:$0xf]
      %v1435 = vld [vmem:[%s1423 + $0x2c] sm:$0xf]
      %v1436 = vld [vmem:[%s1423 + $0x30] sm:$0xf]
      %v1437 = vld [vmem:[%s1423 + $0x34] sm:$0xf]
      %v1438 = vld [vmem:[%s1423 + $0x38] sm:$0xf]
      %v1439 = vld [vmem:[%s1423 + $0x3c] sm:$0xf]
      %v1456 = vunpack.c.l.b16 %v1424
      %v1457 = vunpack.c.l.b16 %v1425
      %v1458 = vunpack.c.l.b16 %v1426
      %v1459 = vunpack.c.l.b16 %v1427
      %v1460 = vunpack.c.l.b16 %v1428
      %v1461 = vunpack.c.l.b16 %v1429
      %v1462 = vunpack.c.l.b16 %v1430
      %v1463 = vunpack.c.l.b16 %v1431
      %v1464 = vunpack.c.l.b16 %v1432
      %v1465 = vunpack.c.l.b16 %v1433
      %v1466 = vunpack.c.l.b16 %v1434
      %v1467 = vunpack.c.l.b16 %v1435
      %v1468 = vunpack.c.l.b16 %v1436
      %v1469 = vunpack.c.l.b16 %v1437
      %v1470 = vunpack.c.l.b16 %v1438
      %v1471 = vunpack.c.l.b16 %v1439
      %v1472 = vpack.c.b16 %v1457, %v1456
      %v1473 = vpack.c.b16 %v1459, %v1458
      %v1474 = vpack.c.b16 %v1461, %v1460
      %v1475 = vpack.c.b16 %v1463, %v1462
      %v1476 = vpack.c.b16 %v1465, %v1464
      %v1477 = vpack.c.b16 %v1467, %v1466
      %v1478 = vpack.c.b16 %v1469, %v1468
      %v1479 = vpack.c.b16 %v1471, %v1470
      %1488 = vmatprep.subr.bf16.mxu0 0
      %1489 = vmatpush1.bf16.msra.mxu0 %v1472
      %1490 = vmatprep.subr.bf16.mxu0 0
      %1491 = vmatpush1.bf16.msra.mxu0 %v1473
      %1492 = vmatprep.subr.bf16.mxu0 0
      %1493 = vmatpush1.bf16.msra.mxu0 %v1474
      %1494 = vmatprep.subr.bf16.mxu0 0
      %1495 = vmatpush1.bf16.msra.mxu0 %v1475
      %1496 = vmatprep.subr.bf16.mxu0 0
      %1497 = vmatpush1.bf16.msra.mxu0 %v1476
      %1498 = vmatprep.subr.bf16.mxu0 0
      %1499 = vmatpush1.bf16.msra.mxu0 %v1477
      %1500 = vmatprep.subr.bf16.mxu0 0
      %1501 = vmatpush1.bf16.msra.mxu0 %v1478
      %1502 = vmatprep.subr.bf16.mxu0 0
      %1503 = vmatpush1.bf16.msra.mxu0 %v1479
      %1504 = vmatprep.subr.bf16.mxu0 0
      %1505 = vmatpush1.bf16.msra.mxu0 0
      %1506 = vmatprep.subr.bf16.mxu0 0
      %1507 = vmatpush1.bf16.msra.mxu0 0
      %1508 = vmatprep.subr.bf16.mxu0 0
      %1509 = vmatpush1.bf16.msra.mxu0 0
      %1510 = vmatprep.subr.bf16.mxu0 0
      %1511 = vmatpush1.bf16.msra.mxu0 0
      %1512 = vmatprep.subr.bf16.mxu0 0
      %1513 = vmatpush1.bf16.msra.mxu0 0
      %1514 = vmatprep.subr.bf16.mxu0 0
      %1515 = vmatpush1.bf16.msra.mxu0 0
      %1516 = vmatprep.subr.bf16.mxu0 0
      %1517 = vmatpush1.bf16.msra.mxu0 0
      %1518 = vmatprep.subr.bf16.mxu0 0
      %1519 = vmatpush1.bf16.msra.mxu0 0
      %1520 = vmatprep.mubr.bf16.mxu0 0
      %1521 = vmatmul.mubr.bf16.gmra.mrb[0].mxu0 %v1056
      %v1522 = vpop.f32.mrb[0].mxu0
      %v1523 = vadd.f32 0.0, %v1522
      %v1524 = vpop.f32.mrb[0].mxu0
      %v1525 = vpop.f32.mrb[0].mxu0
      %v1526 = vadd.f32 0.0, %v1525
      %v1527 = vpop.f32.mrb[0].mxu0
      %1528 = vmatprep.mubr.bf16.mxu0 0
      %1529 = vmatmul.mubr.bf16.gmra.mrb[0].mxu0 %v1057
      %v1530 = vpop.f32.mrb[0].mxu0
      %v1531 = vadd.f32 0.0, %v1530
      %v1532 = vpop.f32.mrb[0].mxu0
      %v1533 = vpop.f32.mrb[0].mxu0
      %v1534 = vadd.f32 0.0, %v1533
      %v1535 = vpop.f32.mrb[0].mxu0
      %1536 = vmatprep.mubr.bf16.mxu0 0
      %1537 = vmatmul.mubr.bf16.gmra.mrb[0].mxu0 %v1058
      %v1538 = vpop.f32.mrb[0].mxu0
      %v1539 = vadd.f32 0.0, %v1538
      %v1540 = vpop.f32.mrb[0].mxu0
      %v1541 = vpop.f32.mrb[0].mxu0
      %v1542 = vadd.f32 0.0, %v1541
      %v1543 = vpop.f32.mrb[0].mxu0
      %1544 = vmatprep.mubr.bf16.mxu0 0
      %1545 = vmatmul.mubr.bf16.gmra.mrb[0].mxu0 %v1059
      %v1546 = vpop.f32.mrb[0].mxu0
      %v1547 = vadd.f32 0.0, %v1546
      %v1548 = vpop.f32.mrb[0].mxu0
      %v1549 = vpop.f32.mrb[0].mxu0
      %v1550 = vadd.f32 0.0, %v1549
      %v1551 = vpop.f32.mrb[0].mxu0
      %1552 = vmatprep.mubr.bf16.mxu0 0
      %1553 = vmatmul.mubr.bf16.gmra.mrb[0].mxu0 %v1060
      %v1554 = vpop.f32.mrb[0].mxu0
      %v1555 = vadd.f32 0.0, %v1554
      %v1556 = vpop.f32.mrb[0].mxu0
      %v1557 = vpop.f32.mrb[0].mxu0
      %v1558 = vadd.f32 0.0, %v1557
      %v1559 = vpop.f32.mrb[0].mxu0
      %1560 = vmatprep.mubr.bf16.mxu0 0
      %1561 = vmatmul.mubr.bf16.gmra.mrb[0].mxu0 %v1061
      %v1562 = vpop.f32.mrb[0].mxu0
      %v1563 = vadd.f32 0.0, %v1562
      %v1564 = vpop.f32.mrb[0].mxu0
      %v1565 = vpop.f32.mrb[0].mxu0
      %v1566 = vadd.f32 0.0, %v1565
      %v1567 = vpop.f32.mrb[0].mxu0
      %1568 = vmatprep.mubr.bf16.mxu0 0
      %1569 = vmatmul.mubr.bf16.gmra.mrb[0].mxu0 %v1062
      %v1570 = vpop.f32.mrb[0].mxu0
      %v1571 = vadd.f32 0.0, %v1570
      %v1572 = vpop.f32.mrb[0].mxu0
      %v1573 = vpop.f32.mrb[0].mxu0
      %v1574 = vadd.f32 0.0, %v1573
      %v1575 = vpop.f32.mrb[0].mxu0
      %1576 = vmatprep.mubr.bf16.mxu0 0
      %1577 = vmatmul.mubr.bf16.gmra.mrb[0].mxu0 %v1063
      %v1578 = vpop.f32.mrb[0].mxu0
      %v1579 = vadd.f32 0.0, %v1578
      %v1580 = vpop.f32.mrb[0].mxu0
      %v1581 = vpop.f32.mrb[0].mxu0
      %v1582 = vadd.f32 0.0, %v1581
      %v1583 = vpop.f32.mrb[0].mxu0
      %1584 = vmatprep.mubr.bf16.mxu0 0
      %1585 = vmatmul.mubr.bf16.gmra.mrb[0].mxu0 %v1064
      %v1586 = vpop.f32.mrb[0].mxu0
      %v1587 = vadd.f32 0.0, %v1586
      %v1588 = vpop.f32.mrb[0].mxu0
      %v1589 = vpop.f32.mrb[0].mxu0
      %v1590 = vadd.f32 0.0, %v1589
      %v1591 = vpop.f32.mrb[0].mxu0
      %1592 = vmatprep.mubr.bf16.mxu0 0
      %1593 = vmatmul.mubr.bf16.gmra.mrb[0].mxu0 %v1065
      %v1594 = vpop.f32.mrb[0].mxu0
      %v1595 = vadd.f32 0.0, %v1594
      %v1596 = vpop.f32.mrb[0].mxu0
      %v1597 = vpop.f32.mrb[0].mxu0
      %v1598 = vadd.f32 0.0, %v1597
      %v1599 = vpop.f32.mrb[0].mxu0
      %1600 = vdwg.mxu0
      %v1601 = vadd.f32 %v1345, %v1523
      %v1602 = vadd.f32 %v1348, %v1526
      %v1603 = vadd.f32 %v1353, %v1531
      %v1604 = vadd.f32 %v1356, %v1534
      %v1605 = vadd.f32 %v1361, %v1539
      %v1606 = vadd.f32 %v1364, %v1542
      %v1607 = vadd.f32 %v1369, %v1547
      %v1608 = vadd.f32 %v1372, %v1550
      %v1609 = vadd.f32 %v1377, %v1555
      %v1610 = vadd.f32 %v1380, %v1558
      %v1611 = vadd.f32 %v1385, %v1563
      %v1612 = vadd.f32 %v1388, %v1566
      %v1613 = vadd.f32 %v1393, %v1571
      %v1614 = vadd.f32 %v1396, %v1574
      %v1615 = vadd.f32 %v1401, %v1579
      %v1616 = vadd.f32 %v1404, %v1582
      %v1617 = vadd.f32 %v1409, %v1587
      %v1618 = vadd.f32 %v1412, %v1590
      %v1619 = vadd.f32 %v1417, %v1595
      %v1620 = vadd.f32 %v1420, %v1598
      %s1621 = scalar_lea.vmem %s3, 192
      %v1622 = vld [vmem:[%s1621] sm:$0xf]
      %v1623 = vld [vmem:[%s1621 + $0x4] sm:$0xf]
      %v1624 = vld [vmem:[%s1621 + $0x8] sm:$0xf]
      %v1625 = vld [vmem:[%s1621 + $0xc] sm:$0xf]
      %v1626 = vld [vmem:[%s1621 + $0x10] sm:$0xf]
      %v1627 = vld [vmem:[%s1621 + $0x14] sm:$0xf]
      %v1628 = vld [vmem:[%s1621 + $0x18] sm:$0xf]
      %v1629 = vld [vmem:[%s1621 + $0x1c] sm:$0xf]
      %v1630 = vld [vmem:[%s1621 + $0x20] sm:$0xf]
      %v1631 = vld [vmem:[%s1621 + $0x24] sm:$0xf]
      %v1632 = vld [vmem:[%s1621 + $0x28] sm:$0xf]
      %v1633 = vld [vmem:[%s1621 + $0x2c] sm:$0xf]
      %v1634 = vld [vmem:[%s1621 + $0x30] sm:$0xf]
      %v1635 = vld [vmem:[%s1621 + $0x34] sm:$0xf]
      %v1636 = vld [vmem:[%s1621 + $0x38] sm:$0xf]
      %v1637 = vld [vmem:[%s1621 + $0x3c] sm:$0xf]
      %v1654 = vunpack.c.l.b16 %v1622
      %v1655 = vunpack.c.l.b16 %v1623
      %v1656 = vunpack.c.l.b16 %v1624
      %v1657 = vunpack.c.l.b16 %v1625
      %v1658 = vunpack.c.l.b16 %v1626
      %v1659 = vunpack.c.l.b16 %v1627
      %v1660 = vunpack.c.l.b16 %v1628
      %v1661 = vunpack.c.l.b16 %v1629
      %v1662 = vunpack.c.l.b16 %v1630
      %v1663 = vunpack.c.l.b16 %v1631
      %v1664 = vunpack.c.l.b16 %v1632
      %v1665 = vunpack.c.l.b16 %v1633
      %v1666 = vunpack.c.l.b16 %v1634
      %v1667 = vunpack.c.l.b16 %v1635
      %v1668 = vunpack.c.l.b16 %v1636
      %v1669 = vunpack.c.l.b16 %v1637
      %v1670 = vpack.c.b16 %v1655, %v1654
      %v1671 = vpack.c.b16 %v1657, %v1656
      %v1672 = vpack.c.b16 %v1659, %v1658
      %v1673 = vpack.c.b16 %v1661, %v1660
      %v1674 = vpack.c.b16 %v1663, %v1662
      %v1675 = vpack.c.b16 %v1665, %v1664
      %v1676 = vpack.c.b16 %v1667, %v1666
      %v1677 = vpack.c.b16 %v1669, %v1668
      %1686 = vmatprep.subr.bf16.mxu0 0
      %1687 = vmatpush1.bf16.msra.mxu0 %v1670
      %1688 = vmatprep.subr.bf16.mxu0 0
      %1689 = vmatpush1.bf16.msra.mxu0 %v1671
      %1690 = vmatprep.subr.bf16.mxu0 0
      %1691 = vmatpush1.bf16.msra.mxu0 %v1672
      %1692 = vmatprep.subr.bf16.mxu0 0
      %1693 = vmatpush1.bf16.msra.mxu0 %v1673
      %1694 = vmatprep.subr.bf16.mxu0 0
      %1695 = vmatpush1.bf16.msra.mxu0 %v1674
      %1696 = vmatprep.subr.bf16.mxu0 0
      %1697 = vmatpush1.bf16.msra.mxu0 %v1675
      %1698 = vmatprep.subr.bf16.mxu0 0
      %1699 = vmatpush1.bf16.msra.mxu0 %v1676
      %1700 = vmatprep.subr.bf16.mxu0 0
      %1701 = vmatpush1.bf16.msra.mxu0 %v1677
      %1702 = vmatprep.subr.bf16.mxu0 0
      %1703 = vmatpush1.bf16.msra.mxu0 0
      %1704 = vmatprep.subr.bf16.mxu0 0
      %1705 = vmatpush1.bf16.msra.mxu0 0
      %1706 = vmatprep.subr.bf16.mxu0 0
      %1707 = vmatpush1.bf16.msra.mxu0 0
      %1708 = vmatprep.subr.bf16.mxu0 0
      %1709 = vmatpush1.bf16.msra.mxu0 0
      %1710 = vmatprep.subr.bf16.mxu0 0
      %1711 = vmatpush1.bf16.msra.mxu0 0
      %1712 = vmatprep.subr.bf16.mxu0 0
      %1713 = vmatpush1.bf16.msra.mxu0 0
      %1714 = vmatprep.subr.bf16.mxu0 0
      %1715 = vmatpush1.bf16.msra.mxu0 0
      %1716 = vmatprep.subr.bf16.mxu0 0
      %1717 = vmatpush1.bf16.msra.mxu0 0
      %1718 = vmatprep.mubr.bf16.mxu0 0
      %1719 = vmatmul.mubr.bf16.gmra.mrb[0].mxu0 %v1057
      %v1720 = vpop.f32.mrb[0].mxu0
      %v1721 = vadd.f32 0.0, %v1720
      %v1722 = vpop.f32.mrb[0].mxu0
      %v1723 = vpop.f32.mrb[0].mxu0
      %v1724 = vadd.f32 0.0, %v1723
      %v1725 = vpop.f32.mrb[0].mxu0
      %1726 = vmatprep.mubr.bf16.mxu0 0
      %1727 = vmatmul.mubr.bf16.gmra.mrb[0].mxu0 %v1058
      %v1728 = vpop.f32.mrb[0].mxu0
      %v1729 = vadd.f32 0.0, %v1728
      %v1730 = vpop.f32.mrb[0].mxu0
      %v1731 = vpop.f32.mrb[0].mxu0
      %v1732 = vadd.f32 0.0, %v1731
      %v1733 = vpop.f32.mrb[0].mxu0
      %1734 = vmatprep.mubr.bf16.mxu0 0
      %1735 = vmatmul.mubr.bf16.gmra.mrb[0].mxu0 %v1059
      %v1736 = vpop.f32.mrb[0].mxu0
      %v1737 = vadd.f32 0.0, %v1736
      %v1738 = vpop.f32.mrb[0].mxu0
      %v1739 = vpop.f32.mrb[0].mxu0
      %v1740 = vadd.f32 0.0, %v1739
      %v1741 = vpop.f32.mrb[0].mxu0
      %1742 = vmatprep.mubr.bf16.mxu0 0
      %1743 = vmatmul.mubr.bf16.gmra.mrb[0].mxu0 %v1060
      %v1744 = vpop.f32.mrb[0].mxu0
      %v1745 = vadd.f32 0.0, %v1744
      %v1746 = vpop.f32.mrb[0].mxu0
      %v1747 = vpop.f32.mrb[0].mxu0
      %v1748 = vadd.f32 0.0, %v1747
      %v1749 = vpop.f32.mrb[0].mxu0
      %1750 = vmatprep.mubr.bf16.mxu0 0
      %1751 = vmatmul.mubr.bf16.gmra.mrb[0].mxu0 %v1061
      %v1752 = vpop.f32.mrb[0].mxu0
      %v1753 = vadd.f32 0.0, %v1752
      %v1754 = vpop.f32.mrb[0].mxu0
      %v1755 = vpop.f32.mrb[0].mxu0
      %v1756 = vadd.f32 0.0, %v1755
      %v1757 = vpop.f32.mrb[0].mxu0
      %1758 = vmatprep.mubr.bf16.mxu0 0
      %1759 = vmatmul.mubr.bf16.gmra.mrb[0].mxu0 %v1062
      %v1760 = vpop.f32.mrb[0].mxu0
      %v1761 = vadd.f32 0.0, %v1760
      %v1762 = vpop.f32.mrb[0].mxu0
      %v1763 = vpop.f32.mrb[0].mxu0
      %v1764 = vadd.f32 0.0, %v1763
      %v1765 = vpop.f32.mrb[0].mxu0
      %1766 = vmatprep.mubr.bf16.mxu0 0
      %1767 = vmatmul.mubr.bf16.gmra.mrb[0].mxu0 %v1063
      %v1768 = vpop.f32.mrb[0].mxu0
      %v1769 = vadd.f32 0.0, %v1768
      %v1770 = vpop.f32.mrb[0].mxu0
      %v1771 = vpop.f32.mrb[0].mxu0
      %v1772 = vadd.f32 0.0, %v1771
      %v1773 = vpop.f32.mrb[0].mxu0
      %1774 = vmatprep.mubr.bf16.mxu0 0
      %1775 = vmatmul.mubr.bf16.gmra.mrb[0].mxu0 %v1064
      %v1776 = vpop.f32.mrb[0].mxu0
      %v1777 = vadd.f32 0.0, %v1776
      %v1778 = vpop.f32.mrb[0].mxu0
      %v1779 = vpop.f32.mrb[0].mxu0
      %v1780 = vadd.f32 0.0, %v1779
      %v1781 = vpop.f32.mrb[0].mxu0
      %1782 = vmatprep.mubr.bf16.mxu0 0
      %1783 = vmatmul.mubr.bf16.gmra.mrb[0].mxu0 %v1065
      %v1784 = vpop.f32.mrb[0].mxu0
      %v1785 = vadd.f32 0.0, %v1784
      %v1786 = vpop.f32.mrb[0].mxu0
      %v1787 = vpop.f32.mrb[0].mxu0
      %v1788 = vadd.f32 0.0, %v1787
      %v1789 = vpop.f32.mrb[0].mxu0
      %1790 = vmatprep.mubr.bf16.mxu0 0
      %1791 = vmatmul.mubr.bf16.gmra.mrb[0].mxu0 %v1066
      %v1792 = vpop.f32.mrb[0].mxu0
      %v1793 = vadd.f32 0.0, %v1792
      %v1794 = vpop.f32.mrb[0].mxu0
      %v1795 = vpop.f32.mrb[0].mxu0
      %v1796 = vadd.f32 0.0, %v1795
      %v1797 = vpop.f32.mrb[0].mxu0
      %1798 = vdwg.mxu0
      %v1799 = vadd.f32 %v1601, %v1721
      %v1800 = vadd.f32 %v1602, %v1724
      %v1801 = vadd.f32 %v1603, %v1729
      %v1802 = vadd.f32 %v1604, %v1732
      %v1803 = vadd.f32 %v1605, %v1737
      %v1804 = vadd.f32 %v1606, %v1740
      %v1805 = vadd.f32 %v1607, %v1745
      %v1806 = vadd.f32 %v1608, %v1748
      %v1807 = vadd.f32 %v1609, %v1753
      %v1808 = vadd.f32 %v1610, %v1756
      %v1809 = vadd.f32 %v1611, %v1761
      %v1810 = vadd.f32 %v1612, %v1764
      %v1811 = vadd.f32 %v1613, %v1769
      %v1812 = vadd.f32 %v1614, %v1772
      %v1813 = vadd.f32 %v1615, %v1777
      %v1814 = vadd.f32 %v1616, %v1780
      %v1815 = vadd.f32 %v1617, %v1785
      %v1816 = vadd.f32 %v1618, %v1788
      %v1817 = vadd.f32 %v1619, %v1793
      %v1818 = vadd.f32 %v1620, %v1796
      %s1819 = scalar_lea.vmem %s3, 256
      %v1820 = vld [vmem:[%s1819] sm:$0xf]
      %v1821 = vld [vmem:[%s1819 + $0x4] sm:$0xf]
      %v1822 = vld [vmem:[%s1819 + $0x8] sm:$0xf]
      %v1823 = vld [vmem:[%s1819 + $0xc] sm:$0xf]
      %v1824 = vld [vmem:[%s1819 + $0x10] sm:$0xf]
      %v1825 = vld [vmem:[%s1819 + $0x14] sm:$0xf]
      %v1826 = vld [vmem:[%s1819 + $0x18] sm:$0xf]
      %v1827 = vld [vmem:[%s1819 + $0x1c] sm:$0xf]
      %v1828 = vld [vmem:[%s1819 + $0x20] sm:$0xf]
      %v1829 = vld [vmem:[%s1819 + $0x24] sm:$0xf]
      %v1830 = vld [vmem:[%s1819 + $0x28] sm:$0xf]
      %v1831 = vld [vmem:[%s1819 + $0x2c] sm:$0xf]
      %v1832 = vld [vmem:[%s1819 + $0x30] sm:$0xf]
      %v1833 = vld [vmem:[%s1819 + $0x34] sm:$0xf]
      %v1834 = vld [vmem:[%s1819 + $0x38] sm:$0xf]
      %v1835 = vld [vmem:[%s1819 + $0x3c] sm:$0xf]
      %v1852 = vunpack.c.l.b16 %v1820
      %v1853 = vunpack.c.l.b16 %v1821
      %v1854 = vunpack.c.l.b16 %v1822
      %v1855 = vunpack.c.l.b16 %v1823
      %v1856 = vunpack.c.l.b16 %v1824
      %v1857 = vunpack.c.l.b16 %v1825
      %v1858 = vunpack.c.l.b16 %v1826
      %v1859 = vunpack.c.l.b16 %v1827
      %v1860 = vunpack.c.l.b16 %v1828
      %v1861 = vunpack.c.l.b16 %v1829
      %v1862 = vunpack.c.l.b16 %v1830
      %v1863 = vunpack.c.l.b16 %v1831
      %v1864 = vunpack.c.l.b16 %v1832
      %v1865 = vunpack.c.l.b16 %v1833
      %v1866 = vunpack.c.l.b16 %v1834
      %v1867 = vunpack.c.l.b16 %v1835
      %v1868 = vpack.c.b16 %v1853, %v1852
      %v1869 = vpack.c.b16 %v1855, %v1854
      %v1870 = vpack.c.b16 %v1857, %v1856
      %v1871 = vpack.c.b16 %v1859, %v1858
      %v1872 = vpack.c.b16 %v1861, %v1860
      %v1873 = vpack.c.b16 %v1863, %v1862
      %v1874 = vpack.c.b16 %v1865, %v1864
      %v1875 = vpack.c.b16 %v1867, %v1866
      %1884 = vmatprep.subr.bf16.mxu0 0
      %1885 = vmatpush1.bf16.msra.mxu0 %v1868
      %1886 = vmatprep.subr.bf16.mxu0 0
      %1887 = vmatpush1.bf16.msra.mxu0 %v1869
      %1888 = vmatprep.subr.bf16.mxu0 0
      %1889 = vmatpush1.bf16.msra.mxu0 %v1870
      %1890 = vmatprep.subr.bf16.mxu0 0
      %1891 = vmatpush1.bf16.msra.mxu0 %v1871
      %1892 = vmatprep.subr.bf16.mxu0 0
      %1893 = vmatpush1.bf16.msra.mxu0 %v1872
      %1894 = vmatprep.subr.bf16.mxu0 0
      %1895 = vmatpush1.bf16.msra.mxu0 %v1873
      %1896 = vmatprep.subr.bf16.mxu0 0
      %1897 = vmatpush1.bf16.msra.mxu0 %v1874
      %1898 = vmatprep.subr.bf16.mxu0 0
      %1899 = vmatpush1.bf16.msra.mxu0 %v1875
      %1900 = vmatprep.subr.bf16.mxu0 0
      %1901 = vmatpush1.bf16.msra.mxu0 0
      %1902 = vmatprep.subr.bf16.mxu0 0
      %1903 = vmatpush1.bf16.msra.mxu0 0
      %1904 = vmatprep.subr.bf16.mxu0 0
      %1905 = vmatpush1.bf16.msra.mxu0 0
      %1906 = vmatprep.subr.bf16.mxu0 0
      %1907 = vmatpush1.bf16.msra.mxu0 0
      %1908 = vmatprep.subr.bf16.mxu0 0
      %1909 = vmatpush1.bf16.msra.mxu0 0
      %1910 = vmatprep.subr.bf16.mxu0 0
      %1911 = vmatpush1.bf16.msra.mxu0 0
      %1912 = vmatprep.subr.bf16.mxu0 0
      %1913 = vmatpush1.bf16.msra.mxu0 0
      %1914 = vmatprep.subr.bf16.mxu0 0
      %1915 = vmatpush1.bf16.msra.mxu0 0
      %1916 = vmatprep.mubr.bf16.mxu0 0
      %1917 = vmatmul.mubr.bf16.gmra.mrb[0].mxu0 %v1058
      %v1918 = vpop.f32.mrb[0].mxu0
      %v1919 = vadd.f32 0.0, %v1918
      %v1920 = vpop.f32.mrb[0].mxu0
      %v1921 = vpop.f32.mrb[0].mxu0
      %v1922 = vadd.f32 0.0, %v1921
      %v1923 = vpop.f32.mrb[0].mxu0
      %1924 = vmatprep.mubr.bf16.mxu0 0
      %1925 = vmatmul.mubr.bf16.gmra.mrb[0].mxu0 %v1059
      %v1926 = vpop.f32.mrb[0].mxu0
      %v1927 = vadd.f32 0.0, %v1926
      %v1928 = vpop.f32.mrb[0].mxu0
      %v1929 = vpop.f32.mrb[0].mxu0
      %v1930 = vadd.f32 0.0, %v1929
      %v1931 = vpop.f32.mrb[0].mxu0
      %1932 = vmatprep.mubr.bf16.mxu0 0
      %1933 = vmatmul.mubr.bf16.gmra.mrb[0].mxu0 %v1060
      %v1934 = vpop.f32.mrb[0].mxu0
      %v1935 = vadd.f32 0.0, %v1934
      %v1936 = vpop.f32.mrb[0].mxu0
      %v1937 = vpop.f32.mrb[0].mxu0
      %v1938 = vadd.f32 0.0, %v1937
      %v1939 = vpop.f32.mrb[0].mxu0
      %1940 = vmatprep.mubr.bf16.mxu0 0
      %1941 = vmatmul.mubr.bf16.gmra.mrb[0].mxu0 %v1061
      %v1942 = vpop.f32.mrb[0].mxu0
      %v1943 = vadd.f32 0.0, %v1942
      %v1944 = vpop.f32.mrb[0].mxu0
      %v1945 = vpop.f32.mrb[0].mxu0
      %v1946 = vadd.f32 0.0, %v1945
      %v1947 = vpop.f32.mrb[0].mxu0
      %1948 = vmatprep.mubr.bf16.mxu0 0
      %1949 = vmatmul.mubr.bf16.gmra.mrb[0].mxu0 %v1062
      %v1950 = vpop.f32.mrb[0].mxu0
      %v1951 = vadd.f32 0.0, %v1950
      %v1952 = vpop.f32.mrb[0].mxu0
      %v1953 = vpop.f32.mrb[0].mxu0
      %v1954 = vadd.f32 0.0, %v1953
      %v1955 = vpop.f32.mrb[0].mxu0
      %1956 = vmatprep.mubr.bf16.mxu0 0
      %1957 = vmatmul.mubr.bf16.gmra.mrb[0].mxu0 %v1063
      %v1958 = vpop.f32.mrb[0].mxu0
      %v1959 = vadd.f32 0.0, %v1958
      %v1960 = vpop.f32.mrb[0].mxu0
      %v1961 = vpop.f32.mrb[0].mxu0
      %v1962 = vadd.f32 0.0, %v1961
      %v1963 = vpop.f32.mrb[0].mxu0
      %1964 = vmatprep.mubr.bf16.mxu0 0
      %1965 = vmatmul.mubr.bf16.gmra.mrb[0].mxu0 %v1064
      %v1966 = vpop.f32.mrb[0].mxu0
      %v1967 = vadd.f32 0.0, %v1966
      %v1968 = vpop.f32.mrb[0].mxu0
      %v1969 = vpop.f32.mrb[0].mxu0
      %v1970 = vadd.f32 0.0, %v1969
      %v1971 = vpop.f32.mrb[0].mxu0
      %1972 = vmatprep.mubr.bf16.mxu0 0
      %1973 = vmatmul.mubr.bf16.gmra.mrb[0].mxu0 %v1065
      %v1974 = vpop.f32.mrb[0].mxu0
      %v1975 = vadd.f32 0.0, %v1974
      %v1976 = vpop.f32.mrb[0].mxu0
      %v1977 = vpop.f32.mrb[0].mxu0
      %v1978 = vadd.f32 0.0, %v1977
      %v1979 = vpop.f32.mrb[0].mxu0
      %1980 = vmatprep.mubr.bf16.mxu0 0
      %1981 = vmatmul.mubr.bf16.gmra.mrb[0].mxu0 %v1066
      %v1982 = vpop.f32.mrb[0].mxu0
      %v1983 = vadd.f32 0.0, %v1982
      %v1984 = vpop.f32.mrb[0].mxu0
      %v1985 = vpop.f32.mrb[0].mxu0
      %v1986 = vadd.f32 0.0, %v1985
      %v1987 = vpop.f32.mrb[0].mxu0
      %1988 = vmatprep.mubr.bf16.mxu0 0
      %1989 = vmatmul.mubr.bf16.gmra.mrb[0].mxu0 %v1067
      %v1990 = vpop.f32.mrb[0].mxu0
      %v1991 = vadd.f32 0.0, %v1990
      %v1992 = vpop.f32.mrb[0].mxu0
      %v1993 = vpop.f32.mrb[0].mxu0
      %v1994 = vadd.f32 0.0, %v1993
      %v1995 = vpop.f32.mrb[0].mxu0
      %1996 = vdwg.mxu0
      %v1997 = vadd.f32 %v1799, %v1919
      %v1998 = vadd.f32 %v1800, %v1922
      %v1999 = vadd.f32 %v1801, %v1927
      %v2000 = vadd.f32 %v1802, %v1930
      %v2001 = vadd.f32 %v1803, %v1935
      %v2002 = vadd.f32 %v1804, %v1938
      %v2003 = vadd.f32 %v1805, %v1943
      %v2004 = vadd.f32 %v1806, %v1946
      %v2005 = vadd.f32 %v1807, %v1951
      %v2006 = vadd.f32 %v1808, %v1954
      %v2007 = vadd.f32 %v1809, %v1959
      %v2008 = vadd.f32 %v1810, %v1962
      %v2009 = vadd.f32 %v1811, %v1967
      %v2010 = vadd.f32 %v1812, %v1970
      %v2011 = vadd.f32 %v1813, %v1975
      %v2012 = vadd.f32 %v1814, %v1978
      %v2013 = vadd.f32 %v1815, %v1983
      %v2014 = vadd.f32 %v1816, %v1986
      %v2015 = vadd.f32 %v1817, %v1991
      %v2016 = vadd.f32 %v1818, %v1994
      %v2017 = vld [vmem:[%s4] sm:$0x1]
      %v2019 = vlaneseq
      %v2020 = vshrl.u32 %v2019, 7
      %v2021 = vsub.s32 0, %v2020
      %v2022 = vrot.slane %v2017, %v2021
      %v2024 = vadd.f32 %v1997, %v2022
      %v2025 = vadd.f32 %v1998, %v2022
      %v2026 = vadd.f32 %v1999, %v2022
      %v2027 = vadd.f32 %v2000, %v2022
      %v2028 = vadd.f32 %v2001, %v2022
      %v2029 = vadd.f32 %v2002, %v2022
      %v2030 = vadd.f32 %v2003, %v2022
      %v2031 = vadd.f32 %v2004, %v2022
      %v2032 = vadd.f32 %v2005, %v2022
      %v2033 = vadd.f32 %v2006, %v2022
      %v2034 = vadd.f32 %v2007, %v2022
      %v2035 = vadd.f32 %v2008, %v2022
      %v2036 = vadd.f32 %v2009, %v2022
      %v2037 = vadd.f32 %v2010, %v2022
      %v2038 = vadd.f32 %v2011, %v2022
      %v2039 = vadd.f32 %v2012, %v2022
      %v2040 = vadd.f32 %v2013, %v2022
      %v2041 = vadd.f32 %v2014, %v2022
      %v2042 = vadd.f32 %v2015, %v2022
      %v2043 = vadd.f32 %v2016, %v2022
      %v2044 = vmax.f32 %v2024, 0.0
      %v2045 = vmax.f32 %v2025, 0.0
      %v2046 = vmax.f32 %v2026, 0.0
      %v2047 = vmax.f32 %v2027, 0.0
      %v2048 = vmax.f32 %v2028, 0.0
      %v2049 = vmax.f32 %v2029, 0.0
      %v2050 = vmax.f32 %v2030, 0.0
      %v2051 = vmax.f32 %v2031, 0.0
      %v2052 = vmax.f32 %v2032, 0.0
      %v2053 = vmax.f32 %v2033, 0.0
      %v2054 = vmax.f32 %v2034, 0.0
      %v2055 = vmax.f32 %v2035, 0.0
      %v2056 = vmax.f32 %v2036, 0.0
      %v2057 = vmax.f32 %v2037, 0.0
      %v2058 = vmax.f32 %v2038, 0.0
      %v2059 = vmax.f32 %v2039, 0.0
      %v2060 = vmax.f32 %v2040, 0.0
      %v2061 = vmax.f32 %v2041, 0.0
      %v2062 = vmax.f32 %v2042, 0.0
      %v2063 = vmax.f32 %v2043, 0.0
      %2064 = vst [vmem:[#allocation4] sm:$0xff] %v2044
      %2065 = vst [vmem:[#allocation4 + $0x8] sm:$0xff] %v2045
      %2066 = vst [vmem:[#allocation4 + $0x10] sm:$0xff] %v2046
      %2067 = vst [vmem:[#allocation4 + $0x18] sm:$0xff] %v2047
      %2068 = vst [vmem:[#allocation4 + $0x20] sm:$0xff] %v2048
      %2069 = vst [vmem:[#allocation4 + $0x28] sm:$0xff] %v2049
      %2070 = vst [vmem:[#allocation4 + $0x30] sm:$0xff] %v2050
      %2071 = vst [vmem:[#allocation4 + $0x38] sm:$0xff] %v2051
      %2072 = vst [vmem:[#allocation4 + $0x40] sm:$0xff] %v2052
      %2073 = vst [vmem:[#allocation4 + $0x48] sm:$0xff] %v2053
      %2074 = vst [vmem:[#allocation4 + $0x50] sm:$0xff] %v2054
      %2075 = vst [vmem:[#allocation4 + $0x58] sm:$0xff] %v2055
      %2076 = vst [vmem:[#allocation4 + $0x60] sm:$0xff] %v2056
      %2077 = vst [vmem:[#allocation4 + $0x68] sm:$0xff] %v2057
      %2078 = vst [vmem:[#allocation4 + $0x70] sm:$0xff] %v2058
      %2079 = vst [vmem:[#allocation4 + $0x78] sm:$0xff] %v2059
      %2080 = vst [vmem:[#allocation4 + $0x80] sm:$0xff] %v2060
      %2081 = vst [vmem:[#allocation4 + $0x88] sm:$0xff] %v2061
      %2082 = vst [vmem:[#allocation4 + $0x90] sm:$0xff] %v2062
      %2083 = vst [vmem:[#allocation4 + $0x98] sm:$0xff] %v2063
      %v2084 = vld [vmem:[#allocation4] ss:$2 sm:$0xff]
      %s2085 = scalar_lea.vmem [#allocation4], 16
      %v2086 = vld [vmem:[%s2085] ss:$2 sm:$0xff]
      %s2087 = scalar_lea.vmem [#allocation4], 32
      %v2088 = vld [vmem:[%s2087] ss:$2 sm:$0xff]
      %s2089 = scalar_lea.vmem [#allocation4], 48
      %v2090 = vld [vmem:[%s2089] ss:$2 sm:$0xff]
      %s2091 = scalar_lea.vmem [#allocation4], 64
      %v2092 = vld [vmem:[%s2091] ss:$2 sm:$0xff]
      %s2093 = scalar_lea.vmem [#allocation4], 80
      %v2094 = vld [vmem:[%s2093] ss:$2 sm:$0xff]
      %s2095 = scalar_lea.vmem [#allocation4], 96
      %v2096 = vld [vmem:[%s2095] ss:$2 sm:$0xff]
      %s2097 = scalar_lea.vmem [#allocation4], 112
      %v2098 = vld [vmem:[%s2097] ss:$2 sm:$0xff]
      %s2099 = scalar_lea.vmem [#allocation4], 128
      %v2100 = vld [vmem:[%s2099] ss:$2 sm:$0xff]
      %s2101 = scalar_lea.vmem [#allocation4], 144
      %v2102 = vld [vmem:[%s2101] ss:$2 sm:$0xff]
      %s2103 = scalar_lea.vmem [#allocation4], 1
      %v2104 = vld [vmem:[%s2103] ss:$2 sm:$0xff]
      %s2105 = scalar_lea.vmem [#allocation4], 17
      %v2106 = vld [vmem:[%s2105] ss:$2 sm:$0xff]
      %s2107 = scalar_lea.vmem [#allocation4], 33
      %v2108 = vld [vmem:[%s2107] ss:$2 sm:$0xff]
      %s2109 = scalar_lea.vmem [#allocation4], 49
      %v2110 = vld [vmem:[%s2109] ss:$2 sm:$0xff]
      %s2111 = scalar_lea.vmem [#allocation4], 65
      %v2112 = vld [vmem:[%s2111] ss:$2 sm:$0xff]
      %s2113 = scalar_lea.vmem [#allocation4], 81
      %v2114 = vld [vmem:[%s2113] ss:$2 sm:$0xff]
      %s2115 = scalar_lea.vmem [#allocation4], 97
      %v2116 = vld [vmem:[%s2115] ss:$2 sm:$0xff]
      %s2117 = scalar_lea.vmem [#allocation4], 113
      %v2118 = vld [vmem:[%s2117] ss:$2 sm:$0xff]
      %s2119 = scalar_lea.vmem [#allocation4], 129
      %v2120 = vld [vmem:[%s2119] ss:$2 sm:$0xff]
      %s2121 = scalar_lea.vmem [#allocation4], 145
      %v2122 = vld [vmem:[%s2121] ss:$2 sm:$0xff]
      %v2123 = vmax.f32 %v2084, %v2104
      %v2124 = vmax.f32 %v2086, %v2106
      %v2125 = vmax.f32 %v2088, %v2108
      %v2126 = vmax.f32 %v2090, %v2110
      %v2127 = vmax.f32 %v2092, %v2112
      %v2128 = vmax.f32 %v2094, %v2114
      %v2129 = vmax.f32 %v2096, %v2116
      %v2130 = vmax.f32 %v2098, %v2118
      %v2131 = vmax.f32 %v2100, %v2120
      %v2132 = vmax.f32 %v2102, %v2122
      %v2133 = vmax.f32 %v2123, %v2124
      %v2134 = vmax.f32 %v2125, %v2126
      %v2135 = vmax.f32 %v2127, %v2128
      %v2136 = vmax.f32 %v2129, %v2130
      %v2137 = vmax.f32 %v2131, %v2132
      %vm2138 = vcmp.lt.s32.totalorder %v758, 16
      %vm2139 = vmand %vm787, %vm2138
      %v2140 = vsel %vm2139, %v2133, 0.0
      %vm2141 = vcmp.ge.s32.totalorder %v758, 16
      %vm2142 = vcmp.lt.s32.totalorder %v758, 32
      %vm2143 = vmand %vm2141, %vm2142
      %v2145 = vrot.slane %v2140, 7
      %v2147 = vsel %vm2143, %v2133, %v2145
      %vm2148 = vcmp.ge.s32.totalorder %v758, 32
      %vm2149 = vcmp.lt.s32.totalorder %v758, 48
      %vm2150 = vmand %vm2148, %vm2149
      %v2152 = vrot.slane %v2147, 7
      %v2154 = vsel %vm2150, %v2133, %v2152
      %vm2155 = vcmp.ge.s32.totalorder %v758, 48
      %vm2156 = vcmp.lt.s32.totalorder %v758, 64
      %vm2157 = vmand %vm2155, %vm2156
      %v2159 = vrot.slane %v2154, 7
      %v2161 = vsel %vm2157, %v2133, %v2159
      %vm2162 = vcmp.ge.s32.totalorder %v758, 64
      %vm2163 = vcmp.lt.s32.totalorder %v758, 80
      %vm2164 = vmand %vm2162, %vm2163
      %v2166 = vrot.slane %v2161, 7
      %v2168 = vsel %vm2164, %v2133, %v2166
      %vm2169 = vcmp.ge.s32.totalorder %v758, 80
      %vm2170 = vcmp.lt.s32.totalorder %v758, 96
      %vm2171 = vmand %vm2169, %vm2170
      %v2173 = vrot.slane %v2168, 4
      %v2175 = vsel %vm2171, %v2134, %v2173
      %vm2176 = vcmp.ge.s32.totalorder %v758, 96
      %vm2177 = vcmp.lt.s32.totalorder %v758, 112
      %vm2178 = vmand %vm2176, %vm2177
      %v2180 = vrot.slane %v2175, 7
      %v2182 = vsel %vm2178, %v2134, %v2180
      %vm2183 = vcmp.ge.s32.totalorder %v758, 112
      %vm2184 = vcmp.lt.s32.totalorder %v758, 128
      %vm2185 = vmand %vm2183, %vm2184
      %v2187 = vrot.slane %v2182, 7
      %v2189 = vsel %vm2185, %v2134, %v2187
      %v2190 = vpack.c.bf16 %v2189, %v2189
      %v2191 = vld [vmem:[%s5] sm:$0xf]
      %v2192 = vld [vmem:[%s5 + $0x4] sm:$0xf]
      %v2193 = vld [vmem:[%s5 + $0x8] sm:$0xf]
      %v2194 = vld [vmem:[%s5 + $0xc] sm:$0xf]
      %v2195 = vld [vmem:[%s5 + $0x10] sm:$0xf]
      %v2196 = vld [vmem:[%s5 + $0x14] sm:$0xf]
      %v2197 = vld [vmem:[%s5 + $0x18] sm:$0xf]
      %v2198 = vld [vmem:[%s5 + $0x1c] sm:$0xf]
      %v2199 = vld [vmem:[%s5 + $0x20] sm:$0xf]
      %v2200 = vld [vmem:[%s5 + $0x24] sm:$0xf]
      %v2201 = vld [vmem:[%s5 + $0x28] sm:$0xf]
      %v2202 = vld [vmem:[%s5 + $0x2c] sm:$0xf]
      %v2203 = vld [vmem:[%s5 + $0x30] sm:$0xf]
      %v2204 = vld [vmem:[%s5 + $0x34] sm:$0xf]
      %v2205 = vld [vmem:[%s5 + $0x38] sm:$0xf]
      %v2206 = vld [vmem:[%s5 + $0x3c] sm:$0xf]
      %v2207 = vsel %vm2139, %v2134, 0.0
      %v2209 = vrot.slane %v2207, 7
      %v2211 = vsel %vm2143, %v2134, %v2209
      %v2213 = vrot.slane %v2211, 4
      %v2215 = vsel %vm2150, %v2135, %v2213
      %v2217 = vrot.slane %v2215, 7
      %v2219 = vsel %vm2157, %v2135, %v2217
      %v2221 = vrot.slane %v2219, 7
      %v2223 = vsel %vm2164, %v2135, %v2221
      %v2225 = vrot.slane %v2223, 7
      %v2227 = vsel %vm2171, %v2135, %v2225
      %v2229 = vrot.slane %v2227, 7
      %v2231 = vsel %vm2178, %v2135, %v2229
      %v2233 = vrot.slane %v2231, 4
      %v2235 = vsel %vm2185, %v2136, %v2233
      %v2236 = vpack.c.bf16 %v2235, %v2235
      %s2237 = scalar_lea.vmem %s5, 64
      %v2238 = vld [vmem:[%s2237] sm:$0xf]
      %v2239 = vld [vmem:[%s2237 + $0x4] sm:$0xf]
      %v2240 = vld [vmem:[%s2237 + $0x8] sm:$0xf]
      %v2241 = vld [vmem:[%s2237 + $0xc] sm:$0xf]
      %v2242 = vld [vmem:[%s2237 + $0x10] sm:$0xf]
      %v2243 = vld [vmem:[%s2237 + $0x14] sm:$0xf]
      %v2244 = vld [vmem:[%s2237 + $0x18] sm:$0xf]
      %v2245 = vld [vmem:[%s2237 + $0x1c] sm:$0xf]
      %v2246 = vld [vmem:[%s2237 + $0x20] sm:$0xf]
      %v2247 = vld [vmem:[%s2237 + $0x24] sm:$0xf]
      %v2248 = vld [vmem:[%s2237 + $0x28] sm:$0xf]
      %v2249 = vld [vmem:[%s2237 + $0x2c] sm:$0xf]
      %v2250 = vld [vmem:[%s2237 + $0x30] sm:$0xf]
      %v2251 = vld [vmem:[%s2237 + $0x34] sm:$0xf]
      %v2252 = vld [vmem:[%s2237 + $0x38] sm:$0xf]
      %v2253 = vld [vmem:[%s2237 + $0x3c] sm:$0xf]
      %v2270 = vunpack.c.l.b16 %v2238
      %v2271 = vunpack.c.l.b16 %v2239
      %v2272 = vunpack.c.l.b16 %v2240
      %v2273 = vunpack.c.l.b16 %v2241
      %v2274 = vunpack.c.l.b16 %v2242
      %v2275 = vunpack.c.l.b16 %v2243
      %v2276 = vunpack.c.l.b16 %v2244
      %v2277 = vunpack.c.l.b16 %v2245
      %v2278 = vunpack.c.l.b16 %v2246
      %v2279 = vunpack.c.l.b16 %v2247
      %v2280 = vunpack.c.l.b16 %v2248
      %v2281 = vunpack.c.l.b16 %v2249
      %v2282 = vunpack.c.l.b16 %v2250
      %v2283 = vunpack.c.l.b16 %v2251
      %v2284 = vunpack.c.l.b16 %v2252
      %v2285 = vunpack.c.l.b16 %v2253
      %v2286 = vpack.c.b16 %v2271, %v2270
      %v2287 = vpack.c.b16 %v2273, %v2272
      %v2288 = vpack.c.b16 %v2275, %v2274
      %v2289 = vpack.c.b16 %v2277, %v2276
      %v2290 = vpack.c.b16 %v2279, %v2278
      %v2291 = vpack.c.b16 %v2281, %v2280
      %v2292 = vpack.c.b16 %v2283, %v2282
      %v2293 = vpack.c.b16 %v2285, %v2284
      %2302 = vmatprep.subr.bf16.mxu0 0
      %2303 = vmatpush1.bf16.msra.mxu0 %v2286
      %2304 = vmatprep.subr.bf16.mxu0 0
      %2305 = vmatpush1.bf16.msra.mxu0 %v2287
      %2306 = vmatprep.subr.bf16.mxu0 0
      %2307 = vmatpush1.bf16.msra.mxu0 %v2288
      %2308 = vmatprep.subr.bf16.mxu0 0
      %2309 = vmatpush1.bf16.msra.mxu0 %v2289
      %2310 = vmatprep.subr.bf16.mxu0 0
      %2311 = vmatpush1.bf16.msra.mxu0 %v2290
      %2312 = vmatprep.subr.bf16.mxu0 0
      %2313 = vmatpush1.bf16.msra.mxu0 %v2291
      %2314 = vmatprep.subr.bf16.mxu0 0
      %2315 = vmatpush1.bf16.msra.mxu0 %v2292
      %2316 = vmatprep.subr.bf16.mxu0 0
      %2317 = vmatpush1.bf16.msra.mxu0 %v2293
      %2318 = vmatprep.subr.bf16.mxu0 0
      %2319 = vmatpush1.bf16.msra.mxu0 0
      %2320 = vmatprep.subr.bf16.mxu0 0
      %2321 = vmatpush1.bf16.msra.mxu0 0
      %2322 = vmatprep.subr.bf16.mxu0 0
      %2323 = vmatpush1.bf16.msra.mxu0 0
      %2324 = vmatprep.subr.bf16.mxu0 0
      %2325 = vmatpush1.bf16.msra.mxu0 0
      %2326 = vmatprep.subr.bf16.mxu0 0
      %2327 = vmatpush1.bf16.msra.mxu0 0
      %2328 = vmatprep.subr.bf16.mxu0 0
      %2329 = vmatpush1.bf16.msra.mxu0 0
      %2330 = vmatprep.subr.bf16.mxu0 0
      %2331 = vmatpush1.bf16.msra.mxu0 0
      %2332 = vmatprep.subr.bf16.mxu0 0
      %2333 = vmatpush1.bf16.msra.mxu0 0
      %2334 = vmatprep.mubr.bf16.mxu0 0
      %2335 = vmatmul.mubr.bf16.gmra.mrb[0].mxu0 %v2236
      %v2336 = vpop.f32.mrb[0].mxu0
      %v2337 = vadd.f32 0.0, %v2336
      %v2338 = vpop.f32.mrb[0].mxu0
      %v2339 = vpop.f32.mrb[0].mxu0
      %v2340 = vpop.f32.mrb[0].mxu0
      %2341 = vdwg.mxu0
      %v2343 = vrot.slane %v2190, 1
      %v2361 = vunpack.c.l.b16 %v2191
      %v2362 = vunpack.c.l.b16 %v2192
      %v2363 = vunpack.c.l.b16 %v2193
      %v2364 = vunpack.c.l.b16 %v2194
      %v2365 = vunpack.c.l.b16 %v2195
      %v2366 = vunpack.c.l.b16 %v2196
      %v2367 = vunpack.c.l.b16 %v2197
      %v2368 = vunpack.c.l.b16 %v2198
      %v2369 = vunpack.c.l.b16 %v2199
      %v2370 = vunpack.c.l.b16 %v2200
      %v2371 = vunpack.c.l.b16 %v2201
      %v2372 = vunpack.c.l.b16 %v2202
      %v2373 = vunpack.c.l.b16 %v2203
      %v2374 = vunpack.c.l.b16 %v2204
      %v2375 = vunpack.c.l.b16 %v2205
      %v2376 = vunpack.c.l.b16 %v2206
      %v2377 = vpack.c.b16 %v2362, %v2361
      %v2378 = vpack.c.b16 %v2364, %v2363
      %v2379 = vpack.c.b16 %v2366, %v2365
      %v2380 = vpack.c.b16 %v2368, %v2367
      %v2381 = vpack.c.b16 %v2370, %v2369
      %v2382 = vpack.c.b16 %v2372, %v2371
      %v2383 = vpack.c.b16 %v2374, %v2373
      %v2384 = vpack.c.b16 %v2376, %v2375
      %2393 = vmatprep.subr.bf16.mxu0 0
      %2394 = vmatpush1.bf16.msra.mxu0 %v2377
      %2395 = vmatprep.subr.bf16.mxu0 0
      %2396 = vmatpush1.bf16.msra.mxu0 %v2378
      %2397 = vmatprep.subr.bf16.mxu0 0
      %2398 = vmatpush1.bf16.msra.mxu0 %v2379
      %2399 = vmatprep.subr.bf16.mxu0 0
      %2400 = vmatpush1.bf16.msra.mxu0 %v2380
      %2401 = vmatprep.subr.bf16.mxu0 0
      %2402 = vmatpush1.bf16.msra.mxu0 %v2381
      %2403 = vmatprep.subr.bf16.mxu0 0
      %2404 = vmatpush1.bf16.msra.mxu0 %v2382
      %2405 = vmatprep.subr.bf16.mxu0 0
      %2406 = vmatpush1.bf16.msra.mxu0 %v2383
      %2407 = vmatprep.subr.bf16.mxu0 0
      %2408 = vmatpush1.bf16.msra.mxu0 %v2384
      %2409 = vmatprep.subr.bf16.mxu0 0
      %2410 = vmatpush1.bf16.msra.mxu0 0
      %2411 = vmatprep.subr.bf16.mxu0 0
      %2412 = vmatpush1.bf16.msra.mxu0 0
      %2413 = vmatprep.subr.bf16.mxu0 0
      %2414 = vmatpush1.bf16.msra.mxu0 0
      %2415 = vmatprep.subr.bf16.mxu0 0
      %2416 = vmatpush1.bf16.msra.mxu0 0
      %2417 = vmatprep.subr.bf16.mxu0 0
      %2418 = vmatpush1.bf16.msra.mxu0 0
      %2419 = vmatprep.subr.bf16.mxu0 0
      %2420 = vmatpush1.bf16.msra.mxu0 0
      %2421 = vmatprep.subr.bf16.mxu0 0
      %2422 = vmatpush1.bf16.msra.mxu0 0
      %2423 = vmatprep.subr.bf16.mxu0 0
      %2424 = vmatpush1.bf16.msra.mxu0 0
      %2425 = vmatprep.mubr.bf16.mxu0 0
      %2426 = vmatmul.mubr.bf16.gmra.mrb[0].mxu0 %v2343
      %v2427 = vpop.f32.mrb[0].mxu0
      %v2428 = vadd.f32 %v2337, %v2427
      %v2429 = vpop.f32.mrb[0].mxu0
      %v2430 = vpop.f32.mrb[0].mxu0
      %v2431 = vpop.f32.mrb[0].mxu0
      %2432 = vdwg.mxu0
      %v2433 = vsel %vm2139, %v2136, 0.0
      %v2435 = vrot.slane %v2433, 7
      %v2437 = vsel %vm2143, %v2136, %v2435
      %v2439 = vrot.slane %v2437, 7
      %v2441 = vsel %vm2150, %v2136, %v2439
      %v2443 = vrot.slane %v2441, 7
      %v2445 = vsel %vm2157, %v2136, %v2443
      %v2447 = vrot.slane %v2445, 4
      %v2449 = vsel %vm2164, %v2137, %v2447
      %v2451 = vrot.slane %v2449, 7
      %v2453 = vsel %vm2171, %v2137, %v2451
      %v2455 = vrot.slane %v2453, 7
      %v2457 = vsel %vm2178, %v2137, %v2455
      %v2459 = vrot.slane %v2457, 7
      %v2461 = vsel %vm2185, %v2137, %v2459
      %v2462 = vpack.c.bf16 %v2461, %v2461
      %s2463 = scalar_lea.vmem %s5, 128
      %v2464 = vld [vmem:[%s2463] sm:$0xf]
      %v2465 = vld [vmem:[%s2463 + $0x4] sm:$0xf]
      %v2466 = vld [vmem:[%s2463 + $0x8] sm:$0xf]
      %v2467 = vld [vmem:[%s2463 + $0xc] sm:$0xf]
      %v2468 = vld [vmem:[%s2463 + $0x10] sm:$0xf]
      %v2469 = vld [vmem:[%s2463 + $0x14] sm:$0xf]
      %v2470 = vld [vmem:[%s2463 + $0x18] sm:$0xf]
      %v2471 = vld [vmem:[%s2463 + $0x1c] sm:$0xf]
      %v2472 = vld [vmem:[%s2463 + $0x20] sm:$0xf]
      %v2473 = vld [vmem:[%s2463 + $0x24] sm:$0xf]
      %v2474 = vld [vmem:[%s2463 + $0x28] sm:$0xf]
      %v2475 = vld [vmem:[%s2463 + $0x2c] sm:$0xf]
      %v2476 = vld [vmem:[%s2463 + $0x30] sm:$0xf]
      %v2477 = vld [vmem:[%s2463 + $0x34] sm:$0xf]
      %v2478 = vld [vmem:[%s2463 + $0x38] sm:$0xf]
      %v2479 = vld [vmem:[%s2463 + $0x3c] sm:$0xf]
      %v2481 = vshrl.u32 %v2462, 16
      %v2483 = vrot.slane %v2481, 1
      %v2501 = vunpack.c.l.b16 %v2464
      %v2502 = vunpack.c.l.b16 %v2465
      %v2503 = vunpack.c.l.b16 %v2466
      %v2504 = vunpack.c.l.b16 %v2467
      %v2505 = vunpack.c.l.b16 %v2468
      %v2506 = vunpack.c.l.b16 %v2469
      %v2507 = vunpack.c.l.b16 %v2470
      %v2508 = vunpack.c.l.b16 %v2471
      %v2509 = vunpack.c.l.b16 %v2472
      %v2510 = vunpack.c.l.b16 %v2473
      %v2511 = vunpack.c.l.b16 %v2474
      %v2512 = vunpack.c.l.b16 %v2475
      %v2513 = vunpack.c.l.b16 %v2476
      %v2514 = vunpack.c.l.b16 %v2477
      %v2515 = vunpack.c.l.b16 %v2478
      %v2516 = vunpack.c.l.b16 %v2479
      %v2517 = vpack.c.b16 %v2502, %v2501
      %v2518 = vpack.c.b16 %v2504, %v2503
      %v2519 = vpack.c.b16 %v2506, %v2505
      %v2520 = vpack.c.b16 %v2508, %v2507
      %v2521 = vpack.c.b16 %v2510, %v2509
      %v2522 = vpack.c.b16 %v2512, %v2511
      %v2523 = vpack.c.b16 %v2514, %v2513
      %v2524 = vpack.c.b16 %v2516, %v2515
      %2533 = vmatprep.subr.bf16.mxu0 0
      %2534 = vmatpush1.bf16.msra.mxu0 %v2517
      %2535 = vmatprep.subr.bf16.mxu0 0
      %2536 = vmatpush1.bf16.msra.mxu0 %v2518
      %2537 = vmatprep.subr.bf16.mxu0 0
      %2538 = vmatpush1.bf16.msra.mxu0 %v2519
      %2539 = vmatprep.subr.bf16.mxu0 0
      %2540 = vmatpush1.bf16.msra.mxu0 %v2520
      %2541 = vmatprep.subr.bf16.mxu0 0
      %2542 = vmatpush1.bf16.msra.mxu0 %v2521
      %2543 = vmatprep.subr.bf16.mxu0 0
      %2544 = vmatpush1.bf16.msra.mxu0 %v2522
      %2545 = vmatprep.subr.bf16.mxu0 0
      %2546 = vmatpush1.bf16.msra.mxu0 %v2523
      %2547 = vmatprep.subr.bf16.mxu0 0
      %2548 = vmatpush1.bf16.msra.mxu0 %v2524
      %2549 = vmatprep.subr.bf16.mxu0 0
      %2550 = vmatpush1.bf16.msra.mxu0 0
      %2551 = vmatprep.subr.bf16.mxu0 0
      %2552 = vmatpush1.bf16.msra.mxu0 0
      %2553 = vmatprep.subr.bf16.mxu0 0
      %2554 = vmatpush1.bf16.msra.mxu0 0
      %2555 = vmatprep.subr.bf16.mxu0 0
      %2556 = vmatpush1.bf16.msra.mxu0 0
      %2557 = vmatprep.subr.bf16.mxu0 0
      %2558 = vmatpush1.bf16.msra.mxu0 0
      %2559 = vmatprep.subr.bf16.mxu0 0
      %2560 = vmatpush1.bf16.msra.mxu0 0
      %2561 = vmatprep.subr.bf16.mxu0 0
      %2562 = vmatpush1.bf16.msra.mxu0 0
      %2563 = vmatprep.subr.bf16.mxu0 0
      %2564 = vmatpush1.bf16.msra.mxu0 0
      %2565 = vmatprep.mubr.bf16.mxu0 0
      %2566 = vmatmul.mubr.bf16.gmra.mrb[0].mxu0 %v2483
      %v2567 = vpop.f32.mrb[0].mxu0
      %v2568 = vadd.f32 0.0, %v2567
      %v2569 = vpop.f32.mrb[0].mxu0
      %v2570 = vpop.f32.mrb[0].mxu0
      %v2571 = vpop.f32.mrb[0].mxu0
      %2572 = vdwg.mxu0
      %v2573 = vadd.f32 %v2428, %v2568
      %v2574 = vsel %vm2139, %v2137, 0.0
      %v2575 = vpack.c.bf16 %v2574, %v2574
      %s2576 = scalar_lea.vmem %s5, 192
      %v2577 = vld [vmem:[%s2576] sm:$0xf]
      %v2578 = vld [vmem:[%s2576 + $0x4] sm:$0xf]
      %v2579 = vld [vmem:[%s2576 + $0x8] sm:$0xf]
      %v2580 = vld [vmem:[%s2576 + $0xc] sm:$0xf]
      %v2581 = vld [vmem:[%s2576 + $0x10] sm:$0xf]
      %v2582 = vld [vmem:[%s2576 + $0x14] sm:$0xf]
      %v2583 = vld [vmem:[%s2576 + $0x18] sm:$0xf]
      %v2584 = vld [vmem:[%s2576 + $0x1c] sm:$0xf]
      %v2585 = vld [vmem:[%s2576 + $0x20] sm:$0xf]
      %v2586 = vld [vmem:[%s2576 + $0x24] sm:$0xf]
      %v2587 = vld [vmem:[%s2576 + $0x28] sm:$0xf]
      %v2588 = vld [vmem:[%s2576 + $0x2c] sm:$0xf]
      %v2589 = vld [vmem:[%s2576 + $0x30] sm:$0xf]
      %v2590 = vld [vmem:[%s2576 + $0x34] sm:$0xf]
      %v2591 = vld [vmem:[%s2576 + $0x38] sm:$0xf]
      %v2592 = vld [vmem:[%s2576 + $0x3c] sm:$0xf]
      %v2594 = vrot.slane %v2575, 2
      %v2612 = vunpack.c.l.b16 %v2577
      %v2613 = vunpack.c.l.b16 %v2578
      %v2614 = vunpack.c.l.b16 %v2579
      %v2615 = vunpack.c.l.b16 %v2580
      %v2616 = vunpack.c.l.b16 %v2581
      %v2617 = vunpack.c.l.b16 %v2582
      %v2618 = vunpack.c.l.b16 %v2583
      %v2619 = vunpack.c.l.b16 %v2584
      %v2620 = vunpack.c.l.b16 %v2585
      %v2621 = vunpack.c.l.b16 %v2586
      %v2622 = vunpack.c.l.b16 %v2587
      %v2623 = vunpack.c.l.b16 %v2588
      %v2624 = vunpack.c.l.b16 %v2589
      %v2625 = vunpack.c.l.b16 %v2590
      %v2626 = vunpack.c.l.b16 %v2591
      %v2627 = vunpack.c.l.b16 %v2592
      %v2628 = vpack.c.b16 %v2613, %v2612
      %v2629 = vpack.c.b16 %v2615, %v2614
      %v2630 = vpack.c.b16 %v2617, %v2616
      %v2631 = vpack.c.b16 %v2619, %v2618
      %v2632 = vpack.c.b16 %v2621, %v2620
      %v2633 = vpack.c.b16 %v2623, %v2622
      %v2634 = vpack.c.b16 %v2625, %v2624
      %v2635 = vpack.c.b16 %v2627, %v2626
      %2644 = vmatprep.subr.bf16.mxu0 0
      %2645 = vmatpush1.bf16.msra.mxu0 %v2628
      %2646 = vmatprep.subr.bf16.mxu0 0
      %2647 = vmatpush1.bf16.msra.mxu0 %v2629
      %2648 = vmatprep.subr.bf16.mxu0 0
      %2649 = vmatpush1.bf16.msra.mxu0 %v2630
      %2650 = vmatprep.subr.bf16.mxu0 0
      %2651 = vmatpush1.bf16.msra.mxu0 %v2631
      %2652 = vmatprep.subr.bf16.mxu0 0
      %2653 = vmatpush1.bf16.msra.mxu0 %v2632
      %2654 = vmatprep.subr.bf16.mxu0 0
      %2655 = vmatpush1.bf16.msra.mxu0 %v2633
      %2656 = vmatprep.subr.bf16.mxu0 0
      %2657 = vmatpush1.bf16.msra.mxu0 %v2634
      %2658 = vmatprep.subr.bf16.mxu0 0
      %2659 = vmatpush1.bf16.msra.mxu0 %v2635
      %2660 = vmatprep.subr.bf16.mxu0 0
      %2661 = vmatpush1.bf16.msra.mxu0 0
      %2662 = vmatprep.subr.bf16.mxu0 0
      %2663 = vmatpush1.bf16.msra.mxu0 0
      %2664 = vmatprep.subr.bf16.mxu0 0
      %2665 = vmatpush1.bf16.msra.mxu0 0
      %2666 = vmatprep.subr.bf16.mxu0 0
      %2667 = vmatpush1.bf16.msra.mxu0 0
      %2668 = vmatprep.subr.bf16.mxu0 0
      %2669 = vmatpush1.bf16.msra.mxu0 0
      %2670 = vmatprep.subr.bf16.mxu0 0
      %2671 = vmatpush1.bf16.msra.mxu0 0
      %2672 = vmatprep.subr.bf16.mxu0 0
      %2673 = vmatpush1.bf16.msra.mxu0 0
      %2674 = vmatprep.subr.bf16.mxu0 0
      %2675 = vmatpush1.bf16.msra.mxu0 0
      %2676 = vmatprep.mubr.bf16.mxu0 0
      %2677 = vmatmul.mubr.bf16.gmra.mrb[0].mxu0 %v2594
      %v2678 = vpop.f32.mrb[0].mxu0
      %v2679 = vadd.f32 0.0, %v2678
      %v2680 = vpop.f32.mrb[0].mxu0
      %v2681 = vpop.f32.mrb[0].mxu0
      %v2682 = vpop.f32.mrb[0].mxu0
      %2683 = vdwg.mxu0
      %v2684 = vadd.f32 %v2573, %v2679
      %v2685 = vld [vmem:[%s6] sm:$0x1]
      %v2686 = vadd.f32 %v2684, %v2685
      %v2687 = vmax.f32 %v2686, 0.0
      %v2688 = vpack.c.bf16 %v2687, %v2687
      %v2689 = vld [vmem:[%s7] sm:$0xf]
      %v2690 = vld [vmem:[%s7 + $0x4] sm:$0xf]
      %v2691 = vld [vmem:[%s7 + $0x8] sm:$0xf]
      %v2692 = vld [vmem:[%s7 + $0xc] sm:$0xf]
      %v2693 = vld [vmem:[%s7 + $0x10] sm:$0xf]
      %v2694 = vld [vmem:[%s7 + $0x14] sm:$0xf]
      %v2695 = vld [vmem:[%s7 + $0x18] sm:$0xf]
      %v2696 = vld [vmem:[%s7 + $0x1c] sm:$0xf]
      %v2697 = vld [vmem:[%s7 + $0x20] sm:$0xf]
      %v2698 = vld [vmem:[%s7 + $0x24] sm:$0xf]
      %v2699 = vld [vmem:[%s7 + $0x28] sm:$0xf]
      %v2700 = vld [vmem:[%s7 + $0x2c] sm:$0xf]
      %v2701 = vld [vmem:[%s7 + $0x30] sm:$0xf]
      %v2702 = vld [vmem:[%s7 + $0x34] sm:$0xf]
      %v2703 = vld [vmem:[%s7 + $0x38] sm:$0xf]
      %v2704 = vld [vmem:[%s7 + $0x3c] sm:$0xf]
      %v2705 = vld [vmem:[%s8] sm:$0x1]
      %v2722 = vunpack.c.l.b16 %v2689
      %v2723 = vunpack.c.l.b16 %v2690
      %v2724 = vunpack.c.l.b16 %v2691
      %v2725 = vunpack.c.l.b16 %v2692
      %v2726 = vunpack.c.l.b16 %v2693
      %v2727 = vunpack.c.l.b16 %v2694
      %v2728 = vunpack.c.l.b16 %v2695
      %v2729 = vunpack.c.l.b16 %v2696
      %v2730 = vunpack.c.l.b16 %v2697
      %v2731 = vunpack.c.l.b16 %v2698
      %v2732 = vunpack.c.l.b16 %v2699
      %v2733 = vunpack.c.l.b16 %v2700
      %v2734 = vunpack.c.l.b16 %v2701
      %v2735 = vunpack.c.l.b16 %v2702
      %v2736 = vunpack.c.l.b16 %v2703
      %v2737 = vunpack.c.l.b16 %v2704
      %v2738 = vpack.c.b16 %v2723, %v2722
      %v2739 = vpack.c.b16 %v2725, %v2724
      %v2740 = vpack.c.b16 %v2727, %v2726
      %v2741 = vpack.c.b16 %v2729, %v2728
      %v2742 = vpack.c.b16 %v2731, %v2730
      %v2743 = vpack.c.b16 %v2733, %v2732
      %v2744 = vpack.c.b16 %v2735, %v2734
      %v2745 = vpack.c.b16 %v2737, %v2736
      %2754 = vmatprep.subr.bf16.mxu0 0
      %2755 = vmatpush1.bf16.msra.mxu0 %v2738
      %2756 = vmatprep.subr.bf16.mxu0 0
      %2757 = vmatpush1.bf16.msra.mxu0 %v2739
      %2758 = vmatprep.subr.bf16.mxu0 0
      %2759 = vmatpush1.bf16.msra.mxu0 %v2740
      %2760 = vmatprep.subr.bf16.mxu0 0
      %2761 = vmatpush1.bf16.msra.mxu0 %v2741
      %2762 = vmatprep.subr.bf16.mxu0 0
      %2763 = vmatpush1.bf16.msra.mxu0 %v2742
      %2764 = vmatprep.subr.bf16.mxu0 0
      %2765 = vmatpush1.bf16.msra.mxu0 %v2743
      %2766 = vmatprep.subr.bf16.mxu0 0
      %2767 = vmatpush1.bf16.msra.mxu0 %v2744
      %2768 = vmatprep.subr.bf16.mxu0 0
      %2769 = vmatpush1.bf16.msra.mxu0 %v2745
      %2770 = vmatprep.subr.bf16.mxu0 0
      %2771 = vmatpush1.bf16.msra.mxu0 0
      %2772 = vmatprep.subr.bf16.mxu0 0
      %2773 = vmatpush1.bf16.msra.mxu0 0
      %2774 = vmatprep.subr.bf16.mxu0 0
      %2775 = vmatpush1.bf16.msra.mxu0 0
      %2776 = vmatprep.subr.bf16.mxu0 0
      %2777 = vmatpush1.bf16.msra.mxu0 0
      %2778 = vmatprep.subr.bf16.mxu0 0
      %2779 = vmatpush1.bf16.msra.mxu0 0
      %2780 = vmatprep.subr.bf16.mxu0 0
      %2781 = vmatpush1.bf16.msra.mxu0 0
      %2782 = vmatprep.subr.bf16.mxu0 0
      %2783 = vmatpush1.bf16.msra.mxu0 0
      %2784 = vmatprep.subr.bf16.mxu0 0
      %2785 = vmatpush1.bf16.msra.mxu0 0
      %2786 = vmatprep.mubr.bf16.mxu0 0
      %2787 = vmatmul.mubr.bf16.gmra.mrb[0].mxu0 %v2688
      %v2788 = vpop.f32.mrb[0].mxu0
      %v2789 = vadd.f32 %v2705, %v2788
      %v2790 = vpop.f32.mrb[0].mxu0
      %v2791 = vpop.f32.mrb[0].mxu0
      %v2792 = vpop.f32.mrb[0].mxu0
      %2793 = vdwg.mxu0
      %v2794 = vmax.f32 %v2789, 0.0
      %v2795 = vpack.c.bf16 %v2794, %v2794
      %v2796 = vld [vmem:[%s9] sm:$0xf]
      %v2797 = vld [vmem:[%s9 + $0x4] sm:$0xf]
      %v2798 = vld [vmem:[%s9 + $0x8] sm:$0xf]
      %v2799 = vld [vmem:[%s9 + $0xc] sm:$0xf]
      %v2800 = vld [vmem:[%s9 + $0x10] sm:$0xf]
      %v2801 = vld [vmem:[%s9 + $0x14] sm:$0xf]
      %v2802 = vld [vmem:[%s9 + $0x18] sm:$0xf]
      %v2803 = vld [vmem:[%s9 + $0x1c] sm:$0xf]
      %v2804 = vld [vmem:[%s9 + $0x20] sm:$0xf]
      %v2805 = vld [vmem:[%s9 + $0x24] sm:$0xf]
      %v2806 = vld [vmem:[%s9 + $0x28] sm:$0xf]
      %v2807 = vld [vmem:[%s9 + $0x2c] sm:$0xf]
      %v2808 = vld [vmem:[%s9 + $0x30] sm:$0xf]
      %v2809 = vld [vmem:[%s9 + $0x34] sm:$0xf]
      %v2810 = vld [vmem:[%s9 + $0x38] sm:$0xf]
      %v2811 = vld [vmem:[%s9 + $0x3c] sm:$0xf]
      %v2812 = vld [vmem:[%s10] sm:$0x1]
      %v2829 = vunpack.c.l.b16 %v2796
      %v2830 = vunpack.c.l.b16 %v2797
      %v2831 = vunpack.c.l.b16 %v2798
      %v2832 = vunpack.c.l.b16 %v2799
      %v2833 = vunpack.c.l.b16 %v2800
      %v2834 = vunpack.c.l.b16 %v2801
      %v2835 = vunpack.c.l.b16 %v2802
      %v2836 = vunpack.c.l.b16 %v2803
      %v2837 = vunpack.c.l.b16 %v2804
      %v2838 = vunpack.c.l.b16 %v2805
      %v2839 = vunpack.c.l.b16 %v2806
      %v2840 = vunpack.c.l.b16 %v2807
      %v2841 = vunpack.c.l.b16 %v2808
      %v2842 = vunpack.c.l.b16 %v2809
      %v2843 = vunpack.c.l.b16 %v2810
      %v2844 = vunpack.c.l.b16 %v2811
      %v2845 = vpack.c.b16 %v2830, %v2829
      %v2846 = vpack.c.b16 %v2832, %v2831
      %v2847 = vpack.c.b16 %v2834, %v2833
      %v2848 = vpack.c.b16 %v2836, %v2835
      %v2849 = vpack.c.b16 %v2838, %v2837
      %v2850 = vpack.c.b16 %v2840, %v2839
      %v2851 = vpack.c.b16 %v2842, %v2841
      %v2852 = vpack.c.b16 %v2844, %v2843
      %2861 = vmatprep.subr.bf16.mxu0 0
      %2862 = vmatpush1.bf16.msra.mxu0 %v2845
      %2863 = vmatprep.subr.bf16.mxu0 0
      %2864 = vmatpush1.bf16.msra.mxu0 %v2846
      %2865 = vmatprep.subr.bf16.mxu0 0
      %2866 = vmatpush1.bf16.msra.mxu0 %v2847
      %2867 = vmatprep.subr.bf16.mxu0 0
      %2868 = vmatpush1.bf16.msra.mxu0 %v2848
      %2869 = vmatprep.subr.bf16.mxu0 0
      %2870 = vmatpush1.bf16.msra.mxu0 %v2849
      %2871 = vmatprep.subr.bf16.mxu0 0
      %2872 = vmatpush1.bf16.msra.mxu0 %v2850
      %2873 = vmatprep.subr.bf16.mxu0 0
      %2874 = vmatpush1.bf16.msra.mxu0 %v2851
      %2875 = vmatprep.subr.bf16.mxu0 0
      %2876 = vmatpush1.bf16.msra.mxu0 %v2852
      %2877 = vmatprep.subr.bf16.mxu0 0
      %2878 = vmatpush1.bf16.msra.mxu0 0
      %2879 = vmatprep.subr.bf16.mxu0 0
      %2880 = vmatpush1.bf16.msra.mxu0 0
      %2881 = vmatprep.subr.bf16.mxu0 0
      %2882 = vmatpush1.bf16.msra.mxu0 0
      %2883 = vmatprep.subr.bf16.mxu0 0
      %2884 = vmatpush1.bf16.msra.mxu0 0
      %2885 = vmatprep.subr.bf16.mxu0 0
      %2886 = vmatpush1.bf16.msra.mxu0 0
      %2887 = vmatprep.subr.bf16.mxu0 0
      %2888 = vmatpush1.bf16.msra.mxu0 0
      %2889 = vmatprep.subr.bf16.mxu0 0
      %2890 = vmatpush1.bf16.msra.mxu0 0
      %2891 = vmatprep.subr.bf16.mxu0 0
      %2892 = vmatpush1.bf16.msra.mxu0 0
      %2893 = vmatprep.mubr.bf16.mxu0 0
      %2894 = vmatmul.mubr.bf16.gmra.mrb[0].mxu0 %v2795
      %v2895 = vpop.f32.mrb[0].mxu0
      %v2896 = vadd.f32 %v2812, %v2895
      %v2897 = vpop.f32.mrb[0].mxu0
      %v2898 = vpop.f32.mrb[0].mxu0
      %v2899 = vpop.f32.mrb[0].mxu0
      %2900 = vdwg.mxu0
      %v2901 = vmul.f32 %v2896, 0.5
      %v2902 = vtanh.pop %v2901
      %v2903 = vadd.f32 %v2902, 1.0
      %v2904 = vmul.f32 %v2903, 0.5
      %2905 = vst [vmem:[%s382] sm:$0x1] %v2904
      %p2906 = scmp.lt.s32.totalorder %s22, 1
      %s2907 = scalar_select %p2906, %s22, 1
      %s2908 = scalar_lea.vmem %s11, %s2907
      // Predicated region
      $region72: #{discriminator_forward.1} parent=63 // pred_check
        %p2909 = pneg %p276
      $region73: #{discriminator_forward.1} parent=63 // pred_check_branch
        %2911 = sbr.rel (%p2909) target = $region75
      $region74: #{discriminator_forward.1} parent=63 // pred_region
        _
      $region75: #{discriminator_forward.1} parent=63 // pred_fallthru
        _
    $region64: #{discriminator_forward.1} parent=5 // pred_fallthru
      _
    %p2912 = scmp.le.s32.totalorder 2, %s17
    // Predicated region
    $region76: #{discriminator_forward.1} parent=5 // pred_check
      %p2913 = pneg %p2912
    $region77: #{discriminator_forward.1} parent=5 // pred_check_branch
      %2915 = sbr.rel (%p2913) target = $region79
    $region78: #{discriminator_forward.1} parent=5 // pred_region
      %s2916 = ssub.s32 %s17, 2
      // Predicated region
      $region80: #{discriminator_forward.1} parent=78 // pred_check
        %p2917 = pneg %p282
      $region81: #{discriminator_forward.1} parent=78 // pred_check_branch
        %2919 = sbr.rel (%p2917) target = $region83
      $region82: #{discriminator_forward.1} parent=78 // pred_region
        %p2920 = scmp.lt.s32.totalorder %s23, 1
        %s2921 = scalar_select %p2920, %s23, 1
        %s2922 = scalar_lea.vmem %s11, %s2921
      $region83: #{discriminator_forward.1} parent=78 // pred_fallthru
        _
    $region79: #{discriminator_forward.1} parent=5 // pred_fallthru
      _
  $region6: #{discriminator_forward.1} parent=0 // loop_footer
    %s21 = sadd.s32 1, %s17
  $region7: #{discriminator_forward.1} parent=0 // loop_footer_branch
    %16 = sbr.rel target = $region3
  $region8: #{discriminator_forward.1} parent=0 // loop_exit
    _

</llo_original>
